<compile_context>
chip_gen: v7x
topology: tpu7x:2x2x1
jax: 0.10.0
libtpu: 0.0.40
codegen_flags: <defaults>
</compile_context>

<pallas_src>
import functools
import math

import jax
import jax.numpy as jnp
from jax import lax
from jax.experimental import pallas as pl
from jax.experimental.pallas import tpu as pltpu

_LN_EPS = 1e-6
_ACT_DTYPE = jnp.bfloat16             # inter-kernel activation / attn-prob dtype
_TRANS_B = (((1,), (1,)), ((), ()))   # contract last dims of both operands (q @ k^T)
_EXACT_SOFTMAX = False                # True -> exact division (closer to reference)


# ----------------------------------------------------------------------------
# Hardware-derived knobs
# ----------------------------------------------------------------------------
@functools.lru_cache(maxsize=None)
def _vmem_limit_bytes():
    """Scoped VMEM limit from chip capacity: ~96 MiB on 128-MiB parts (v5e/v6e),
    ~48 MiB on 64-MiB parts (v7x)."""
    try:
        cap = int(pltpu.get_tpu_info().vmem_capacity_bytes)
    except Exception:
        cap = 64 * 1024 * 1024
    return min(96 * 1024 * 1024, (cap * 3) // 4)


@functools.lru_cache(maxsize=None)
def _single_buffer_supported():
    """Probe whether BlockSpec(pipeline_mode=pl.Buffered(1)) lowers on this JAX
    build; if so, grid-invariant weights are single-buffered (halves their
    resident VMEM, important on v7x)."""
    if not hasattr(pl, "Buffered"):
        return False
    try:
        def _k(a_ref, o_ref):
            o_ref[...] = a_ref[...] * 2.0
        with jax.ensure_compile_time_eval():
            x = jnp.zeros((8, 128), jnp.float32)
            out = pl.pallas_call(
                _k,
                out_shape=jax.ShapeDtypeStruct((8, 128), jnp.float32),
                grid=(1,),
                in_specs=[pl.BlockSpec((8, 128), lambda i: (0, 0),
                                       pipeline_mode=pl.Buffered(1))],
                out_specs=pl.BlockSpec((8, 128), lambda i: (0, 0)),
            )(x)
            jax.block_until_ready(out)
        return True
    except Exception:
        return False


def _const_spec(shape):
    """BlockSpec for a grid-invariant operand (weights / biases / LN params):
    constant index_map (fetched once); single-buffered when supported."""
    ndim = len(shape)
    index_map = lambda *_: (0,) * ndim
    if _single_buffer_supported():
        return pl.BlockSpec(shape, index_map, pipeline_mode=pl.Buffered(1))
    return pl.BlockSpec(shape, index_map)


def _q_tile(sq):
    """Query-row tile: full sequence when small, 256 rows (8- and 256-MXU
    aligned) otherwise so (tq, Sk) score/prob intermediates stay bounded."""
    return sq if sq <= 512 else 256


# ----------------------------------------------------------------------------
# In-kernel math helpers (f32)
# ----------------------------------------------------------------------------
def _ln_f32(x, gamma, beta, eps):
    mu = jnp.mean(x, axis=-1, keepdims=True)
    var = jnp.mean((x - mu) * (x - mu), axis=-1, keepdims=True)
    return (x - mu) * lax.rsqrt(var + eps) * gamma + beta


def _attention_block(x_q, x_kv, keep, wq, bq, wkv, bkv, wo, bo, gamma, beta,
                     attn_ref, *, n_head, d_k, d_v, scale, eps):
    """Fused MHA sub-block on one (tq, D) query tile:
    projections + per-head SDPA + ONE consolidated output projection +
    residual + post-LayerNorm.  Returns f32 (tq, D)."""
    # Fused projections: bf16 MXU inputs, f32 accumulation.
    qp = jnp.dot(x_q, wq, preferred_element_type=jnp.float32) + bq       # (tq, H*dk)
    kvp = jnp.dot(x_kv, wkv, preferred_element_type=jnp.float32) + bkv   # (Sk, H*(dk+dv))
    qp_b = qp.astype(jnp.bfloat16)
    kvp_b = kvp.astype(jnp.bfloat16)

    # TODO(synk): per-head q/k/v lane slices are not 128-lane aligned for small
    # d_k/d_v; padding heads to 128 lanes would remove the relayout cost.
    v_off = n_head * d_k
    neg = jnp.float32(-1e9)
    ctx_parts = []
    for h in range(n_head):
        qh = qp_b[:, h * d_k:(h + 1) * d_k]                              # (tq, dk)
        kh = kvp_b[:, h * d_k:(h + 1) * d_k]                             # (Sk, dk)
        vh = kvp_b[:, v_off + h * d_v: v_off + (h + 1) * d_v]            # (Sk, dv)

        s = lax.dot_general(qh, kh, _TRANS_B,
                            preferred_element_type=jnp.float32) * scale  # (tq, Sk)
        s = jnp.where(keep, s, neg)
        s = s - jnp.max(s, axis=-1, keepdims=True)
        p = jnp.exp(s)
        denom = jnp.sum(p, axis=-1, keepdims=True)
        if _EXACT_SOFTMAX:
            p = p / denom
        else:
            p = p * pl.reciprocal(denom, approx=True)
        if attn_ref is not None:
            attn_ref[0, h] = p.astype(attn_ref.dtype)
        ctx_parts.append(jnp.dot(p.astype(jnp.bfloat16), vh,
                                 preferred_element_type=jnp.float32))    # (tq, dv)

    # Single consolidated output projection over lane-concatenated heads:
    # one matmul with contraction H*d_v (= d_model) instead of H tiny matmuls.
    ctx = jnp.concatenate(ctx_parts, axis=-1).astype(jnp.bfloat16)       # (tq, H*dv)
    y = jnp.dot(ctx, wo, preferred_element_type=jnp.float32) + bo \
        + x_q.astype(jnp.float32)
    return _ln_f32(y, gamma, beta, eps)


# ----------------------------------------------------------------------------
# Kernels
# ----------------------------------------------------------------------------
def _embed_ln_kernel(emb_ref, pos_ref, g_ref, b_ref, o_ref, *, scale, eps):
    # PositionalEncoder (x * sqrt(d_model) + sinusoid table) fused with the
    # post-embedding LayerNorm; dropout is identity in eval mode.
    x = emb_ref[0] * jnp.float32(scale) + pos_ref[...]
    o_ref[0] = _ln_f32(x, g_ref[...], b_ref[...], eps).astype(o_ref.dtype)


def _mha_kernel(q_ref, kv_ref, mask_ref,
                wq_ref, bq_ref, wkv_ref, bkv_ref, wo_ref, bo_ref,
                g_ref, bt_ref, o_ref, *rest,
                n_head, d_k, d_v, scale, eps, with_attn):
    attn_ref = rest[0] if with_attn else None
    keep = mask_ref[0].astype(jnp.float32) != 0.0                # (tq, Sk) bool
    y = _attention_block(q_ref[0], kv_ref[0], keep,
                         wq_ref[...], bq_ref[...], wkv_ref[...], bkv_ref[...],
                         wo_ref[...], bo_ref[...], g_ref[...], bt_ref[...],
                         attn_ref, n_head=n_head, d_k=d_k, d_v=d_v,
                         scale=scale, eps=eps)
    o_ref[0] = y.astype(o_ref.dtype)


def _mha_ffn_kernel(q_ref, kv_ref, mask_ref,
                    wq_ref, bq_ref, wkv_ref, bkv_ref, wo_ref, bo_ref,
                    ag_ref, ab_ref,
                    w1_ref, b1_ref, w2_ref, b2_ref, fg_ref, fb_ref,
                    o_ref, *rest,
                    n_head, d_k, d_v, scale, eps, with_attn):
    attn_ref = rest[0] if with_attn else None
    keep = mask_ref[0].astype(jnp.float32) != 0.0
    y = _attention_block(q_ref[0], kv_ref[0], keep,
                         wq_ref[...], bq_ref[...], wkv_ref[...], bkv_ref[...],
                         wo_ref[...], bo_ref[...], ag_ref[...], ab_ref[...],
                         attn_ref, n_head=n_head, d_k=d_k, d_v=d_v,
                         scale=scale, eps=eps)                    # (tq, D) f32
    # PositionwiseFeedForward fused on the resident tile:
    # LayerNorm(W2(relu(W1(y))) + y).
    # TODO(synk): for very large d_inner on v7x, a d_inner grid axis with an
    # f32 accumulator would bound resident weight + intermediate size.
    y_b = y.astype(jnp.bfloat16)
    h = jnp.dot(y_b, w1_ref[...], preferred_element_type=jnp.float32) + b1_ref[...]
    h = jnp.maximum(h, 0.0)
    z = jnp.dot(h.astype(jnp.bfloat16), w2_ref[...],
                preferred_element_type=jnp.float32) + b2_ref[...] + y
    o_ref[0] = _ln_f32(z, fg_ref[...], fb_ref[...], eps).astype(o_ref.dtype)


# ----------------------------------------------------------------------------
# pallas_call wrappers
# ----------------------------------------------------------------------------
def embed_pos_layernorm(emb, pos, gamma, beta, d_model):
    B, Sd, D = emb.shape
    return pl.pallas_call(
        functools.partial(_embed_ln_kernel, scale=math.sqrt(d_model), eps=_LN_EPS),
        out_shape=jax.ShapeDtypeStruct((B, Sd, D), _ACT_DTYPE),
        grid=(B,),
        in_specs=[pl.BlockSpec((1, Sd, D), lambda b: (b, 0, 0)),
                  _const_spec((Sd, D)),
                  _const_spec((1, D)),
                  _const_spec((1, D))],
        out_specs=pl.BlockSpec((1, Sd, D), lambda b: (b, 0, 0)),
        compiler_params=pltpu.CompilerParams(
            dimension_semantics=("parallel",),
            vmem_limit_bytes=_vmem_limit_bytes()),
    )(emb, pos, gamma, beta)


def _attn_in_specs(Sk, D, tq, H, dk, dv):
    n_qk, n_kv, n_ov = H * dk, H * (dk + dv), H * dv
    return [
        pl.BlockSpec((1, tq, D), lambda b, q: (b, q, 0)),     # x_q / residual (bf16)
        pl.BlockSpec((1, Sk, D), lambda b, q: (b, 0, 0)),     # kv source (bf16)
        pl.BlockSpec((1, tq, Sk), lambda b, q: (b, q, 0)),    # mask (int8)
        _const_spec((D, n_qk)),                               # w_q  (bf16)
        _const_spec((1, n_qk)),                               # b_q
        _const_spec((D, n_kv)),                               # w_kv (bf16, K|V fused)
        _const_spec((1, n_kv)),                               # b_kv
        _const_spec((n_ov, D)),                               # w_o  (bf16)
        _const_spec((1, D)),                                  # b_o
        _const_spec((1, D)),                                  # ln gamma
        _const_spec((1, D)),                                  # ln beta
    ]


def _attn_inputs(p):
    return (p["w_q"], p["b_q"], p["w_kv"], p["b_kv"],
            p["w_o"], p["b_o"], p["ln_g"], p["ln_b"])


def _attn_outputs(B, Sq, Sk, D, tq, H, with_attn):
    if with_attn:
        out_shape = (jax.ShapeDtypeStruct((B, Sq, D), _ACT_DTYPE),
                     jax.ShapeDtypeStruct((B, H, Sq, Sk), _ACT_DTYPE))
        out_specs = (pl.BlockSpec((1, tq, D), lambda b, q: (b, q, 0)),
                     pl.BlockSpec((1, H, tq, Sk), lambda b, q: (b, 0, q, 0)))
        return out_shape, out_specs
    return (jax.ShapeDtypeStruct((B, Sq, D), _ACT_DTYPE),
            pl.BlockSpec((1, tq, D), lambda b, q: (b, q, 0)))


def self_attention(x, trg_mask_i8, p, cfg, with_attn=False):
    B, Sq, D = x.shape
    H, dk, dv = cfg["n_head"], cfg["d_k"], cfg["d_v"]
    tq = _q_tile(Sq)
    out_shape, out_specs = _attn_outputs(B, Sq, Sq, D, tq, H, with_attn)
    res = pl.pallas_call(
        functools.partial(_mha_kernel, n_head=H, d_k=dk, d_v=dv,
                          scale=1.0 / math.sqrt(dk), eps=_LN_EPS,
                          with_attn=with_attn),
        out_shape=out_shape,
        grid=(B, pl.cdiv(Sq, tq)),
        in_specs=_attn_in_specs(Sq, D, tq, H, dk, dv),
        out_specs=out_specs,
        compiler_params=pltpu.CompilerParams(
            dimension_semantics=("parallel", "parallel"),
            vmem_limit_bytes=_vmem_limit_bytes()),
    )(x, x, trg_mask_i8, *_attn_inputs(p))
    return (res[0], res[1]) if with_attn else (res, None)


def cross_attention_ffn(x, enc, src_mask_i8, attn_p, ffn_p, cfg, with_attn=False):
    B, Sq, D = x.shape
    Sk = enc.shape[1]
    H, dk, dv = cfg["n_head"], cfg["d_k"], cfg["d_v"]
    d_inner = ffn_p["w1"].shape[1]
    tq = _q_tile(Sq)
    out_shape, out_specs = _attn_outputs(B, Sq, Sk, D, tq, H, with_attn)
    in_specs = _attn_in_specs(Sk, D, tq, H, dk, dv) + [
        _const_spec((D, d_inner)),   # w1
        _const_spec((1, d_inner)),   # b1
        _const_spec((d_inner, D)),   # w2
        _const_spec((1, D)),         # b2
        _const_spec((1, D)),         # ffn ln gamma
        _const_spec((1, D)),         # ffn ln beta
    ]
    res = pl.pallas_call(
        functools.partial(_mha_ffn_kernel, n_head=H, d_k=dk, d_v=dv,
                          scale=1.0 / math.sqrt(dk), eps=_LN_EPS,
                          with_attn=with_attn),
        out_shape=out_shape,
        grid=(B, pl.cdiv(Sq, tq)),
        in_specs=in_specs,
        out_specs=out_specs,
        compiler_params=pltpu.CompilerParams(
            dimension_semantics=("parallel", "parallel"),
            vmem_limit_bytes=_vmem_limit_bytes()),
    )(x, enc, src_mask_i8, *_attn_inputs(attn_p),
      ffn_p["w1"], ffn_p["b1"], ffn_p["w2"], ffn_p["b2"],
      ffn_p["ln_g"], ffn_p["ln_b"])
    return (res[0], res[1]) if with_attn else (res, None)


# ----------------------------------------------------------------------------
# Decoder forward (glue: embedding gather, layer loop)
# ----------------------------------------------------------------------------
def decoder_forward(params, cfg, trg_seq, trg_mask, enc_output, src_mask,
                    return_attns=False):
    d_model = cfg["d_model"]
    Sd = trg_seq.shape[1]

    # TODO(synk): embedding lookup is a data-dependent gather; kept in XLA.
    emb = jnp.take(params["emb"], trg_seq, axis=0)                     # (B, Sd, D) f32
    # PositionalEncoder + dropout(eval)=identity + LayerNorm, fused.
    x = embed_pos_layernorm(emb, params["pos_table"][:Sd],
                            params["ln_g"], params["ln_b"], d_model)   # bf16

    # Masks carried as int8 (4x less HBM/VMEM than f32); converted once.
    trg_mask_i8 = (trg_mask != 0).astype(jnp.int8)
    src_mask_i8 = (src_mask != 0).astype(jnp.int8)
    enc_b = enc_output.astype(_ACT_DTYPE)

    slf_attns, enc_attns = [], []
    for lp in params["layers"]:
        x, slf_a = self_attention(x, trg_mask_i8, lp["slf"], cfg,
                                  with_attn=return_attns)
        x, enc_a = cross_attention_ffn(x, enc_b, src_mask_i8, lp["enc"], lp["ffn"],
                                       cfg, with_attn=return_attns)
        if return_attns:
            slf_attns.append(slf_a)
            enc_attns.append(enc_a)

    x = x.astype(jnp.float32)
    if return_attns:
        return x, slf_attns, enc_attns
    return (x,)


# ----------------------------------------------------------------------------
# Deterministic parameter initialization (Xavier uniform for dim>1 weights)
# ----------------------------------------------------------------------------
def _xavier(key, shape):
    fan_in, fan_out = shape[0], shape[1]
    bound = math.sqrt(6.0 / (fan_in + fan_out))
    return jax.random.uniform(key, shape, jnp.float32, -bound, bound)


def _sinusoid_table(max_seq_len, d_model):
    pos = jnp.arange(max_seq_len, dtype=jnp.float32)[:, None]
    i = jnp.arange(d_model)
    div = jnp.power(10000.0, (2 * (i // 2)).astype(jnp.float32) / d_model)
    ang = pos / div
    return jnp.where(i % 2 == 0, jnp.sin(ang), jnp.cos(ang)).astype(jnp.float32)


def init_decoder_params(key, cfg):
    # Warm hardware probes eagerly (outside any jit trace).
    _vmem_limit_bytes()
    _single_buffer_supported()

    d_model, d_inner = cfg["d_model"], cfg["d_inner"]
    H, dk, dv = cfg["n_head"], cfg["d_k"], cfg["d_v"]
    vocab, pad_idx = cfg["vocab_size"], cfg["pad_idx"]

    keys = iter(jax.random.split(key, 256))

    def mha_params():
        w_q = _xavier(next(keys), (d_model, H * dk))
        w_k = _xavier(next(keys), (d_model, H * dk))
        w_v = _xavier(next(keys), (d_model, H * dv))
        w_o = _xavier(next(keys), (H * dv, d_model))
        return dict(
            w_q=w_q.astype(jnp.bfloat16),
            b_q=jnp.zeros((1, H * dk), jnp.float32),
            # K and V projections fused into a single (D, H*(dk+dv)) weight.
            w_kv=jnp.concatenate([w_k, w_v], axis=1).astype(jnp.bfloat16),
            b_kv=jnp.zeros((1, H * (dk + dv)), jnp.float32),
            w_o=w_o.astype(jnp.bfloat16),
            b_o=jnp.zeros((1, d_model), jnp.float32),
            ln_g=jnp.ones((1, d_model), jnp.float32),
            ln_b=jnp.zeros((1, d_model), jnp.float32),
        )

    def ffn_params():
        return dict(
            w1=_xavier(next(keys), (d_model, d_inner)).astype(jnp.bfloat16),
            b1=jnp.zeros((1, d_inner), jnp.float32),
            w2=_xavier(next(keys), (d_inner, d_model)).astype(jnp.bfloat16),
            b2=jnp.zeros((1, d_model), jnp.float32),
            ln_g=jnp.ones((1, d_model), jnp.float32),
            ln_b=jnp.zeros((1, d_model), jnp.float32),
        )

    emb = _xavier(next(keys), (vocab, d_model))
    emb = emb.at[pad_idx].set(0.0)   # padding_idx row = 0

    return dict(
        emb=emb,
        pos_table=_sinusoid_table(cfg["max_seq_len"], d_model),
        ln_g=jnp.ones((1, d_model), jnp.float32),
        ln_b=jnp.zeros((1, d_model), jnp.float32),
        layers=[dict(slf=mha_params(), enc=mha_params(), ffn=ffn_params())
                for _ in range(cfg["n_layers"])],
    )


# ----------------------------------------------------------------------------
# Pure-JAX reference (f32 math on the same bf16-quantized weights)
# ----------------------------------------------------------------------------
def _reference_forward(params, cfg, trg_seq, trg_mask, enc_output, src_mask):
    D = cfg["d_model"]
    H, dk, dv = cfg["n_head"], cfg["d_k"], cfg["d_v"]

    def ln(x, g, b):
        mu = x.mean(-1, keepdims=True)
        var = ((x - mu) ** 2).mean(-1, keepdims=True)
        return (x - mu) / jnp.sqrt(var + _LN_EPS) * g.reshape(-1) + b.reshape(-1)

    def mha(q, kv, mask, p):
        B, Sq, _ = q.shape
        Sk = kv.shape[1]
        qp = q @ p["w_q"].astype(jnp.float32) + p["b_q"].reshape(-1)
        kvp = kv @ p["w_kv"].astype(jnp.float32) + p["b_kv"].reshape(-1)
        kp, vp = kvp[..., :H * dk], kvp[..., H * dk:]
        qh = qp.reshape(B, Sq, H, dk).transpose(0, 2, 1, 3)
        kh = kp.reshape(B, Sk, H, dk).transpose(0, 2, 1, 3)
        vh = vp.reshape(B, Sk, H, dv).transpose(0, 2, 1, 3)
        s = (qh @ kh.transpose(0, 1, 3, 2)) / math.sqrt(dk)
        s = jnp.where(mask[:, None] != 0, s, -1e9)
        a = jax.nn.softmax(s, axis=-1)
        ctx = (a @ vh).transpose(0, 2, 1, 3).reshape(B, Sq, H * dv)
        y = ctx @ p["w_o"].astype(jnp.float32) + p["b_o"].reshape(-1) + q
        return ln(y, p["ln_g"], p["ln_b"])

    def ffn(x, p):
        h = jax.nn.relu(x @ p["w1"].astype(jnp.float32) + p["b1"].reshape(-1))
        y = h @ p["w2"].astype(jnp.float32) + p["b2"].reshape(-1) + x
        return ln(y, p["ln_g"], p["ln_b"])

    Sd = trg_seq.shape[1]
    x = jnp.take(params["emb"], trg_seq, axis=0) * math.sqrt(D) \
        + params["pos_table"][:Sd][None]
    x = ln(x, params["ln_g"], params["ln_b"])
    for lp in params["layers"]:
        x = mha(x, x, trg_mask, lp["slf"])
        x = mha(x, enc_output, src_mask, lp["enc"])
        x = ffn(x, lp["ffn"])
    return x


# ----------------------------------------------------------------------------
if __name__ == "__main__":
    cfg = dict(
        vocab_size=50, pad_idx=0, n_layers=2,
        d_model=32, d_inner=64, max_seq_len=64,
        n_head=4, d_k=8, d_v=8,
    )
    B, Sd, Se = 2, 8, 8

    key = jax.random.PRNGKey(0)
    k_params, k_seq, k_enc = jax.random.split(key, 3)

    params = init_decoder_params(k_params, cfg)

    trg_seq = jax.random.randint(k_seq, (B, Sd), 1, cfg["vocab_size"])
    enc_output = jax.random.normal(k_enc, (B, Se, cfg["d_model"]), jnp.float32)

    # causal self-attention mask (nonzero = attend), full cross-attention mask
    trg_mask = jnp.tril(jnp.ones((Sd, Sd), jnp.float32))[None].repeat(B, 0)
    src_mask = jnp.ones((B, Sd, Se), jnp.float32)

    @jax.jit
    def run(prm, ts, tm, eo, sm):
        return decoder_forward(prm, cfg, ts, tm, eo, sm)[0]

    dec_out = run(params, trg_seq, trg_mask, enc_output, src_mask)
    jax.block_until_ready(dec_out)
    assert dec_out.shape == (B, Sd, cfg["d_model"])

    # Sanity check against the pure-JAX reference (loose tolerance: bf16
    # activation carries + approx softmax reciprocal by design).
    ref = _reference_forward(params, cfg, trg_seq, trg_mask, enc_output, src_mask)
    max_diff = float(jnp.max(jnp.abs(dec_out - ref)))
    assert max_diff < 0.35, f"kernel vs reference mismatch: {max_diff}"

    print("KERNEL_OK")
</pallas_src>

<mosaic_0001>
module attributes {stable_mosaic.version = 11 : i64} {
  func.func @_k(%arg0: i32, %arg1: memref<8x128xf32, #tpu.memory_space<vmem>>, %arg2: memref<8x128xf32, #tpu.memory_space<vmem>>) attributes {dimension_semantics = [#tpu.dimension_semantics<arbitrary>], iteration_bounds = array<i64: 1>, scalar_prefetch = 0 : i64, scratch_operands = 0 : i64, tpu.core_type = #tpu.core_type<tc>, window_params = [{pipeline_mode = #tpu.pipeline_mode<synchronous>, transform_indices = @transform_0, window_bounds = array<i64: 8, 128>}, {pipeline_mode = #tpu.pipeline_mode<synchronous>, transform_indices = @transform_1, window_bounds = array<i64: 8, 128>}]} {
    %c0 = arith.constant 0 : index
    %c0_0 = arith.constant 0 : index
    %0 = vector.load %arg1[%c0, %c0_0] : memref<8x128xf32, #tpu.memory_space<vmem>>, vector<8x128xf32>
    %cst = arith.constant 2.000000e+00 : f32
    %1 = vector.broadcast %cst : f32 to vector<8x128xf32>
    %2 = arith.mulf %0, %1 : vector<8x128xf32>
    %c0_1 = arith.constant 0 : index
    %c0_2 = arith.constant 0 : index
    %3 = vector.load %arg2[%c0_1, %c0_2] : memref<8x128xf32, #tpu.memory_space<vmem>>, vector<8x128xf32>
    tpu.vector_store %arg2[%c0_1, %c0_2], %2 {strides = array<i32>} : memref<8x128xf32, #tpu.memory_space<vmem>>, vector<8x128xf32>,
    return
  }
  func.func @transform_0(%arg0: i32) -> (i32, i32) {
    %c0_i32 = arith.constant 0 : i32
    %c0_i32_0 = arith.constant 0 : i32
    %c0_i32_1 = arith.constant 0 : i32
    return %c0_i32, %c0_i32_0 : i32, i32
  }
  func.func @transform_1(%arg0: i32) -> (i32, i32) {
    %c0_i32 = arith.constant 0 : i32
    %c0_i32_0 = arith.constant 0 : i32
    %c0_i32_1 = arith.constant 0 : i32
    return %c0_i32, %c0_i32_0 : i32, i32
  }
}

module attributes {stable_mosaic.version = 11 : i64} {
  func.func @_embed_ln_kernel(%arg0: i32, %arg1: memref<1x8x32xf32, #tpu.memory_space<vmem>>, %arg2: memref<8x32xf32, #tpu.memory_space<vmem>>, %arg3: memref<1x32xf32, #tpu.memory_space<vmem>>, %arg4: memref<1x32xf32, #tpu.memory_space<vmem>>, %arg5: memref<1x8x32xbf16, #tpu.memory_space<vmem>>) attributes {dimension_semantics = [#tpu.dimension_semantics<parallel>], iteration_bounds = array<i64: 2>, scalar_prefetch = 0 : i64, scratch_operands = 0 : i64, tpu.core_type = #tpu.core_type<tc>, window_params = [{transform_indices = @transform_0, window_bounds = array<i64: 1, 8, 32>}, {pipeline_mode = #tpu.pipeline_mode<synchronous>, transform_indices = @transform_1, window_bounds = array<i64: 8, 32>}, {pipeline_mode = #tpu.pipeline_mode<synchronous>, transform_indices = @transform_2, window_bounds = array<i64: 1, 32>}, {pipeline_mode = #tpu.pipeline_mode<synchronous>, transform_indices = @transform_3, window_bounds = array<i64: 1, 32>}, {transform_indices = @transform_4, window_bounds = array<i64: 1, 8, 32>}]} {
    %c0 = arith.constant 0 : index
    %c0_0 = arith.constant 0 : index
    %c0_1 = arith.constant 0 : index
    %0 = vector.load %arg1[%c0, %c0_0, %c0_1] : memref<1x8x32xf32, #tpu.memory_space<vmem>>, vector<1x8x32xf32>
    %1 = vector.shape_cast %0 : vector<1x8x32xf32> to vector<8x32xf32>
    %cst = arith.constant 5.65685415 : f32
    %2 = vector.broadcast %cst : f32 to vector<8x32xf32>
    %3 = arith.mulf %1, %2 : vector<8x32xf32>
    %c0_2 = arith.constant 0 : index
    %c0_3 = arith.constant 0 : index
    %4 = vector.load %arg2[%c0_2, %c0_3] : memref<8x32xf32, #tpu.memory_space<vmem>>, vector<8x32xf32>
    %5 = arith.addf %3, %4 : vector<8x32xf32>
    %c0_4 = arith.constant 0 : index
    %c0_5 = arith.constant 0 : index
    %6 = vector.load %arg3[%c0_4, %c0_5] : memref<1x32xf32, #tpu.memory_space<vmem>>, vector<1x32xf32>
    %c0_6 = arith.constant 0 : index
    %c0_7 = arith.constant 0 : index
    %7 = vector.load %arg4[%c0_6, %c0_7] : memref<1x32xf32, #tpu.memory_space<vmem>>, vector<1x32xf32>
    %cst_8 = arith.constant dense<0.000000e+00> : vector<8xf32>
    %8 = vector.multi_reduction <add>, %5, %cst_8 [1] : vector<8x32xf32> to vector<8xf32>
    %9 = vector.shape_cast %8 : vector<8xf32> to vector<8x1xf32>
    %cst_9 = arith.constant 3.200000e+01 : f32
    %10 = vector.broadcast %cst_9 : f32 to vector<8x1xf32>
    %11 = arith.divf %9, %10 : vector<8x1xf32>
    %12 = vector.broadcast %11 : vector<8x1xf32> to vector<8x32xf32>
    %13 = arith.subf %5, %12 : vector<8x32xf32>
    %14 = vector.broadcast %11 : vector<8x1xf32> to vector<8x32xf32>
    %15 = arith.subf %5, %14 : vector<8x32xf32>
    %16 = arith.mulf %13, %15 : vector<8x32xf32>
    %cst_10 = arith.constant dense<0.000000e+00> : vector<8xf32>
    %17 = vector.multi_reduction <add>, %16, %cst_10 [1] : vector<8x32xf32> to vector<8xf32>
    %18 = vector.shape_cast %17 : vector<8xf32> to vector<8x1xf32>
    %cst_11 = arith.constant 3.200000e+01 : f32
    %19 = vector.broadcast %cst_11 : f32 to vector<8x1xf32>
    %20 = arith.divf %18, %19 : vector<8x1xf32>
    %21 = vector.broadcast %11 : vector<8x1xf32> to vector<8x32xf32>
    %22 = arith.subf %5, %21 : vector<8x32xf32>
    %cst_12 = arith.constant 9.99999997E-7 : f32
    %23 = vector.broadcast %cst_12 : f32 to vector<8x1xf32>
    %24 = arith.addf %20, %23 : vector<8x1xf32>
    %25 = math.rsqrt %24 : vector<8x1xf32>
    %26 = vector.broadcast %25 : vector<8x1xf32> to vector<8x32xf32>
    %27 = arith.mulf %22, %26 : vector<8x32xf32>
    %28 = vector.broadcast %6 : vector<1x32xf32> to vector<8x32xf32>
    %29 = arith.mulf %27, %28 : vector<8x32xf32>
    %30 = vector.broadcast %7 : vector<1x32xf32> to vector<8x32xf32>
    %31 = arith.addf %29, %30 : vector<8x32xf32>
    %32 = arith.truncf %31 : vector<8x32xf32> to vector<8x32xbf16>
    %c0_13 = arith.constant 0 : index
    %c0_14 = arith.constant 0 : index
    %c0_15 = arith.constant 0 : index
    %33 = vector.load %arg5[%c0_13, %c0_14, %c0_15] : memref<1x8x32xbf16, #tpu.memory_space<vmem>>, vector<1x8x32xbf16>
    %34 = vector.shape_cast %33 : vector<1x8x32xbf16> to vector<8x32xbf16>
    %35 = vector.shape_cast %32 : vector<8x32xbf16> to vector<1x8x32xbf16>
    tpu.vector_store %arg5[%c0_13, %c0_14, %c0_15], %35 {strides = array<i32>} : memref<1x8x32xbf16, #tpu.memory_space<vmem>>, vector<1x8x32xbf16>,
    return
  }
  func.func @transform_0(%arg0: i32) -> (i32, i32, i32) {
    %c0_i32 = arith.constant 0 : i32
    %c0_i32_0 = arith.constant 0 : i32
    %c0_i32_1 = arith.constant 0 : i32
    return %arg0, %c0_i32, %c0_i32_0 : i32, i32, i32
  }
  func.func @transform_1(%arg0: i32) -> (i32, i32) {
    %c0_i32 = arith.constant 0 : i32
    %c0_i32_0 = arith.constant 0 : i32
    %c0_i32_1 = arith.constant 0 : i32
    return %c0_i32, %c0_i32_0 : i32, i32
  }
  func.func @transform_2(%arg0: i32) -> (i32, i32) {
    %c0_i32 = arith.constant 0 : i32
    %c0_i32_0 = arith.constant 0 : i32
    %c0_i32_1 = arith.constant 0 : i32
    return %c0_i32, %c0_i32_0 : i32, i32
  }
  func.func @transform_3(%arg0: i32) -> (i32, i32) {
    %c0_i32 = arith.constant 0 : i32
    %c0_i32_0 = arith.constant 0 : i32
    %c0_i32_1 = arith.constant 0 : i32
    return %c0_i32, %c0_i32_0 : i32, i32
  }
  func.func @transform_4(%arg0: i32) -> (i32, i32, i32) {
    %c0_i32 = arith.constant 0 : i32
    %c0_i32_0 = arith.constant 0 : i32
    %c0_i32_1 = arith.constant 0 : i32
    return %arg0, %c0_i32, %c0_i32_0 : i32, i32, i32
  }
}

module attributes {stable_mosaic.version = 11 : i64} {
  func.func @_mha_kernel(%arg0: i32, %arg1: i32, %arg2: memref<1x8x32xbf16, #tpu.memory_space<vmem>>, %arg3: memref<1x8x32xbf16, #tpu.memory_space<vmem>>, %arg4: memref<1x8x8xi8, #tpu.memory_space<vmem>>, %arg5: memref<32x32xbf16, #tpu.memory_space<vmem>>, %arg6: memref<1x32xf32, #tpu.memory_space<vmem>>, %arg7: memref<32x64xbf16, #tpu.memory_space<vmem>>, %arg8: memref<1x64xf32, #tpu.memory_space<vmem>>, %arg9: memref<32x32xbf16, #tpu.memory_space<vmem>>, %arg10: memref<1x32xf32, #tpu.memory_space<vmem>>, %arg11: memref<1x32xf32, #tpu.memory_space<vmem>>, %arg12: memref<1x32xf32, #tpu.memory_space<vmem>>, %arg13: memref<1x8x32xbf16, #tpu.memory_space<vmem>>) attributes {dimension_semantics = [#tpu.dimension_semantics<parallel>, #tpu.dimension_semantics<parallel>], iteration_bounds = array<i64: 2, 1>, scalar_prefetch = 0 : i64, scratch_operands = 0 : i64, tpu.core_type = #tpu.core_type<tc>, window_params = [{transform_indices = @transform_0, window_bounds = array<i64: 1, 8, 32>}, {transform_indices = @transform_1, window_bounds = array<i64: 1, 8, 32>}, {transform_indices = @transform_2, window_bounds = array<i64: 1, 8, 8>}, {pipeline_mode = #tpu.pipeline_mode<synchronous>, transform_indices = @transform_3, window_bounds = array<i64: 32, 32>}, {pipeline_mode = #tpu.pipeline_mode<synchronous>, transform_indices = @transform_4, window_bounds = array<i64: 1, 32>}, {pipeline_mode = #tpu.pipeline_mode<synchronous>, transform_indices = @transform_5, window_bounds = array<i64: 32, 64>}, {pipeline_mode = #tpu.pipeline_mode<synchronous>, transform_indices = @transform_6, window_bounds = array<i64: 1, 64>}, {pipeline_mode = #tpu.pipeline_mode<synchronous>, transform_indices = @transform_7, window_bounds = array<i64: 32, 32>}, {pipeline_mode = #tpu.pipeline_mode<synchronous>, transform_indices = @transform_8, window_bounds = array<i64: 1, 32>}, {pipeline_mode = #tpu.pipeline_mode<synchronous>, transform_indices = @transform_9, window_bounds = array<i64: 1, 32>}, {pipeline_mode = #tpu.pipeline_mode<synchronous>, transform_indices = @transform_10, window_bounds = array<i64: 1, 32>}, {transform_indices = @transform_11, window_bounds = array<i64: 1, 8, 32>}]} {
    %c0 = arith.constant 0 : index
    %c0_0 = arith.constant 0 : index
    %c0_1 = arith.constant 0 : index
    %0 = vector.load %arg4[%c0, %c0_0, %c0_1] : memref<1x8x8xi8, #tpu.memory_space<vmem>>, vector<1x8x8xi8>
    %1 = vector.shape_cast %0 : vector<1x8x8xi8> to vector<8x8xi8>
    %2 = arith.sitofp %1 : vector<8x8xi8> to vector<8x8xf32>
    %cst = arith.constant 0.000000e+00 : f32
    %3 = vector.broadcast %cst : f32 to vector<8x8xf32>
    %4 = arith.cmpf one, %2, %3 : vector<8x8xf32>
    %c0_2 = arith.constant 0 : index
    %c0_3 = arith.constant 0 : index
    %c0_4 = arith.constant 0 : index
    %5 = vector.load %arg2[%c0_2, %c0_3, %c0_4] : memref<1x8x32xbf16, #tpu.memory_space<vmem>>, vector<1x8x32xbf16>
    %6 = vector.shape_cast %5 : vector<1x8x32xbf16> to vector<8x32xbf16>
    %c0_5 = arith.constant 0 : index
    %c0_6 = arith.constant 0 : index
    %c0_7 = arith.constant 0 : index
    %7 = vector.load %arg3[%c0_5, %c0_6, %c0_7] : memref<1x8x32xbf16, #tpu.memory_space<vmem>>, vector<1x8x32xbf16>
    %8 = vector.shape_cast %7 : vector<1x8x32xbf16> to vector<8x32xbf16>
    %c0_8 = arith.constant 0 : index
    %c0_9 = arith.constant 0 : index
    %9 = vector.load %arg5[%c0_8, %c0_9] : memref<32x32xbf16, #tpu.memory_space<vmem>>, vector<32x32xbf16>
    %c0_10 = arith.constant 0 : index
    %c0_11 = arith.constant 0 : index
    %10 = vector.load %arg6[%c0_10, %c0_11] : memref<1x32xf32, #tpu.memory_space<vmem>>, vector<1x32xf32>
    %c0_12 = arith.constant 0 : index
    %c0_13 = arith.constant 0 : index
    %11 = vector.load %arg7[%c0_12, %c0_13] : memref<32x64xbf16, #tpu.memory_space<vmem>>, vector<32x64xbf16>
    %c0_14 = arith.constant 0 : index
    %c0_15 = arith.constant 0 : index
    %12 = vector.load %arg8[%c0_14, %c0_15] : memref<1x64xf32, #tpu.memory_space<vmem>>, vector<1x64xf32>
    %c0_16 = arith.constant 0 : index
    %c0_17 = arith.constant 0 : index
    %13 = vector.load %arg9[%c0_16, %c0_17] : memref<32x32xbf16, #tpu.memory_space<vmem>>, vector<32x32xbf16>
    %c0_18 = arith.constant 0 : index
    %c0_19 = arith.constant 0 : index
    %14 = vector.load %arg10[%c0_18, %c0_19] : memref<1x32xf32, #tpu.memory_space<vmem>>, vector<1x32xf32>
    %c0_20 = arith.constant 0 : index
    %c0_21 = arith.constant 0 : index
    %15 = vector.load %arg11[%c0_20, %c0_21] : memref<1x32xf32, #tpu.memory_space<vmem>>, vector<1x32xf32>
    %c0_22 = arith.constant 0 : index
    %c0_23 = arith.constant 0 : index
    %16 = vector.load %arg12[%c0_22, %c0_23] : memref<1x32xf32, #tpu.memory_space<vmem>>, vector<1x32xf32>
    %cst_24 = arith.constant dense<0.000000e+00> : vector<8x32xf32>
    %17 = tpu.matmul %6, %9, %cst_24 {dimension_numbers = #tpu.dot_dimension_numbers<[1], [0], [0], [1], [0, 0, 1, 1], [], []>} : vector<8x32xbf16>, vector<32x32xbf16>, vector<8x32xf32> -> vector<8x32xf32>
    %18 = vector.broadcast %10 : vector<1x32xf32> to vector<8x32xf32>
    %19 = arith.addf %17, %18 : vector<8x32xf32>
    %cst_25 = arith.constant dense<0.000000e+00> : vector<8x64xf32>
    %20 = tpu.matmul %8, %11, %cst_25 {dimension_numbers = #tpu.dot_dimension_numbers<[1], [0], [0], [1], [0, 0, 1, 1], [], []>} : vector<8x32xbf16>, vector<32x64xbf16>, vector<8x64xf32> -> vector<8x64xf32>
    %21 = vector.broadcast %12 : vector<1x64xf32> to vector<8x64xf32>
    %22 = arith.addf %20, %21 : vector<8x64xf32>
    %23 = arith.truncf %19 : vector<8x32xf32> to vector<8x32xbf16>
    %24 = arith.truncf %22 : vector<8x64xf32> to vector<8x64xbf16>
    %25 = vector.extract_strided_slice %23 {offsets = [0, 0], sizes = [8, 8], strides = [1, 1]} : vector<8x32xbf16> to vector<8x8xbf16>
    %26 = vector.extract_strided_slice %24 {offsets = [0, 0], sizes = [8, 8], strides = [1, 1]} : vector<8x64xbf16> to vector<8x8xbf16>
    %27 = vector.extract_strided_slice %24 {offsets = [0, 32], sizes = [8, 8], strides = [1, 1]} : vector<8x64xbf16> to vector<8x8xbf16>
    %cst_26 = arith.constant dense<0.000000e+00> : vector<8x8xf32>
    %28 = tpu.matmul %25, %26, %cst_26 {dimension_numbers = #tpu.dot_dimension_numbers<[1], [1], [0], [0], [0, 0, 1, 0], [], []>} : vector<8x8xbf16>, vector<8x8xbf16>, vector<8x8xf32> -> vector<8x8xf32>
    %cst_27 = arith.constant 0.353553385 : f32
    %29 = vector.broadcast %cst_27 : f32 to vector<8x8xf32>
    %30 = arith.mulf %28, %29 : vector<8x8xf32>
    %cst_28 = arith.constant -1.000000e+09 : f32
    %31 = vector.broadcast %cst_28 : f32 to vector<8x8xf32>
    %32 = arith.select %4, %30, %31 : vector<8x8xi1>, vector<8x8xf32>
    %cst_29 = arith.constant dense<0xFF800000> : vector<8xf32>
    %33 = vector.multi_reduction <maximumf>, %32, %cst_29 [1] : vector<8x8xf32> to vector<8xf32>
    %34 = vector.shape_cast %33 : vector<8xf32> to vector<8x1xf32>
    %35 = vector.broadcast %34 : vector<8x1xf32> to vector<8x8xf32>
    %36 = arith.subf %32, %35 : vector<8x8xf32>
    %37 = math.exp %36 : vector<8x8xf32>
    %cst_30 = arith.constant dense<0.000000e+00> : vector<8xf32>
    %38 = vector.multi_reduction <add>, %37, %cst_30 [1] : vector<8x8xf32> to vector<8xf32>
    %39 = vector.shape_cast %38 : vector<8xf32> to vector<8x1xf32>
    %40 = tpu.reciprocal %39 {approx = true} : vector<8x1xf32> -> vector<8x1xf32>
    %41 = vector.broadcast %40 : vector<8x1xf32> to vector<8x8xf32>
    %42 = arith.mulf %37, %41 : vector<8x8xf32>
    %43 = arith.truncf %42 : vector<8x8xf32> to vector<8x8xbf16>
    %cst_31 = arith.constant dense<0.000000e+00> : vector<8x8xf32>
    %44 = tpu.matmul %43, %27, %cst_31 {dimension_numbers = #tpu.dot_dimension_numbers<[1], [0], [0], [1], [0, 0, 1, 1], [], []>} : vector<8x8xbf16>, vector<8x8xbf16>, vector<8x8xf32> -> vector<8x8xf32>
    %45 = vector.extract_strided_slice %23 {offsets = [0, 8], sizes = [8, 8], strides = [1, 1]} : vector<8x32xbf16> to vector<8x8xbf16>
    %46 = vector.extract_strided_slice %24 {offsets = [0, 8], sizes = [8, 8], strides = [1, 1]} : vector<8x64xbf16> to vector<8x8xbf16>
    %47 = vector.extract_strided_slice %24 {offsets = [0, 40], sizes = [8, 8], strides = [1, 1]} : vector<8x64xbf16> to vector<8x8xbf16>
    %cst_32 = arith.constant dense<0.000000e+00> : vector<8x8xf32>
    %48 = tpu.matmul %45, %46, %cst_32 {dimension_numbers = #tpu.dot_dimension_numbers<[1], [1], [0], [0], [0, 0, 1, 0], [], []>} : vector<8x8xbf16>, vector<8x8xbf16>, vector<8x8xf32> -> vector<8x8xf32>
    %cst_33 = arith.constant 0.353553385 : f32
    %49 = vector.broadcast %cst_33 : f32 to vector<8x8xf32>
    %50 = arith.mulf %48, %49 : vector<8x8xf32>
    %cst_34 = arith.constant -1.000000e+09 : f32
    %51 = vector.broadcast %cst_34 : f32 to vector<8x8xf32>
    %52 = arith.select %4, %50, %51 : vector<8x8xi1>, vector<8x8xf32>
    %cst_35 = arith.constant dense<0xFF800000> : vector<8xf32>
    %53 = vector.multi_reduction <maximumf>, %52, %cst_35 [1] : vector<8x8xf32> to vector<8xf32>
    %54 = vector.shape_cast %53 : vector<8xf32> to vector<8x1xf32>
    %55 = vector.broadcast %54 : vector<8x1xf32> to vector<8x8xf32>
    %56 = arith.subf %52, %55 : vector<8x8xf32>
    %57 = math.exp %56 : vector<8x8xf32>
    %cst_36 = arith.constant dense<0.000000e+00> : vector<8xf32>
    %58 = vector.multi_reduction <add>, %57, %cst_36 [1] : vector<8x8xf32> to vector<8xf32>
    %59 = vector.shape_cast %58 : vector<8xf32> to vector<8x1xf32>
    %60 = tpu.reciprocal %59 {approx = true} : vector<8x1xf32> -> vector<8x1xf32>
    %61 = vector.broadcast %60 : vector<8x1xf32> to vector<8x8xf32>
    %62 = arith.mulf %57, %61 : vector<8x8xf32>
    %63 = arith.truncf %62 : vector<8x8xf32> to vector<8x8xbf16>
    %cst_37 = arith.constant dense<0.000000e+00> : vector<8x8xf32>
    %64 = tpu.matmul %63, %47, %cst_37 {dimension_numbers = #tpu.dot_dimension_numbers<[1], [0], [0], [1], [0, 0, 1, 1], [], []>} : vector<8x8xbf16>, vector<8x8xbf16>, vector<8x8xf32> -> vector<8x8xf32>
    %65 = vector.extract_strided_slice %23 {offsets = [0, 16], sizes = [8, 8], strides = [1, 1]} : vector<8x32xbf16> to vector<8x8xbf16>
    %66 = vector.extract_strided_slice %24 {offsets = [0, 16], sizes = [8, 8], strides = [1, 1]} : vector<8x64xbf16> to vector<8x8xbf16>
    %67 = vector.extract_strided_slice %24 {offsets = [0, 48], sizes = [8, 8], strides = [1, 1]} : vector<8x64xbf16> to vector<8x8xbf16>
    %cst_38 = arith.constant dense<0.000000e+00> : vector<8x8xf32>
    %68 = tpu.matmul %65, %66, %cst_38 {dimension_numbers = #tpu.dot_dimension_numbers<[1], [1], [0], [0], [0, 0, 1, 0], [], []>} : vector<8x8xbf16>, vector<8x8xbf16>, vector<8x8xf32> -> vector<8x8xf32>
    %cst_39 = arith.constant 0.353553385 : f32
    %69 = vector.broadcast %cst_39 : f32 to vector<8x8xf32>
    %70 = arith.mulf %68, %69 : vector<8x8xf32>
    %cst_40 = arith.constant -1.000000e+09 : f32
    %71 = vector.broadcast %cst_40 : f32 to vector<8x8xf32>
    %72 = arith.select %4, %70, %71 : vector<8x8xi1>, vector<8x8xf32>
    %cst_41 = arith.constant dense<0xFF800000> : vector<8xf32>
    %73 = vector.multi_reduction <maximumf>, %72, %cst_41 [1] : vector<8x8xf32> to vector<8xf32>
    %74 = vector.shape_cast %73 : vector<8xf32> to vector<8x1xf32>
    %75 = vector.broadcast %74 : vector<8x1xf32> to vector<8x8xf32>
    %76 = arith.subf %72, %75 : vector<8x8xf32>
    %77 = math.exp %76 : vector<8x8xf32>
    %cst_42 = arith.constant dense<0.000000e+00> : vector<8xf32>
    %78 = vector.multi_reduction <add>, %77, %cst_42 [1] : vector<8x8xf32> to vector<8xf32>
    %79 = vector.shape_cast %78 : vector<8xf32> to vector<8x1xf32>
    %80 = tpu.reciprocal %79 {approx = true} : vector<8x1xf32> -> vector<8x1xf32>
    %81 = vector.broadcast %80 : vector<8x1xf32> to vector<8x8xf32>
    %82 = arith.mulf %77, %81 : vector<8x8xf32>
    %83 = arith.truncf %82 : vector<8x8xf32> to vector<8x8xbf16>
    %cst_43 = arith.constant dense<0.000000e+00> : vector<8x8xf32>
    %84 = tpu.matmul %83, %67, %cst_43 {dimension_numbers = #tpu.dot_dimension_numbers<[1], [0], [0], [1], [0, 0, 1, 1], [], []>} : vector<8x8xbf16>, vector<8x8xbf16>, vector<8x8xf32> -> vector<8x8xf32>
    %85 = vector.extract_strided_slice %23 {offsets = [0, 24], sizes = [8, 8], strides = [1, 1]} : vector<8x32xbf16> to vector<8x8xbf16>
    %86 = vector.extract_strided_slice %24 {offsets = [0, 24], sizes = [8, 8], strides = [1, 1]} : vector<8x64xbf16> to vector<8x8xbf16>
    %87 = vector.extract_strided_slice %24 {offsets = [0, 56], sizes = [8, 8], strides = [1, 1]} : vector<8x64xbf16> to vector<8x8xbf16>
    %cst_44 = arith.constant dense<0.000000e+00> : vector<8x8xf32>
    %88 = tpu.matmul %85, %86, %cst_44 {dimension_numbers = #tpu.dot_dimension_numbers<[1], [1], [0], [0], [0, 0, 1, 0], [], []>} : vector<8x8xbf16>, vector<8x8xbf16>, vector<8x8xf32> -> vector<8x8xf32>
    %cst_45 = arith.constant 0.353553385 : f32
    %89 = vector.broadcast %cst_45 : f32 to vector<8x8xf32>
    %90 = arith.mulf %88, %89 : vector<8x8xf32>
    %cst_46 = arith.constant -1.000000e+09 : f32
    %91 = vector.broadcast %cst_46 : f32 to vector<8x8xf32>
    %92 = arith.select %4, %90, %91 : vector<8x8xi1>, vector<8x8xf32>
    %cst_47 = arith.constant dense<0xFF800000> : vector<8xf32>
    %93 = vector.multi_reduction <maximumf>, %92, %cst_47 [1] : vector<8x8xf32> to vector<8xf32>
    %94 = vector.shape_cast %93 : vector<8xf32> to vector<8x1xf32>
    %95 = vector.broadcast %94 : vector<8x1xf32> to vector<8x8xf32>
    %96 = arith.subf %92, %95 : vector<8x8xf32>
    %97 = math.exp %96 : vector<8x8xf32>
    %cst_48 = arith.constant dense<0.000000e+00> : vector<8xf32>
    %98 = vector.multi_reduction <add>, %97, %cst_48 [1] : vector<8x8xf32> to vector<8xf32>
    %99 = vector.shape_cast %98 : vector<8xf32> to vector<8x1xf32>
    %100 = tpu.reciprocal %99 {approx = true} : vector<8x1xf32> -> vector<8x1xf32>
    %101 = vector.broadcast %100 : vector<8x1xf32> to vector<8x8xf32>
    %102 = arith.mulf %97, %101 : vector<8x8xf32>
    %103 = arith.truncf %102 : vector<8x8xf32> to vector<8x8xbf16>
    %cst_49 = arith.constant dense<0.000000e+00> : vector<8x8xf32>
    %104 = tpu.matmul %103, %87, %cst_49 {dimension_numbers = #tpu.dot_dimension_numbers<[1], [0], [0], [1], [0, 0, 1, 1], [], []>} : vector<8x8xbf16>, vector<8x8xbf16>, vector<8x8xf32> -> vector<8x8xf32>
    %105 = tpu.concatenate %44, %64, %84, %104 in 1 : vector<8x8xf32>, vector<8x8xf32>, vector<8x8xf32>, vector<8x8xf32> -> vector<8x32xf32>
    %106 = arith.truncf %105 : vector<8x32xf32> to vector<8x32xbf16>
    %cst_50 = arith.constant dense<0.000000e+00> : vector<8x32xf32>
    %107 = tpu.matmul %106, %13, %cst_50 {dimension_numbers = #tpu.dot_dimension_numbers<[1], [0], [0], [1], [0, 0, 1, 1], [], []>} : vector<8x32xbf16>, vector<32x32xbf16>, vector<8x32xf32> -> vector<8x32xf32>
    %108 = vector.broadcast %14 : vector<1x32xf32> to vector<8x32xf32>
    %109 = arith.addf %107, %108 : vector<8x32xf32>
    %110 = arith.extf %6 : vector<8x32xbf16> to vector<8x32xf32>
    %111 = arith.addf %109, %110 : vector<8x32xf32>
    %cst_51 = arith.constant dense<0.000000e+00> : vector<8xf32>
    %112 = vector.multi_reduction <add>, %111, %cst_51 [1] : vector<8x32xf32> to vector<8xf32>
    %113 = vector.shape_cast %112 : vector<8xf32> to vector<8x1xf32>
    %cst_52 = arith.constant 3.200000e+01 : f32
    %114 = vector.broadcast %cst_52 : f32 to vector<8x1xf32>
    %115 = arith.divf %113, %114 : vector<8x1xf32>
    %116 = vector.broadcast %115 : vector<8x1xf32> to vector<8x32xf32>
    %117 = arith.subf %111, %116 : vector<8x32xf32>
    %118 = vector.broadcast %115 : vector<8x1xf32> to vector<8x32xf32>
    %119 = arith.subf %111, %118 : vector<8x32xf32>
    %120 = arith.mulf %117, %119 : vector<8x32xf32>
    %cst_53 = arith.constant dense<0.000000e+00> : vector<8xf32>
    %121 = vector.multi_reduction <add>, %120, %cst_53 [1] : vector<8x32xf32> to vector<8xf32>
    %122 = vector.shape_cast %121 : vector<8xf32> to vector<8x1xf32>
    %cst_54 = arith.constant 3.200000e+01 : f32
    %123 = vector.broadcast %cst_54 : f32 to vector<8x1xf32>
    %124 = arith.divf %122, %123 : vector<8x1xf32>
    %125 = vector.broadcast %115 : vector<8x1xf32> to vector<8x32xf32>
    %126 = arith.subf %111, %125 : vector<8x32xf32>
    %cst_55 = arith.constant 9.99999997E-7 : f32
    %127 = vector.broadcast %cst_55 : f32 to vector<8x1xf32>
    %128 = arith.addf %124, %127 : vector<8x1xf32>
    %129 = math.rsqrt %128 : vector<8x1xf32>
    %130 = vector.broadcast %129 : vector<8x1xf32> to vector<8x32xf32>
    %131 = arith.mulf %126, %130 : vector<8x32xf32>
    %132 = vector.broadcast %15 : vector<1x32xf32> to vector<8x32xf32>
    %133 = arith.mulf %131, %132 : vector<8x32xf32>
    %134 = vector.broadcast %16 : vector<1x32xf32> to vector<8x32xf32>
    %135 = arith.addf %133, %134 : vector<8x32xf32>
    %136 = arith.truncf %135 : vector<8x32xf32> to vector<8x32xbf16>
    %c0_56 = arith.constant 0 : index
    %c0_57 = arith.constant 0 : index
    %c0_58 = arith.constant 0 : index
    %137 = vector.load %arg13[%c0_56, %c0_57, %c0_58] : memref<1x8x32xbf16, #tpu.memory_space<vmem>>, vector<1x8x32xbf16>
    %138 = vector.shape_cast %137 : vector<1x8x32xbf16> to vector<8x32xbf16>
    %139 = vector.shape_cast %136 : vector<8x32xbf16> to vector<1x8x32xbf16>
    tpu.vector_store %arg13[%c0_56, %c0_57, %c0_58], %139 {strides = array<i32>} : memref<1x8x32xbf16, #tpu.memory_space<vmem>>, vector<1x8x32xbf16>,
    return
  }
  func.func @transform_0(%arg0: i32, %arg1: i32) -> (i32, i32, i32) {
    %c0_i32 = arith.constant 0 : i32
    %c0_i32_0 = arith.constant 0 : i32
    return %arg0, %arg1, %c0_i32 : i32, i32, i32
  }
  func.func @transform_1(%arg0: i32, %arg1: i32) -> (i32, i32, i32) {
    %c0_i32 = arith.constant 0 : i32
    %c0_i32_0 = arith.constant 0 : i32
    %c0_i32_1 = arith.constant 0 : i32
    return %arg0, %c0_i32, %c0_i32_0 : i32, i32, i32
  }
  func.func @transform_2(%arg0: i32, %arg1: i32) -> (i32, i32, i32) {
    %c0_i32 = arith.constant 0 : i32
    %c0_i32_0 = arith.constant 0 : i32
    return %arg0, %arg1, %c0_i32 : i32, i32, i32
  }
  func.func @transform_3(%arg0: i32, %arg1: i32) -> (i32, i32) {
    %c0_i32 = arith.constant 0 : i32
    %c0_i32_0 = arith.constant 0 : i32
    %c0_i32_1 = arith.constant 0 : i32
    return %c0_i32, %c0_i32_0 : i32, i32
  }
  func.func @transform_4(%arg0: i32, %arg1: i32) -> (i32, i32) {
    %c0_i32 = arith.constant 0 : i32
    %c0_i32_0 = arith.constant 0 : i32
    %c0_i32_1 = arith.constant 0 : i32
    return %c0_i32, %c0_i32_0 : i32, i32
  }
  func.func @transform_5(%arg0: i32, %arg1: i32) -> (i32, i32) {
    %c0_i32 = arith.constant 0 : i32
    %c0_i32_0 = arith.constant 0 : i32
    %c0_i32_1 = arith.constant 0 : i32
    return %c0_i32, %c0_i32_0 : i32, i32
  }
  func.func @transform_6(%arg0: i32, %arg1: i32) -> (i32, i32) {
    %c0_i32 = arith.constant 0 : i32
    %c0_i32_0 = arith.constant 0 : i32
    %c0_i32_1 = arith.constant 0 : i32
    return %c0_i32, %c0_i32_0 : i32, i32
  }
  func.func @transform_7(%arg0: i32, %arg1: i32) -> (i32, i32) {
    %c0_i32 = arith.constant 0 : i32
    %c0_i32_0 = arith.constant 0 : i32
    %c0_i32_1 = arith.constant 0 : i32
    return %c0_i32, %c0_i32_0 : i32, i32
  }
  func.func @transform_8(%arg0: i32, %arg1: i32) -> (i32, i32) {
    %c0_i32 = arith.constant 0 : i32
    %c0_i32_0 = arith.constant 0 : i32
    %c0_i32_1 = arith.constant 0 : i32
    return %c0_i32, %c0_i32_0 : i32, i32
  }
  func.func @transform_9(%arg0: i32, %arg1: i32) -> (i32, i32) {
    %c0_i32 = arith.constant 0 : i32
    %c0_i32_0 = arith.constant 0 : i32
    %c0_i32_1 = arith.constant 0 : i32
    return %c0_i32, %c0_i32_0 : i32, i32
  }
  func.func @transform_10(%arg0: i32, %arg1: i32) -> (i32, i32) {
    %c0_i32 = arith.constant 0 : i32
    %c0_i32_0 = arith.constant 0 : i32
    %c0_i32_1 = arith.constant 0 : i32
    return %c0_i32, %c0_i32_0 : i32, i32
  }
  func.func @transform_11(%arg0: i32, %arg1: i32) -> (i32, i32, i32) {
    %c0_i32 = arith.constant 0 : i32
    %c0_i32_0 = arith.constant 0 : i32
    return %arg0, %arg1, %c0_i32 : i32, i32, i32
  }
}

module attributes {stable_mosaic.version = 11 : i64} {
  func.func @_mha_ffn_kernel(%arg0: i32, %arg1: i32, %arg2: memref<1x8x32xbf16, #tpu.memory_space<vmem>>, %arg3: memref<1x8x32xbf16, #tpu.memory_space<vmem>>, %arg4: memref<1x8x8xi8, #tpu.memory_space<vmem>>, %arg5: memref<32x32xbf16, #tpu.memory_space<vmem>>, %arg6: memref<1x32xf32, #tpu.memory_space<vmem>>, %arg7: memref<32x64xbf16, #tpu.memory_space<vmem>>, %arg8: memref<1x64xf32, #tpu.memory_space<vmem>>, %arg9: memref<32x32xbf16, #tpu.memory_space<vmem>>, %arg10: memref<1x32xf32, #tpu.memory_space<vmem>>, %arg11: memref<1x32xf32, #tpu.memory_space<vmem>>, %arg12: memref<1x32xf32, #tpu.memory_space<vmem>>, %arg13: memref<32x64xbf16, #tpu.memory_space<vmem>>, %arg14: memref<1x64xf32, #tpu.memory_space<vmem>>, %arg15: memref<64x32xbf16, #tpu.memory_space<vmem>>, %arg16: memref<1x32xf32, #tpu.memory_space<vmem>>, %arg17: memref<1x32xf32, #tpu.memory_space<vmem>>, %arg18: memref<1x32xf32, #tpu.memory_space<vmem>>, %arg19: memref<1x8x32xbf16, #tpu.memory_space<vmem>>) attributes {dimension_semantics = [#tpu.dimension_semantics<parallel>, #tpu.dimension_semantics<parallel>], iteration_bounds = array<i64: 2, 1>, scalar_prefetch = 0 : i64, scratch_operands = 0 : i64, tpu.core_type = #tpu.core_type<tc>, window_params = [{transform_indices = @transform_0, window_bounds = array<i64: 1, 8, 32>}, {transform_indices = @transform_1, window_bounds = array<i64: 1, 8, 32>}, {transform_indices = @transform_2, window_bounds = array<i64: 1, 8, 8>}, {pipeline_mode = #tpu.pipeline_mode<synchronous>, transform_indices = @transform_3, window_bounds = array<i64: 32, 32>}, {pipeline_mode = #tpu.pipeline_mode<synchronous>, transform_indices = @transform_4, window_bounds = array<i64: 1, 32>}, {pipeline_mode = #tpu.pipeline_mode<synchronous>, transform_indices = @transform_5, window_bounds = array<i64: 32, 64>}, {pipeline_mode = #tpu.pipeline_mode<synchronous>, transform_indices = @transform_6, window_bounds = array<i64: 1, 64>}, {pipeline_mode = #tpu.pipeline_mode<synchronous>, transform_indices = @transform_7, window_bounds = array<i64: 32, 32>}, {pipeline_mode = #tpu.pipeline_mode<synchronous>, transform_indices = @transform_8, window_bounds = array<i64: 1, 32>}, {pipeline_mode = #tpu.pipeline_mode<synchronous>, transform_indices = @transform_9, window_bounds = array<i64: 1, 32>}, {pipeline_mode = #tpu.pipeline_mode<synchronous>, transform_indices = @transform_10, window_bounds = array<i64: 1, 32>}, {pipeline_mode = #tpu.pipeline_mode<synchronous>, transform_indices = @transform_11, window_bounds = array<i64: 32, 64>}, {pipeline_mode = #tpu.pipeline_mode<synchronous>, transform_indices = @transform_12, window_bounds = array<i64: 1, 64>}, {pipeline_mode = #tpu.pipeline_mode<synchronous>, transform_indices = @transform_13, window_bounds = array<i64: 64, 32>}, {pipeline_mode = #tpu.pipeline_mode<synchronous>, transform_indices = @transform_14, window_bounds = array<i64: 1, 32>}, {pipeline_mode = #tpu.pipeline_mode<synchronous>, transform_indices = @transform_15, window_bounds = array<i64: 1, 32>}, {pipeline_mode = #tpu.pipeline_mode<synchronous>, transform_indices = @transform_16, window_bounds = array<i64: 1, 32>}, {transform_indices = @transform_17, window_bounds = array<i64: 1, 8, 32>}]} {
    %c0 = arith.constant 0 : index
    %c0_0 = arith.constant 0 : index
    %c0_1 = arith.constant 0 : index
    %0 = vector.load %arg4[%c0, %c0_0, %c0_1] : memref<1x8x8xi8, #tpu.memory_space<vmem>>, vector<1x8x8xi8>
    %1 = vector.shape_cast %0 : vector<1x8x8xi8> to vector<8x8xi8>
    %2 = arith.sitofp %1 : vector<8x8xi8> to vector<8x8xf32>
    %cst = arith.constant 0.000000e+00 : f32
    %3 = vector.broadcast %cst : f32 to vector<8x8xf32>
    %4 = arith.cmpf one, %2, %3 : vector<8x8xf32>
    %c0_2 = arith.constant 0 : index
    %c0_3 = arith.constant 0 : index
    %c0_4 = arith.constant 0 : index
    %5 = vector.load %arg2[%c0_2, %c0_3, %c0_4] : memref<1x8x32xbf16, #tpu.memory_space<vmem>>, vector<1x8x32xbf16>
    %6 = vector.shape_cast %5 : vector<1x8x32xbf16> to vector<8x32xbf16>
    %c0_5 = arith.constant 0 : index
    %c0_6 = arith.constant 0 : index
    %c0_7 = arith.constant 0 : index
    %7 = vector.load %arg3[%c0_5, %c0_6, %c0_7] : memref<1x8x32xbf16, #tpu.memory_space<vmem>>, vector<1x8x32xbf16>
    %8 = vector.shape_cast %7 : vector<1x8x32xbf16> to vector<8x32xbf16>
    %c0_8 = arith.constant 0 : index
    %c0_9 = arith.constant 0 : index
    %9 = vector.load %arg5[%c0_8, %c0_9] : memref<32x32xbf16, #tpu.memory_space<vmem>>, vector<32x32xbf16>
    %c0_10 = arith.constant 0 : index
    %c0_11 = arith.constant 0 : index
    %10 = vector.load %arg6[%c0_10, %c0_11] : memref<1x32xf32, #tpu.memory_space<vmem>>, vector<1x32xf32>
    %c0_12 = arith.constant 0 : index
    %c0_13 = arith.constant 0 : index
    %11 = vector.load %arg7[%c0_12, %c0_13] : memref<32x64xbf16, #tpu.memory_space<vmem>>, vector<32x64xbf16>
    %c0_14 = arith.constant 0 : index
    %c0_15 = arith.constant 0 : index
    %12 = vector.load %arg8[%c0_14, %c0_15] : memref<1x64xf32, #tpu.memory_space<vmem>>, vector<1x64xf32>
    %c0_16 = arith.constant 0 : index
    %c0_17 = arith.constant 0 : index
    %13 = vector.load %arg9[%c0_16, %c0_17] : memref<32x32xbf16, #tpu.memory_space<vmem>>, vector<32x32xbf16>
    %c0_18 = arith.constant 0 : index
    %c0_19 = arith.constant 0 : index
    %14 = vector.load %arg10[%c0_18, %c0_19] : memref<1x32xf32, #tpu.memory_space<vmem>>, vector<1x32xf32>
    %c0_20 = arith.constant 0 : index
    %c0_21 = arith.constant 0 : index
    %15 = vector.load %arg11[%c0_20, %c0_21] : memref<1x32xf32, #tpu.memory_space<vmem>>, vector<1x32xf32>
    %c0_22 = arith.constant 0 : index
    %c0_23 = arith.constant 0 : index
    %16 = vector.load %arg12[%c0_22, %c0_23] : memref<1x32xf32, #tpu.memory_space<vmem>>, vector<1x32xf32>
    %cst_24 = arith.constant dense<0.000000e+00> : vector<8x32xf32>
    %17 = tpu.matmul %6, %9, %cst_24 {dimension_numbers = #tpu.dot_dimension_numbers<[1], [0], [0], [1], [0, 0, 1, 1], [], []>} : vector<8x32xbf16>, vector<32x32xbf16>, vector<8x32xf32> -> vector<8x32xf32>
    %18 = vector.broadcast %10 : vector<1x32xf32> to vector<8x32xf32>
    %19 = arith.addf %17, %18 : vector<8x32xf32>
    %cst_25 = arith.constant dense<0.000000e+00> : vector<8x64xf32>
    %20 = tpu.matmul %8, %11, %cst_25 {dimension_numbers = #tpu.dot_dimension_numbers<[1], [0], [0], [1], [0, 0, 1, 1], [], []>} : vector<8x32xbf16>, vector<32x64xbf16>, vector<8x64xf32> -> vector<8x64xf32>
    %21 = vector.broadcast %12 : vector<1x64xf32> to vector<8x64xf32>
    %22 = arith.addf %20, %21 : vector<8x64xf32>
    %23 = arith.truncf %19 : vector<8x32xf32> to vector<8x32xbf16>
    %24 = arith.truncf %22 : vector<8x64xf32> to vector<8x64xbf16>
    %25 = vector.extract_strided_slice %23 {offsets = [0, 0], sizes = [8, 8], strides = [1, 1]} : vector<8x32xbf16> to vector<8x8xbf16>
    %26 = vector.extract_strided_slice %24 {offsets = [0, 0], sizes = [8, 8], strides = [1, 1]} : vector<8x64xbf16> to vector<8x8xbf16>
    %27 = vector.extract_strided_slice %24 {offsets = [0, 32], sizes = [8, 8], strides = [1, 1]} : vector<8x64xbf16> to vector<8x8xbf16>
    %cst_26 = arith.constant dense<0.000000e+00> : vector<8x8xf32>
    %28 = tpu.matmul %25, %26, %cst_26 {dimension_numbers = #tpu.dot_dimension_numbers<[1], [1], [0], [0], [0, 0, 1, 0], [], []>} : vector<8x8xbf16>, vector<8x8xbf16>, vector<8x8xf32> -> vector<8x8xf32>
    %cst_27 = arith.constant 0.353553385 : f32
    %29 = vector.broadcast %cst_27 : f32 to vector<8x8xf32>
    %30 = arith.mulf %28, %29 : vector<8x8xf32>
    %cst_28 = arith.constant -1.000000e+09 : f32
    %31 = vector.broadcast %cst_28 : f32 to vector<8x8xf32>
    %32 = arith.select %4, %30, %31 : vector<8x8xi1>, vector<8x8xf32>
    %cst_29 = arith.constant dense<0xFF800000> : vector<8xf32>
    %33 = vector.multi_reduction <maximumf>, %32, %cst_29 [1] : vector<8x8xf32> to vector<8xf32>
    %34 = vector.shape_cast %33 : vector<8xf32> to vector<8x1xf32>
    %35 = vector.broadcast %34 : vector<8x1xf32> to vector<8x8xf32>
    %36 = arith.subf %32, %35 : vector<8x8xf32>
    %37 = math.exp %36 : vector<8x8xf32>
    %cst_30 = arith.constant dense<0.000000e+00> : vector<8xf32>
    %38 = vector.multi_reduction <add>, %37, %cst_30 [1] : vector<8x8xf32> to vector<8xf32>
    %39 = vector.shape_cast %38 : vector<8xf32> to vector<8x1xf32>
    %40 = tpu.reciprocal %39 {approx = true} : vector<8x1xf32> -> vector<8x1xf32>
    %41 = vector.broadcast %40 : vector<8x1xf32> to vector<8x8xf32>
    %42 = arith.mulf %37, %41 : vector<8x8xf32>
    %43 = arith.truncf %42 : vector<8x8xf32> to vector<8x8xbf16>
    %cst_31 = arith.constant dense<0.000000e+00> : vector<8x8xf32>
    %44 = tpu.matmul %43, %27, %cst_31 {dimension_numbers = #tpu.dot_dimension_numbers<[1], [0], [0], [1], [0, 0, 1, 1], [], []>} : vector<8x8xbf16>, vector<8x8xbf16>, vector<8x8xf32> -> vector<8x8xf32>
    %45 = vector.extract_strided_slice %23 {offsets = [0, 8], sizes = [8, 8], strides = [1, 1]} : vector<8x32xbf16> to vector<8x8xbf16>
    %46 = vector.extract_strided_slice %24 {offsets = [0, 8], sizes = [8, 8], strides = [1, 1]} : vector<8x64xbf16> to vector<8x8xbf16>
    %47 = vector.extract_strided_slice %24 {offsets = [0, 40], sizes = [8, 8], strides = [1, 1]} : vector<8x64xbf16> to vector<8x8xbf16>
    %cst_32 = arith.constant dense<0.000000e+00> : vector<8x8xf32>
    %48 = tpu.matmul %45, %46, %cst_32 {dimension_numbers = #tpu.dot_dimension_numbers<[1], [1], [0], [0], [0, 0, 1, 0], [], []>} : vector<8x8xbf16>, vector<8x8xbf16>, vector<8x8xf32> -> vector<8x8xf32>
    %cst_33 = arith.constant 0.353553385 : f32
    %49 = vector.broadcast %cst_33 : f32 to vector<8x8xf32>
    %50 = arith.mulf %48, %49 : vector<8x8xf32>
    %cst_34 = arith.constant -1.000000e+09 : f32
    %51 = vector.broadcast %cst_34 : f32 to vector<8x8xf32>
    %52 = arith.select %4, %50, %51 : vector<8x8xi1>, vector<8x8xf32>
    %cst_35 = arith.constant dense<0xFF800000> : vector<8xf32>
    %53 = vector.multi_reduction <maximumf>, %52, %cst_35 [1] : vector<8x8xf32> to vector<8xf32>
    %54 = vector.shape_cast %53 : vector<8xf32> to vector<8x1xf32>
    %55 = vector.broadcast %54 : vector<8x1xf32> to vector<8x8xf32>
    %56 = arith.subf %52, %55 : vector<8x8xf32>
    %57 = math.exp %56 : vector<8x8xf32>
    %cst_36 = arith.constant dense<0.000000e+00> : vector<8xf32>
    %58 = vector.multi_reduction <add>, %57, %cst_36 [1] : vector<8x8xf32> to vector<8xf32>
    %59 = vector.shape_cast %58 : vector<8xf32> to vector<8x1xf32>
    %60 = tpu.reciprocal %59 {approx = true} : vector<8x1xf32> -> vector<8x1xf32>
    %61 = vector.broadcast %60 : vector<8x1xf32> to vector<8x8xf32>
    %62 = arith.mulf %57, %61 : vector<8x8xf32>
    %63 = arith.truncf %62 : vector<8x8xf32> to vector<8x8xbf16>
    %cst_37 = arith.constant dense<0.000000e+00> : vector<8x8xf32>
    %64 = tpu.matmul %63, %47, %cst_37 {dimension_numbers = #tpu.dot_dimension_numbers<[1], [0], [0], [1], [0, 0, 1, 1], [], []>} : vector<8x8xbf16>, vector<8x8xbf16>, vector<8x8xf32> -> vector<8x8xf32>
    %65 = vector.extract_strided_slice %23 {offsets = [0, 16], sizes = [8, 8], strides = [1, 1]} : vector<8x32xbf16> to vector<8x8xbf16>
    %66 = vector.extract_strided_slice %24 {offsets = [0, 16], sizes = [8, 8], strides = [1, 1]} : vector<8x64xbf16> to vector<8x8xbf16>
    %67 = vector.extract_strided_slice %24 {offsets = [0, 48], sizes = [8, 8], strides = [1, 1]} : vector<8x64xbf16> to vector<8x8xbf16>
    %cst_38 = arith.constant dense<0.000000e+00> : vector<8x8xf32>
    %68 = tpu.matmul %65, %66, %cst_38 {dimension_numbers = #tpu.dot_dimension_numbers<[1], [1], [0], [0], [0, 0, 1, 0], [], []>} : vector<8x8xbf16>, vector<8x8xbf16>, vector<8x8xf32> -> vector<8x8xf32>
    %cst_39 = arith.constant 0.353553385 : f32
    %69 = vector.broadcast %cst_39 : f32 to vector<8x8xf32>
    %70 = arith.mulf %68, %69 : vector<8x8xf32>
    %cst_40 = arith.constant -1.000000e+09 : f32
    %71 = vector.broadcast %cst_40 : f32 to vector<8x8xf32>
    %72 = arith.select %4, %70, %71 : vector<8x8xi1>, vector<8x8xf32>
    %cst_41 = arith.constant dense<0xFF800000> : vector<8xf32>
    %73 = vector.multi_reduction <maximumf>, %72, %cst_41 [1] : vector<8x8xf32> to vector<8xf32>
    %74 = vector.shape_cast %73 : vector<8xf32> to vector<8x1xf32>
    %75 = vector.broadcast %74 : vector<8x1xf32> to vector<8x8xf32>
    %76 = arith.subf %72, %75 : vector<8x8xf32>
    %77 = math.exp %76 : vector<8x8xf32>
    %cst_42 = arith.constant dense<0.000000e+00> : vector<8xf32>
    %78 = vector.multi_reduction <add>, %77, %cst_42 [1] : vector<8x8xf32> to vector<8xf32>
    %79 = vector.shape_cast %78 : vector<8xf32> to vector<8x1xf32>
    %80 = tpu.reciprocal %79 {approx = true} : vector<8x1xf32> -> vector<8x1xf32>
    %81 = vector.broadcast %80 : vector<8x1xf32> to vector<8x8xf32>
    %82 = arith.mulf %77, %81 : vector<8x8xf32>
    %83 = arith.truncf %82 : vector<8x8xf32> to vector<8x8xbf16>
    %cst_43 = arith.constant dense<0.000000e+00> : vector<8x8xf32>
    %84 = tpu.matmul %83, %67, %cst_43 {dimension_numbers = #tpu.dot_dimension_numbers<[1], [0], [0], [1], [0, 0, 1, 1], [], []>} : vector<8x8xbf16>, vector<8x8xbf16>, vector<8x8xf32> -> vector<8x8xf32>
    %85 = vector.extract_strided_slice %23 {offsets = [0, 24], sizes = [8, 8], strides = [1, 1]} : vector<8x32xbf16> to vector<8x8xbf16>
    %86 = vector.extract_strided_slice %24 {offsets = [0, 24], sizes = [8, 8], strides = [1, 1]} : vector<8x64xbf16> to vector<8x8xbf16>
    %87 = vector.extract_strided_slice %24 {offsets = [0, 56], sizes = [8, 8], strides = [1, 1]} : vector<8x64xbf16> to vector<8x8xbf16>
    %cst_44 = arith.constant dense<0.000000e+00> : vector<8x8xf32>
    %88 = tpu.matmul %85, %86, %cst_44 {dimension_numbers = #tpu.dot_dimension_numbers<[1], [1], [0], [0], [0, 0, 1, 0], [], []>} : vector<8x8xbf16>, vector<8x8xbf16>, vector<8x8xf32> -> vector<8x8xf32>
    %cst_45 = arith.constant 0.353553385 : f32
    %89 = vector.broadcast %cst_45 : f32 to vector<8x8xf32>
    %90 = arith.mulf %88, %89 : vector<8x8xf32>
    %cst_46 = arith.constant -1.000000e+09 : f32
    %91 = vector.broadcast %cst_46 : f32 to vector<8x8xf32>
    %92 = arith.select %4, %90, %91 : vector<8x8xi1>, vector<8x8xf32>
    %cst_47 = arith.constant dense<0xFF800000> : vector<8xf32>
    %93 = vector.multi_reduction <maximumf>, %92, %cst_47 [1] : vector<8x8xf32> to vector<8xf32>
    %94 = vector.shape_cast %93 : vector<8xf32> to vector<8x1xf32>
    %95 = vector.broadcast %94 : vector<8x1xf32> to vector<8x8xf32>
    %96 = arith.subf %92, %95 : vector<8x8xf32>
    %97 = math.exp %96 : vector<8x8xf32>
    %cst_48 = arith.constant dense<0.000000e+00> : vector<8xf32>
    %98 = vector.multi_reduction <add>, %97, %cst_48 [1] : vector<8x8xf32> to vector<8xf32>
    %99 = vector.shape_cast %98 : vector<8xf32> to vector<8x1xf32>
    %100 = tpu.reciprocal %99 {approx = true} : vector<8x1xf32> -> vector<8x1xf32>
    %101 = vector.broadcast %100 : vector<8x1xf32> to vector<8x8xf32>
    %102 = arith.mulf %97, %101 : vector<8x8xf32>
    %103 = arith.truncf %102 : vector<8x8xf32> to vector<8x8xbf16>
    %cst_49 = arith.constant dense<0.000000e+00> : vector<8x8xf32>
    %104 = tpu.matmul %103, %87, %cst_49 {dimension_numbers = #tpu.dot_dimension_numbers<[1], [0], [0], [1], [0, 0, 1, 1], [], []>} : vector<8x8xbf16>, vector<8x8xbf16>, vector<8x8xf32> -> vector<8x8xf32>
    %105 = tpu.concatenate %44, %64, %84, %104 in 1 : vector<8x8xf32>, vector<8x8xf32>, vector<8x8xf32>, vector<8x8xf32> -> vector<8x32xf32>
    %106 = arith.truncf %105 : vector<8x32xf32> to vector<8x32xbf16>
    %cst_50 = arith.constant dense<0.000000e+00> : vector<8x32xf32>
    %107 = tpu.matmul %106, %13, %cst_50 {dimension_numbers = #tpu.dot_dimension_numbers<[1], [0], [0], [1], [0, 0, 1, 1], [], []>} : vector<8x32xbf16>, vector<32x32xbf16>, vector<8x32xf32> -> vector<8x32xf32>
    %108 = vector.broadcast %14 : vector<1x32xf32> to vector<8x32xf32>
    %109 = arith.addf %107, %108 : vector<8x32xf32>
    %110 = arith.extf %6 : vector<8x32xbf16> to vector<8x32xf32>
    %111 = arith.addf %109, %110 : vector<8x32xf32>
    %cst_51 = arith.constant dense<0.000000e+00> : vector<8xf32>
    %112 = vector.multi_reduction <add>, %111, %cst_51 [1] : vector<8x32xf32> to vector<8xf32>
    %113 = vector.shape_cast %112 : vector<8xf32> to vector<8x1xf32>
    %cst_52 = arith.constant 3.200000e+01 : f32
    %114 = vector.broadcast %cst_52 : f32 to vector<8x1xf32>
    %115 = arith.divf %113, %114 : vector<8x1xf32>
    %116 = vector.broadcast %115 : vector<8x1xf32> to vector<8x32xf32>
    %117 = arith.subf %111, %116 : vector<8x32xf32>
    %118 = vector.broadcast %115 : vector<8x1xf32> to vector<8x32xf32>
    %119 = arith.subf %111, %118 : vector<8x32xf32>
    %120 = arith.mulf %117, %119 : vector<8x32xf32>
    %cst_53 = arith.constant dense<0.000000e+00> : vector<8xf32>
    %121 = vector.multi_reduction <add>, %120, %cst_53 [1] : vector<8x32xf32> to vector<8xf32>
    %122 = vector.shape_cast %121 : vector<8xf32> to vector<8x1xf32>
    %cst_54 = arith.constant 3.200000e+01 : f32
    %123 = vector.broadcast %cst_54 : f32 to vector<8x1xf32>
    %124 = arith.divf %122, %123 : vector<8x1xf32>
    %125 = vector.broadcast %115 : vector<8x1xf32> to vector<8x32xf32>
    %126 = arith.subf %111, %125 : vector<8x32xf32>
    %cst_55 = arith.constant 9.99999997E-7 : f32
    %127 = vector.broadcast %cst_55 : f32 to vector<8x1xf32>
    %128 = arith.addf %124, %127 : vector<8x1xf32>
    %129 = math.rsqrt %128 : vector<8x1xf32>
    %130 = vector.broadcast %129 : vector<8x1xf32> to vector<8x32xf32>
    %131 = arith.mulf %126, %130 : vector<8x32xf32>
    %132 = vector.broadcast %15 : vector<1x32xf32> to vector<8x32xf32>
    %133 = arith.mulf %131, %132 : vector<8x32xf32>
    %134 = vector.broadcast %16 : vector<1x32xf32> to vector<8x32xf32>
    %135 = arith.addf %133, %134 : vector<8x32xf32>
    %136 = arith.truncf %135 : vector<8x32xf32> to vector<8x32xbf16>
    %c0_56 = arith.constant 0 : index
    %c0_57 = arith.constant 0 : index
    %137 = vector.load %arg13[%c0_56, %c0_57] : memref<32x64xbf16, #tpu.memory_space<vmem>>, vector<32x64xbf16>
    %cst_58 = arith.constant dense<0.000000e+00> : vector<8x64xf32>
    %138 = tpu.matmul %136, %137, %cst_58 {dimension_numbers = #tpu.dot_dimension_numbers<[1], [0], [0], [1], [0, 0, 1, 1], [], []>} : vector<8x32xbf16>, vector<32x64xbf16>, vector<8x64xf32> -> vector<8x64xf32>
    %c0_59 = arith.constant 0 : index
    %c0_60 = arith.constant 0 : index
    %139 = vector.load %arg14[%c0_59, %c0_60] : memref<1x64xf32, #tpu.memory_space<vmem>>, vector<1x64xf32>
    %140 = vector.broadcast %139 : vector<1x64xf32> to vector<8x64xf32>
    %141 = arith.addf %138, %140 : vector<8x64xf32>
    %cst_61 = arith.constant 0.000000e+00 : f32
    %142 = vector.broadcast %cst_61 : f32 to vector<8x64xf32>
    %143 = arith.maximumf %141, %142 : vector<8x64xf32>
    %144 = arith.truncf %143 : vector<8x64xf32> to vector<8x64xbf16>
    %c0_62 = arith.constant 0 : index
    %c0_63 = arith.constant 0 : index
    %145 = vector.load %arg15[%c0_62, %c0_63] : memref<64x32xbf16, #tpu.memory_space<vmem>>, vector<64x32xbf16>
    %cst_64 = arith.constant dense<0.000000e+00> : vector<8x32xf32>
    %146 = tpu.matmul %144, %145, %cst_64 {dimension_numbers = #tpu.dot_dimension_numbers<[1], [0], [0], [1], [0, 0, 1, 1], [], []>} : vector<8x64xbf16>, vector<64x32xbf16>, vector<8x32xf32> -> vector<8x32xf32>
    %c0_65 = arith.constant 0 : index
    %c0_66 = arith.constant 0 : index
    %147 = vector.load %arg16[%c0_65, %c0_66] : memref<1x32xf32, #tpu.memory_space<vmem>>, vector<1x32xf32>
    %148 = vector.broadcast %147 : vector<1x32xf32> to vector<8x32xf32>
    %149 = arith.addf %146, %148 : vector<8x32xf32>
    %150 = arith.addf %149, %135 : vector<8x32xf32>
    %c0_67 = arith.constant 0 : index
    %c0_68 = arith.constant 0 : index
    %151 = vector.load %arg17[%c0_67, %c0_68] : memref<1x32xf32, #tpu.memory_space<vmem>>, vector<1x32xf32>
    %c0_69 = arith.constant 0 : index
    %c0_70 = arith.constant 0 : index
    %152 = vector.load %arg18[%c0_69, %c0_70] : memref<1x32xf32, #tpu.memory_space<vmem>>, vector<1x32xf32>
    %cst_71 = arith.constant dense<0.000000e+00> : vector<8xf32>
    %153 = vector.multi_reduction <add>, %150, %cst_71 [1] : vector<8x32xf32> to vector<8xf32>
    %154 = vector.shape_cast %153 : vector<8xf32> to vector<8x1xf32>
    %cst_72 = arith.constant 3.200000e+01 : f32
    %155 = vector.broadcast %cst_72 : f32 to vector<8x1xf32>
    %156 = arith.divf %154, %155 : vector<8x1xf32>
    %157 = vector.broadcast %156 : vector<8x1xf32> to vector<8x32xf32>
    %158 = arith.subf %150, %157 : vector<8x32xf32>
    %159 = vector.broadcast %156 : vector<8x1xf32> to vector<8x32xf32>
    %160 = arith.subf %150, %159 : vector<8x32xf32>
    %161 = arith.mulf %158, %160 : vector<8x32xf32>
    %cst_73 = arith.constant dense<0.000000e+00> : vector<8xf32>
    %162 = vector.multi_reduction <add>, %161, %cst_73 [1] : vector<8x32xf32> to vector<8xf32>
    %163 = vector.shape_cast %162 : vector<8xf32> to vector<8x1xf32>
    %cst_74 = arith.constant 3.200000e+01 : f32
    %164 = vector.broadcast %cst_74 : f32 to vector<8x1xf32>
    %165 = arith.divf %163, %164 : vector<8x1xf32>
    %166 = vector.broadcast %156 : vector<8x1xf32> to vector<8x32xf32>
    %167 = arith.subf %150, %166 : vector<8x32xf32>
    %cst_75 = arith.constant 9.99999997E-7 : f32
    %168 = vector.broadcast %cst_75 : f32 to vector<8x1xf32>
    %169 = arith.addf %165, %168 : vector<8x1xf32>
    %170 = math.rsqrt %169 : vector<8x1xf32>
    %171 = vector.broadcast %170 : vector<8x1xf32> to vector<8x32xf32>
    %172 = arith.mulf %167, %171 : vector<8x32xf32>
    %173 = vector.broadcast %151 : vector<1x32xf32> to vector<8x32xf32>
    %174 = arith.mulf %172, %173 : vector<8x32xf32>
    %175 = vector.broadcast %152 : vector<1x32xf32> to vector<8x32xf32>
    %176 = arith.addf %174, %175 : vector<8x32xf32>
    %177 = arith.truncf %176 : vector<8x32xf32> to vector<8x32xbf16>
    %c0_76 = arith.constant 0 : index
    %c0_77 = arith.constant 0 : index
    %c0_78 = arith.constant 0 : index
    %178 = vector.load %arg19[%c0_76, %c0_77, %c0_78] : memref<1x8x32xbf16, #tpu.memory_space<vmem>>, vector<1x8x32xbf16>
    %179 = vector.shape_cast %178 : vector<1x8x32xbf16> to vector<8x32xbf16>
    %180 = vector.shape_cast %177 : vector<8x32xbf16> to vector<1x8x32xbf16>
    tpu.vector_store %arg19[%c0_76, %c0_77, %c0_78], %180 {strides = array<i32>} : memref<1x8x32xbf16, #tpu.memory_space<vmem>>, vector<1x8x32xbf16>,
    return
  }
  func.func @transform_0(%arg0: i32, %arg1: i32) -> (i32, i32, i32) {
    %c0_i32 = arith.constant 0 : i32
    %c0_i32_0 = arith.constant 0 : i32
    return %arg0, %arg1, %c0_i32 : i32, i32, i32
  }
  func.func @transform_1(%arg0: i32, %arg1: i32) -> (i32, i32, i32) {
    %c0_i32 = arith.constant 0 : i32
    %c0_i32_0 = arith.constant 0 : i32
    %c0_i32_1 = arith.constant 0 : i32
    return %arg0, %c0_i32, %c0_i32_0 : i32, i32, i32
  }
  func.func @transform_2(%arg0: i32, %arg1: i32) -> (i32, i32, i32) {
    %c0_i32 = arith.constant 0 : i32
    %c0_i32_0 = arith.constant 0 : i32
    return %arg0, %arg1, %c0_i32 : i32, i32, i32
  }
  func.func @transform_3(%arg0: i32, %arg1: i32) -> (i32, i32) {
    %c0_i32 = arith.constant 0 : i32
    %c0_i32_0 = arith.constant 0 : i32
    %c0_i32_1 = arith.constant 0 : i32
    return %c0_i32, %c0_i32_0 : i32, i32
  }
  func.func @transform_4(%arg0: i32, %arg1: i32) -> (i32, i32) {
    %c0_i32 = arith.constant 0 : i32
    %c0_i32_0 = arith.constant 0 : i32
    %c0_i32_1 = arith.constant 0 : i32
    return %c0_i32, %c0_i32_0 : i32, i32
  }
  func.func @transform_5(%arg0: i32, %arg1: i32) -> (i32, i32) {
    %c0_i32 = arith.constant 0 : i32
    %c0_i32_0 = arith.constant 0 : i32
    %c0_i32_1 = arith.constant 0 : i32
    return %c0_i32, %c0_i32_0 : i32, i32
  }
  func.func @transform_6(%arg0: i32, %arg1: i32) -> (i32, i32) {
    %c0_i32 = arith.constant 0 : i32
    %c0_i32_0 = arith.constant 0 : i32
    %c0_i32_1 = arith.constant 0 : i32
    return %c0_i32, %c0_i32_0 : i32, i32
  }
  func.func @transform_7(%arg0: i32, %arg1: i32) -> (i32, i32) {
    %c0_i32 = arith.constant 0 : i32
    %c0_i32_0 = arith.constant 0 : i32
    %c0_i32_1 = arith.constant 0 : i32
    return %c0_i32, %c0_i32_0 : i32, i32
  }
  func.func @transform_8(%arg0: i32, %arg1: i32) -> (i32, i32) {
    %c0_i32 = arith.constant 0 : i32
    %c0_i32_0 = arith.constant 0 : i32
    %c0_i32_1 = arith.constant 0 : i32
    return %c0_i32, %c0_i32_0 : i32, i32
  }
  func.func @transform_9(%arg0: i32, %arg1: i32) -> (i32, i32) {
    %c0_i32 = arith.constant 0 : i32
    %c0_i32_0 = arith.constant 0 : i32
    %c0_i32_1 = arith.constant 0 : i32
    return %c0_i32, %c0_i32_0 : i32, i32
  }
  func.func @transform_10(%arg0: i32, %arg1: i32) -> (i32, i32) {
    %c0_i32 = arith.constant 0 : i32
    %c0_i32_0 = arith.constant 0 : i32
    %c0_i32_1 = arith.constant 0 : i32
    return %c0_i32, %c0_i32_0 : i32, i32
  }
  func.func @transform_11(%arg0: i32, %arg1: i32) -> (i32, i32) {
    %c0_i32 = arith.constant 0 : i32
    %c0_i32_0 = arith.constant 0 : i32
    %c0_i32_1 = arith.constant 0 : i32
    return %c0_i32, %c0_i32_0 : i32, i32
  }
  func.func @transform_12(%arg0: i32, %arg1: i32) -> (i32, i32) {
    %c0_i32 = arith.constant 0 : i32
    %c0_i32_0 = arith.constant 0 : i32
    %c0_i32_1 = arith.constant 0 : i32
    return %c0_i32, %c0_i32_0 : i32, i32
  }
  func.func @transform_13(%arg0: i32, %arg1: i32) -> (i32, i32) {
    %c0_i32 = arith.constant 0 : i32
    %c0_i32_0 = arith.constant 0 : i32
    %c0_i32_1 = arith.constant 0 : i32
    return %c0_i32, %c0_i32_0 : i32, i32
  }
  func.func @transform_14(%arg0: i32, %arg1: i32) -> (i32, i32) {
    %c0_i32 = arith.constant 0 : i32
    %c0_i32_0 = arith.constant 0 : i32
    %c0_i32_1 = arith.constant 0 : i32
    return %c0_i32, %c0_i32_0 : i32, i32
  }
  func.func @transform_15(%arg0: i32, %arg1: i32) -> (i32, i32) {
    %c0_i32 = arith.constant 0 : i32
    %c0_i32_0 = arith.constant 0 : i32
    %c0_i32_1 = arith.constant 0 : i32
    return %c0_i32, %c0_i32_0 : i32, i32
  }
  func.func @transform_16(%arg0: i32, %arg1: i32) -> (i32, i32) {
    %c0_i32 = arith.constant 0 : i32
    %c0_i32_0 = arith.constant 0 : i32
    %c0_i32_1 = arith.constant 0 : i32
    return %c0_i32, %c0_i32_0 : i32, i32
  }
  func.func @transform_17(%arg0: i32, %arg1: i32) -> (i32, i32, i32) {
    %c0_i32 = arith.constant 0 : i32
    %c0_i32_0 = arith.constant 0 : i32
    return %arg0, %arg1, %c0_i32 : i32, i32, i32
  }
}

</mosaic_0001>

<llo_original>
// kernel: tpu_custom_call.1
$region0: #{tpu_custom_call.1}
  #allocation0 [shape = 'u32[]', space=smem, size = 0x4, offset = 0x4, fixed_abs, tag = 'smem constant byte address 0x4 - core index']
  #allocation1 [shape = 'u32[144,128]{1,0:T(1,128)}', space=vmem, size = 0x12000, scoped, tag = 'internal scratch']
  %s0 = inlined_call_operand.hbm [shape: f32[8,128], index: 0, kind: input, shape index: {}]
  %s1 = inlined_call_operand.hbm [shape: f32[8,128], index: 1, kind: output, shape index: {}]
  %s2 = sld [smem:[#allocation0]]
  $region18: #{tpu_custom_call.1} parent=0
    _
  %s4 = ssub.s32 1, %s2
  %s5 = scalar_select 0, %s4, %s2
  $region1: #{tpu_custom_call.1} parent=0
    #allocation2 [shape = 'u8[4096]{0}', space=vmem, size = 0x1000, scoped, tag = 'input window, operand 0, single buffered']
    #allocation3 [shape = 's32[1]{0}', space=sflag, size = 0x4, scoped, tag = 'scoped memory for tpu_custom_call.1']
    #allocation4 [shape = 's32[1]{0}', space=sflag, size = 0x4, scoped, tag = 'scoped memory for tpu_custom_call.1']
    #allocation5 [shape = 'u8[4096]{0}', space=vmem, size = 0x1000, scoped, tag = 'output window, operand 0, single buffered']
    %6 = vsyncpa [#allocation3], 0
    %7 = vsyncpa [#allocation4], 0
    // Predicated region
    $region2: #{tpu_custom_call.1} parent=1 // pred_check
      _
    $region3: #{tpu_custom_call.1} parent=1 // pred_check_branch
      %9 = sbr.rel (0) target = $region5
    $region4: #{tpu_custom_call.1} parent=1 // pred_region
      %s11 = ssub.s32 128, 128
      %12 = vsyncadd [#allocation3], %s11
      %s14 = sshll.u32 [#allocation2], 4
      %s15 = int_to_ptr.vmem [resolvable:$true] %s14
      %17 = dma.hbm_to_vmem [thread:$0]  %s0, 128, %s15, [#allocation3]
    $region5: #{tpu_custom_call.1} parent=1 // pred_fallthru
      _
    // Predicated region
    $region6: #{tpu_custom_call.1} parent=1 // pred_check
      _
    $region7: #{tpu_custom_call.1} parent=1 // pred_check_branch
      %19 = sbr.rel (0) target = $region9
    $region8: #{tpu_custom_call.1} parent=1 // pred_region
      %20 = dma.done [#allocation3], 128
    $region9: #{tpu_custom_call.1} parent=1 // pred_fallthru
      _
    %v21 = vld [vmem:[#allocation2] sm:$0xff]
    %v22 = vmul.f32 %v21, 2.0
    %23 = vst [vmem:[#allocation5] sm:$0xff] %v22
    // Predicated region
    $region10: #{tpu_custom_call.1} parent=1 // pred_check
      _
    $region11: #{tpu_custom_call.1} parent=1 // pred_check_branch
      %25 = sbr.rel (0) target = $region13
    $region12: #{tpu_custom_call.1} parent=1 // pred_region
      %s27 = ssub.s32 128, 128
      %28 = vsyncadd [#allocation4], %s27
      %s30 = sshll.u32 [#allocation5], 4
      %s31 = int_to_ptr.vmem [resolvable:$true] %s30
      %33 = dma.vmem_to_hbm [thread:$0]  %s31, 128, %s1, [#allocation4]
    $region13: #{tpu_custom_call.1} parent=1 // pred_fallthru
      _
    // Predicated region
    $region14: #{tpu_custom_call.1} parent=1 // pred_check
      _
    $region15: #{tpu_custom_call.1} parent=1 // pred_check_branch
      %35 = sbr.rel (0) target = $region17
    $region16: #{tpu_custom_call.1} parent=1 // pred_region
      %36 = dma.done [#allocation4], 128
    $region17: #{tpu_custom_call.1} parent=1 // pred_fallthru
      _
    %37 = vsyncpa [#allocation3], 1
    %38 = vsyncpa [#allocation4], 1

// kernel: run.5
$region0: #{run.5}
  #allocation0 [shape = 'u32[]', space=smem, size = 0x4, offset = 0x4, fixed_abs, tag = 'smem constant byte address 0x4 - core index']
  #allocation1 [shape = 'u32[144,128]{1,0:T(1,128)}', space=vmem, size = 0x12000, scoped, tag = 'internal scratch']
  %s0 = inlined_call_operand.vmem [shape: f32[2,8,32], index: 0, kind: input, shape index: {}]
  %s1 = inlined_call_operand.vmem [shape: f32[8,32], index: 1, kind: input, shape index: {}]
  %s2 = inlined_call_operand.vmem [shape: f32[1,32], index: 2, kind: input, shape index: {}]
  %s3 = inlined_call_operand.vmem [shape: f32[1,32], index: 3, kind: input, shape index: {}]
  %s4 = inlined_call_operand.vmem [shape: bf16[2,8,32], index: 4, kind: output, shape index: {}]
  %s5 = sld [smem:[#allocation0]]
  $region49: #{run.5} parent=0
    _
  %s7 = ssub.s32 1, %s5
  %s8 = scalar_select 0, %s7, %s5
  loop: start=0, step=1, limit=4
  $region2: #{run.5} parent=0 // loop_pre_header
    _
  $region3: #{run.5} parent=0 // loop_header
    %s10 = sphi 0, %s14
    %p11 = scmp.ge.s32.totalorder %s10, 4
    %s20 = sphi 0, %s22
    %s23 = sphi 0, %s20
    %s24 = sphi 0, %s23
    %s40 = sphi 0, %s24
    %s44 = sphi 0, %s44
    %s46 = sphi 0, %s44
    %s47 = sphi 0, %s46
    %s61 = sphi 0, %s47
    %s65 = sphi 0, %s65
    %s67 = sphi 0, %s65
    %s68 = sphi 0, %s67
    %s82 = sphi 0, %s68
    %s86 = sphi 0, %s86
    %s88 = sphi 0, %s86
    %s89 = sphi 0, %s88
    %s103 = sphi 0, %s89
    %s109 = sphi 0, %s111
    %s112 = sphi 0, %s109
    %s113 = sphi 0, %s112
    %s129 = sphi 0, %s113
  $region4: #{run.5} parent=0 // loop_header_branch
    %13 = sbr.rel (%p11) target = $region8
  $region5: #{run.5} parent=0 // loop_body
    %s15 = ssub.s32 %s10, 1
    %s16 = ssub.s32 %s10, 2
    %s17 = sadd.s32 %s10, 1
    %s18 = ssub.s32 %s10, %s17
    %p19 = scmp.eq.s32.totalorder %s18, 0
    %s21 = sadd.s32 %s20, 1
    %s22 = scalar_select %p19, %s20, %s21
    %p25 = pneg %p19
    %p26 = scmp.eq.s32.totalorder %s10, 1
    %p27 = por %p25, %p26
    %p28 = scmp.ne.s32.totalorder %s20, %s23
    %p29 = scmp.eq.s32.totalorder %s10, 0
    %p30 = por %p28, %p29
    %p31 = scmp.ne.s32.totalorder %s20, %s23
    %p32 = scmp.eq.s32.totalorder %s15, 1
    %p33 = por %p31, %p32
    %p34 = scmp.ne.s32.totalorder %s23, %s24
    %p35 = scmp.eq.s32.totalorder %s15, 0
    %p36 = por %p34, %p35
    %p37 = scmp.ne.s32.totalorder %s23, %s24
    %p38 = scmp.eq.s32.totalorder %s16, 1
    %p39 = por %p37, %p38
    %p41 = scmp.ne.s32.totalorder %s24, %s40
    %p42 = scmp.eq.s32.totalorder %s16, 0
    %p43 = por %p41, %p42
    %s45 = sadd.s32 %s44, 1
    %p48 = scmp.eq.s32.totalorder %s10, 1
    %p49 = scmp.ne.s32.totalorder %s44, %s46
    %p50 = scmp.eq.s32.totalorder %s10, 0
    %p51 = por %p49, %p50
    %p52 = scmp.ne.s32.totalorder %s44, %s46
    %p53 = scmp.eq.s32.totalorder %s15, 1
    %p54 = por %p52, %p53
    %p55 = scmp.ne.s32.totalorder %s46, %s47
    %p56 = scmp.eq.s32.totalorder %s15, 0
    %p57 = por %p55, %p56
    %p58 = scmp.ne.s32.totalorder %s46, %s47
    %p59 = scmp.eq.s32.totalorder %s16, 1
    %p60 = por %p58, %p59
    %p62 = scmp.ne.s32.totalorder %s47, %s61
    %p63 = scmp.eq.s32.totalorder %s16, 0
    %p64 = por %p62, %p63
    %s66 = sadd.s32 %s65, 1
    %p69 = scmp.eq.s32.totalorder %s10, 1
    %p70 = scmp.ne.s32.totalorder %s65, %s67
    %p71 = scmp.eq.s32.totalorder %s10, 0
    %p72 = por %p70, %p71
    %p73 = scmp.ne.s32.totalorder %s65, %s67
    %p74 = scmp.eq.s32.totalorder %s15, 1
    %p75 = por %p73, %p74
    %p76 = scmp.ne.s32.totalorder %s67, %s68
    %p77 = scmp.eq.s32.totalorder %s15, 0
    %p78 = por %p76, %p77
    %p79 = scmp.ne.s32.totalorder %s67, %s68
    %p80 = scmp.eq.s32.totalorder %s16, 1
    %p81 = por %p79, %p80
    %p83 = scmp.ne.s32.totalorder %s68, %s82
    %p84 = scmp.eq.s32.totalorder %s16, 0
    %p85 = por %p83, %p84
    %s87 = sadd.s32 %s86, 1
    %p90 = scmp.eq.s32.totalorder %s10, 1
    %p91 = scmp.ne.s32.totalorder %s86, %s88
    %p92 = scmp.eq.s32.totalorder %s10, 0
    %p93 = por %p91, %p92
    %p94 = scmp.ne.s32.totalorder %s86, %s88
    %p95 = scmp.eq.s32.totalorder %s15, 1
    %p96 = por %p94, %p95
    %p97 = scmp.ne.s32.totalorder %s88, %s89
    %p98 = scmp.eq.s32.totalorder %s15, 0
    %p99 = por %p97, %p98
    %p100 = scmp.ne.s32.totalorder %s88, %s89
    %p101 = scmp.eq.s32.totalorder %s16, 1
    %p102 = por %p100, %p101
    %p104 = scmp.ne.s32.totalorder %s89, %s103
    %p105 = scmp.eq.s32.totalorder %s16, 0
    %p106 = por %p104, %p105
    %s107 = ssub.s32 %s10, %s17
    %p108 = scmp.eq.s32.totalorder %s107, 0
    %s110 = sadd.s32 %s109, 1
    %s111 = scalar_select %p108, %s109, %s110
    %p114 = pneg %p108
    %p115 = scmp.eq.s32.totalorder %s10, 1
    %p116 = por %p114, %p115
    %p117 = scmp.ne.s32.totalorder %s109, %s112
    %p118 = scmp.eq.s32.totalorder %s10, 0
    %p119 = por %p117, %p118
    %p120 = scmp.ne.s32.totalorder %s109, %s112
    %p121 = scmp.eq.s32.totalorder %s15, 1
    %p122 = por %p120, %p121
    %p123 = scmp.ne.s32.totalorder %s112, %s113
    %p124 = scmp.eq.s32.totalorder %s15, 0
    %p125 = por %p123, %p124
    %p126 = scmp.ne.s32.totalorder %s112, %s113
    %p127 = scmp.eq.s32.totalorder %s16, 1
    %p128 = por %p126, %p127
    %p130 = scmp.ne.s32.totalorder %s113, %s129
    %p131 = scmp.eq.s32.totalorder %s16, 0
    %p132 = por %p130, %p131
    %p133 = scmp.le.s32.totalorder 1, %s10
    %p134 = scmp.lt.s32.totalorder %s10, 3
    %p135 = pnand %p133, %p134
    %p136 = pneg %p135
    // Predicated region
    $region9: #{run.5} parent=5 // pred_check
      _
    $region10: #{run.5} parent=5 // pred_check_branch
      %138 = sbr.rel (%p135) target = $region12
    $region11: #{run.5} parent=5 // pred_region
      %s139 = ssub.s32 %s10, 1
      // Predicated region
      $region13: #{run.5} parent=11 // pred_check
        %p140 = pneg %p57
      $region14: #{run.5} parent=11 // pred_check_branch
        %142 = sbr.rel (%p140) target = $region16
      $region15: #{run.5} parent=11 // pred_region
        _
      $region16: #{run.5} parent=11 // pred_fallthru
        _
      // Predicated region
      $region17: #{run.5} parent=11 // pred_check
        %p143 = pneg %p78
      $region18: #{run.5} parent=11 // pred_check_branch
        %145 = sbr.rel (%p143) target = $region20
      $region19: #{run.5} parent=11 // pred_region
        _
      $region20: #{run.5} parent=11 // pred_fallthru
        _
      // Predicated region
      $region21: #{run.5} parent=11 // pred_check
        %p146 = pneg %p99
      $region22: #{run.5} parent=11 // pred_check_branch
        %148 = sbr.rel (%p146) target = $region24
      $region23: #{run.5} parent=11 // pred_region
        _
      $region24: #{run.5} parent=11 // pred_fallthru
        _
    $region12: #{run.5} parent=5 // pred_fallthru
      _
    %p149 = scmp.lt.s32.totalorder %s10, 2
    // Predicated region
    $region25: #{run.5} parent=5 // pred_check
      %p150 = pneg %p149
    $region26: #{run.5} parent=5 // pred_check_branch
      %152 = sbr.rel (%p150) target = $region28
    $region27: #{run.5} parent=5 // pred_region
      // Predicated region
      $region29: #{run.5} parent=27 // pred_check
        %p153 = pneg %p30
      $region30: #{run.5} parent=27 // pred_check_branch
        %155 = sbr.rel (%p153) target = $region32
      $region31: #{run.5} parent=27 // pred_region
        %p156 = scmp.lt.s32.totalorder %s10, 1
        %s157 = scalar_select %p156, %s10, 1
        %s158 = smul.addr %s157, 8
        %s159 = scalar_lea.vmem %s0, %s158
      $region32: #{run.5} parent=27 // pred_fallthru
        _
    $region28: #{run.5} parent=5 // pred_fallthru
      _
    %p160 = scmp.le.s32.totalorder 1, %s10
    %p161 = scmp.lt.s32.totalorder %s10, 3
    %p162 = pnand %p160, %p161
    %p163 = pneg %p162
    // Predicated region
    $region33: #{run.5} parent=5 // pred_check
      _
    $region34: #{run.5} parent=5 // pred_check_branch
      %165 = sbr.rel (%p162) target = $region36
    $region35: #{run.5} parent=5 // pred_region
      %s166 = ssub.s32 %s10, 1
      %p167 = scmp.lt.s32.totalorder %s15, 1
      %s168 = scalar_select %p167, %s15, 1
      %s169 = smul.addr %s168, 8
      %s170 = scalar_lea.vmem %s0, %s169
      %p171 = pneg %p36
      %p172 = pneg %p33
      %p173 = pneg %p57
      %p174 = pneg %p54
      %p175 = pneg %p78
      %p176 = pneg %p75
      %p177 = pneg %p99
      %p178 = pneg %p96
      %p179 = pneg %p125
      %p180 = pneg %p122
      %p181 = scmp.lt.s32.totalorder %s15, 1
      %s182 = scalar_select %p181, %s15, 1
      %s183 = smul.addr %s182, 4
      %s184 = scalar_lea.vmem %s4, %s183
      %p185 = scmp.lt.s32.totalorder %s15, 1
      %s186 = scalar_select %p185, %s15, 1
      %s187 = smul.addr %s186, 8
      %s188 = scalar_lea.vmem %s0, %s187
      %p189 = scmp.lt.s32.totalorder %s15, 1
      %s190 = scalar_select %p189, %s15, 1
      %s191 = smul.addr %s190, 4
      %s192 = scalar_lea.vmem %s4, %s191
      %v193 = vld [vmem:[%s188] sm:$0xff]
      %v194 = vmul.f32 %v193, 5.656854
      %v195 = vld [vmem:[%s1] sm:$0xff]
      %v196 = vadd.f32 %v194, %v195
      %v197 = vld [vmem:[%s2] sm:$0x1]
      %v198 = vld [vmem:[%s3] sm:$0x1]
      %vm199 = vcmask 261120
      %v200 = vsel %vm199, %v196, 0.0
      %201 = vadd.xlane.f32.xlu0 %v200
      %v202 = vpop.xlane.xlu0 %201
      %v203 = vrcp.pop 32.0
      %v204 = vmul.f32 %v202, %v203
      %v205 = vsub.f32 %v196, %v204
      %v206 = vmul.f32 %v205, %v205
      %v207 = vsel %vm199, %v206, 0.0
      %208 = vadd.xlane.f32.xlu0 %v207
      %v209 = vpop.xlane.xlu0 %208
      %v210 = vmul.f32 %v209, %v203
      %v211 = vadd.f32 %v210, 1e-06
      %v212 = vrsqrt.pop %v211
      %v213 = vmul.f32 %v205, %v212
      %v215 = vlaneseq
      %v216 = vshrl.u32 %v215, 7
      %v217 = vsub.s32 0, %v216
      %v218 = vrot.slane %v197, %v217
      %v220 = vmul.f32 %v213, %v218
      %v222 = vlaneseq
      %v223 = vshrl.u32 %v222, 7
      %v224 = vsub.s32 0, %v223
      %v225 = vrot.slane %v198, %v224
      %v227 = vadd.f32 %v220, %v225
      %v228 = vpack.c.bf16 %v227, %v227
      %vm229 = vcmask 257024
      %230 = vst.msk [vmem:[%s192] sm:$0xf] %vm229, %v228
      %p231 = scmp.lt.s32.totalorder %s15, 1
      %s232 = scalar_select %p231, %s15, 1
      %s233 = smul.addr %s232, 4
      %s234 = scalar_lea.vmem %s4, %s233
      // Predicated region
      $region37: #{run.5} parent=35 // pred_check
        %p235 = pneg %p122
      $region38: #{run.5} parent=35 // pred_check_branch
        %237 = sbr.rel (%p235) target = $region40
      $region39: #{run.5} parent=35 // pred_region
        _
      $region40: #{run.5} parent=35 // pred_fallthru
        _
    $region36: #{run.5} parent=5 // pred_fallthru
      _
    %p238 = scmp.le.s32.totalorder 2, %s10
    // Predicated region
    $region41: #{run.5} parent=5 // pred_check
      %p239 = pneg %p238
    $region42: #{run.5} parent=5 // pred_check_branch
      %241 = sbr.rel (%p239) target = $region44
    $region43: #{run.5} parent=5 // pred_region
      %s242 = ssub.s32 %s10, 2
      // Predicated region
      $region45: #{run.5} parent=43 // pred_check
        %p243 = pneg %p128
      $region46: #{run.5} parent=43 // pred_check_branch
        %245 = sbr.rel (%p243) target = $region48
      $region47: #{run.5} parent=43 // pred_region
        %p246 = scmp.lt.s32.totalorder %s16, 1
        %s247 = scalar_select %p246, %s16, 1
        %s248 = smul.addr %s247, 4
        %s249 = scalar_lea.vmem %s4, %s248
      $region48: #{run.5} parent=43 // pred_fallthru
        _
    $region44: #{run.5} parent=5 // pred_fallthru
      _
  $region6: #{run.5} parent=0 // loop_footer
    %s14 = sadd.s32 1, %s10
  $region7: #{run.5} parent=0 // loop_footer_branch
    %9 = sbr.rel target = $region3
  $region8: #{run.5} parent=0 // loop_exit
    _

// kernel: run.6
$region0: #{run.6}
  #allocation0 [shape = 'u32[]', space=smem, size = 0x4, offset = 0x4, fixed_abs, tag = 'smem constant byte address 0x4 - core index']
  #allocation1 [shape = 'u32[144,128]{1,0:T(1,128)}', space=vmem, size = 0x12000, scoped, tag = 'internal scratch']
  %s0 = inlined_call_operand.vmem [shape: bf16[2,8,32], index: 0, kind: input, shape index: {}, may-alias: {0,1}]
  %s1 = inlined_call_operand.vmem [shape: bf16[2,8,32], index: 1, kind: input, shape index: {}, may-alias: {0,1}]
  %s2 = inlined_call_operand.vmem [shape: s8[2,8,8], index: 2, kind: input, shape index: {}]
  %s3 = inlined_call_operand.vmem [shape: bf16[32,32], index: 3, kind: input, shape index: {}]
  %s4 = inlined_call_operand.vmem [shape: f32[1,32], index: 4, kind: input, shape index: {}]
  %s5 = inlined_call_operand.vmem [shape: bf16[32,64], index: 5, kind: input, shape index: {}]
  %s6 = inlined_call_operand.vmem [shape: f32[1,64], index: 6, kind: input, shape index: {}]
  %s7 = inlined_call_operand.vmem [shape: bf16[32,32], index: 7, kind: input, shape index: {}]
  %s8 = inlined_call_operand.vmem [shape: f32[1,32], index: 8, kind: input, shape index: {}]
  %s9 = inlined_call_operand.vmem [shape: f32[1,32], index: 9, kind: input, shape index: {}]
  %s10 = inlined_call_operand.vmem [shape: f32[1,32], index: 10, kind: input, shape index: {}]
  %s11 = inlined_call_operand.vmem [shape: bf16[2,8,32], index: 11, kind: output, shape index: {}]
  %s12 = sld [smem:[#allocation0]]
  $region77: #{run.6} parent=0
    _
  %s14 = ssub.s32 1, %s12
  %s15 = scalar_select 0, %s14, %s12
  loop: start=0, step=1, limit=4
  $region2: #{run.6} parent=0 // loop_pre_header
    _
  $region3: #{run.6} parent=0 // loop_header
    %s17 = sphi 0, %s21
    %p18 = scmp.ge.s32.totalorder %s17, 4
    %s24 = sphi 0, %s36
    %s25 = sphi 0, %s32
    %s26 = sphi 0, %s24
    %s27 = sphi 0, %s25
    %s28 = sphi 0, %s26
    %s29 = sphi 0, %s27
    %s41 = sphi 0, %s43
    %s44 = sphi 0, %s41
    %s45 = sphi 0, %s44
    %s61 = sphi 0, %s45
    %s67 = sphi 0, %s69
    %s70 = sphi 0, %s67
    %s71 = sphi 0, %s70
    %s87 = sphi 0, %s71
    %s95 = sphi 0, %s97
    %s98 = sphi 0, %s95
    %s99 = sphi 0, %s98
    %s115 = sphi 0, %s99
    %s119 = sphi 0, %s119
    %s121 = sphi 0, %s119
    %s122 = sphi 0, %s121
    %s136 = sphi 0, %s122
    %s140 = sphi 0, %s140
    %s142 = sphi 0, %s140
    %s143 = sphi 0, %s142
    %s157 = sphi 0, %s143
    %s161 = sphi 0, %s161
    %s163 = sphi 0, %s161
    %s164 = sphi 0, %s163
    %s178 = sphi 0, %s164
    %s182 = sphi 0, %s182
    %s184 = sphi 0, %s182
    %s185 = sphi 0, %s184
    %s199 = sphi 0, %s185
    %s203 = sphi 0, %s203
    %s205 = sphi 0, %s203
    %s206 = sphi 0, %s205
    %s220 = sphi 0, %s206
    %s224 = sphi 0, %s224
    %s226 = sphi 0, %s224
    %s227 = sphi 0, %s226
    %s241 = sphi 0, %s227
    %s245 = sphi 0, %s245
    %s247 = sphi 0, %s245
    %s248 = sphi 0, %s247
    %s262 = sphi 0, %s248
    %s266 = sphi 0, %s266
    %s268 = sphi 0, %s266
    %s269 = sphi 0, %s268
    %s283 = sphi 0, %s269
    %s291 = sphi 0, %s293
    %s294 = sphi 0, %s291
    %s295 = sphi 0, %s294
    %s311 = sphi 0, %s295
  $region4: #{run.6} parent=0 // loop_header_branch
    %20 = sbr.rel (%p18) target = $region8
  $region5: #{run.6} parent=0 // loop_body
    %s22 = ssub.s32 %s17, 1
    %s23 = ssub.s32 %s17, 2
    %s30 = sadd.s32 1, %s25
    %p31 = scmp.ge.s32.totalorder %s30, 1
    %s32 = scalar_select %p31, 0, %s30
    %s33 = sadd.s32 1, %s24
    %s34 = scalar_select %p31, %s33, %s24
    %p35 = scmp.ge.s32.totalorder %s34, 2
    %s36 = scalar_select %p35, 0, %s34
    %s37 = ssub.s32 %s24, %s36
    %s38 = ssub.s32 %s25, %s32
    %s39 = sor.u32 %s37, %s38
    %p40 = scmp.eq.s32.totalorder %s39, 0
    %s42 = sadd.s32 %s41, 1
    %s43 = scalar_select %p40, %s41, %s42
    %p46 = pneg %p40
    %p47 = scmp.eq.s32.totalorder %s17, 1
    %p48 = por %p46, %p47
    %p49 = scmp.ne.s32.totalorder %s41, %s44
    %p50 = scmp.eq.s32.totalorder %s17, 0
    %p51 = por %p49, %p50
    %p52 = scmp.ne.s32.totalorder %s41, %s44
    %p53 = scmp.eq.s32.totalorder %s22, 1
    %p54 = por %p52, %p53
    %p55 = scmp.ne.s32.totalorder %s44, %s45
    %p56 = scmp.eq.s32.totalorder %s22, 0
    %p57 = por %p55, %p56
    %p58 = scmp.ne.s32.totalorder %s44, %s45
    %p59 = scmp.eq.s32.totalorder %s23, 1
    %p60 = por %p58, %p59
    %p62 = scmp.ne.s32.totalorder %s45, %s61
    %p63 = scmp.eq.s32.totalorder %s23, 0
    %p64 = por %p62, %p63
    %s65 = ssub.s32 %s24, %s36
    %p66 = scmp.eq.s32.totalorder %s65, 0
    %s68 = sadd.s32 %s67, 1
    %s69 = scalar_select %p66, %s67, %s68
    %p72 = pneg %p66
    %p73 = scmp.eq.s32.totalorder %s17, 1
    %p74 = por %p72, %p73
    %p75 = scmp.ne.s32.totalorder %s67, %s70
    %p76 = scmp.eq.s32.totalorder %s17, 0
    %p77 = por %p75, %p76
    %p78 = scmp.ne.s32.totalorder %s67, %s70
    %p79 = scmp.eq.s32.totalorder %s22, 1
    %p80 = por %p78, %p79
    %p81 = scmp.ne.s32.totalorder %s70, %s71
    %p82 = scmp.eq.s32.totalorder %s22, 0
    %p83 = por %p81, %p82
    %p84 = scmp.ne.s32.totalorder %s70, %s71
    %p85 = scmp.eq.s32.totalorder %s23, 1
    %p86 = por %p84, %p85
    %p88 = scmp.ne.s32.totalorder %s71, %s87
    %p89 = scmp.eq.s32.totalorder %s23, 0
    %p90 = por %p88, %p89
    %s91 = ssub.s32 %s24, %s36
    %s92 = ssub.s32 %s25, %s32
    %s93 = sor.u32 %s91, %s92
    %p94 = scmp.eq.s32.totalorder %s93, 0
    %s96 = sadd.s32 %s95, 1
    %s97 = scalar_select %p94, %s95, %s96
    %p100 = pneg %p94
    %p101 = scmp.eq.s32.totalorder %s17, 1
    %p102 = por %p100, %p101
    %p103 = scmp.ne.s32.totalorder %s95, %s98
    %p104 = scmp.eq.s32.totalorder %s17, 0
    %p105 = por %p103, %p104
    %p106 = scmp.ne.s32.totalorder %s95, %s98
    %p107 = scmp.eq.s32.totalorder %s22, 1
    %p108 = por %p106, %p107
    %p109 = scmp.ne.s32.totalorder %s98, %s99
    %p110 = scmp.eq.s32.totalorder %s22, 0
    %p111 = por %p109, %p110
    %p112 = scmp.ne.s32.totalorder %s98, %s99
    %p113 = scmp.eq.s32.totalorder %s23, 1
    %p114 = por %p112, %p113
    %p116 = scmp.ne.s32.totalorder %s99, %s115
    %p117 = scmp.eq.s32.totalorder %s23, 0
    %p118 = por %p116, %p117
    %s120 = sadd.s32 %s119, 1
    %p123 = scmp.eq.s32.totalorder %s17, 1
    %p124 = scmp.ne.s32.totalorder %s119, %s121
    %p125 = scmp.eq.s32.totalorder %s17, 0
    %p126 = por %p124, %p125
    %p127 = scmp.ne.s32.totalorder %s119, %s121
    %p128 = scmp.eq.s32.totalorder %s22, 1
    %p129 = por %p127, %p128
    %p130 = scmp.ne.s32.totalorder %s121, %s122
    %p131 = scmp.eq.s32.totalorder %s22, 0
    %p132 = por %p130, %p131
    %p133 = scmp.ne.s32.totalorder %s121, %s122
    %p134 = scmp.eq.s32.totalorder %s23, 1
    %p135 = por %p133, %p134
    %p137 = scmp.ne.s32.totalorder %s122, %s136
    %p138 = scmp.eq.s32.totalorder %s23, 0
    %p139 = por %p137, %p138
    %s141 = sadd.s32 %s140, 1
    %p144 = scmp.eq.s32.totalorder %s17, 1
    %p145 = scmp.ne.s32.totalorder %s140, %s142
    %p146 = scmp.eq.s32.totalorder %s17, 0
    %p147 = por %p145, %p146
    %p148 = scmp.ne.s32.totalorder %s140, %s142
    %p149 = scmp.eq.s32.totalorder %s22, 1
    %p150 = por %p148, %p149
    %p151 = scmp.ne.s32.totalorder %s142, %s143
    %p152 = scmp.eq.s32.totalorder %s22, 0
    %p153 = por %p151, %p152
    %p154 = scmp.ne.s32.totalorder %s142, %s143
    %p155 = scmp.eq.s32.totalorder %s23, 1
    %p156 = por %p154, %p155
    %p158 = scmp.ne.s32.totalorder %s143, %s157
    %p159 = scmp.eq.s32.totalorder %s23, 0
    %p160 = por %p158, %p159
    %s162 = sadd.s32 %s161, 1
    %p165 = scmp.eq.s32.totalorder %s17, 1
    %p166 = scmp.ne.s32.totalorder %s161, %s163
    %p167 = scmp.eq.s32.totalorder %s17, 0
    %p168 = por %p166, %p167
    %p169 = scmp.ne.s32.totalorder %s161, %s163
    %p170 = scmp.eq.s32.totalorder %s22, 1
    %p171 = por %p169, %p170
    %p172 = scmp.ne.s32.totalorder %s163, %s164
    %p173 = scmp.eq.s32.totalorder %s22, 0
    %p174 = por %p172, %p173
    %p175 = scmp.ne.s32.totalorder %s163, %s164
    %p176 = scmp.eq.s32.totalorder %s23, 1
    %p177 = por %p175, %p176
    %p179 = scmp.ne.s32.totalorder %s164, %s178
    %p180 = scmp.eq.s32.totalorder %s23, 0
    %p181 = por %p179, %p180
    %s183 = sadd.s32 %s182, 1
    %p186 = scmp.eq.s32.totalorder %s17, 1
    %p187 = scmp.ne.s32.totalorder %s182, %s184
    %p188 = scmp.eq.s32.totalorder %s17, 0
    %p189 = por %p187, %p188
    %p190 = scmp.ne.s32.totalorder %s182, %s184
    %p191 = scmp.eq.s32.totalorder %s22, 1
    %p192 = por %p190, %p191
    %p193 = scmp.ne.s32.totalorder %s184, %s185
    %p194 = scmp.eq.s32.totalorder %s22, 0
    %p195 = por %p193, %p194
    %p196 = scmp.ne.s32.totalorder %s184, %s185
    %p197 = scmp.eq.s32.totalorder %s23, 1
    %p198 = por %p196, %p197
    %p200 = scmp.ne.s32.totalorder %s185, %s199
    %p201 = scmp.eq.s32.totalorder %s23, 0
    %p202 = por %p200, %p201
    %s204 = sadd.s32 %s203, 1
    %p207 = scmp.eq.s32.totalorder %s17, 1
    %p208 = scmp.ne.s32.totalorder %s203, %s205
    %p209 = scmp.eq.s32.totalorder %s17, 0
    %p210 = por %p208, %p209
    %p211 = scmp.ne.s32.totalorder %s203, %s205
    %p212 = scmp.eq.s32.totalorder %s22, 1
    %p213 = por %p211, %p212
    %p214 = scmp.ne.s32.totalorder %s205, %s206
    %p215 = scmp.eq.s32.totalorder %s22, 0
    %p216 = por %p214, %p215
    %p217 = scmp.ne.s32.totalorder %s205, %s206
    %p218 = scmp.eq.s32.totalorder %s23, 1
    %p219 = por %p217, %p218
    %p221 = scmp.ne.s32.totalorder %s206, %s220
    %p222 = scmp.eq.s32.totalorder %s23, 0
    %p223 = por %p221, %p222
    %s225 = sadd.s32 %s224, 1
    %p228 = scmp.eq.s32.totalorder %s17, 1
    %p229 = scmp.ne.s32.totalorder %s224, %s226
    %p230 = scmp.eq.s32.totalorder %s17, 0
    %p231 = por %p229, %p230
    %p232 = scmp.ne.s32.totalorder %s224, %s226
    %p233 = scmp.eq.s32.totalorder %s22, 1
    %p234 = por %p232, %p233
    %p235 = scmp.ne.s32.totalorder %s226, %s227
    %p236 = scmp.eq.s32.totalorder %s22, 0
    %p237 = por %p235, %p236
    %p238 = scmp.ne.s32.totalorder %s226, %s227
    %p239 = scmp.eq.s32.totalorder %s23, 1
    %p240 = por %p238, %p239
    %p242 = scmp.ne.s32.totalorder %s227, %s241
    %p243 = scmp.eq.s32.totalorder %s23, 0
    %p244 = por %p242, %p243
    %s246 = sadd.s32 %s245, 1
    %p249 = scmp.eq.s32.totalorder %s17, 1
    %p250 = scmp.ne.s32.totalorder %s245, %s247
    %p251 = scmp.eq.s32.totalorder %s17, 0
    %p252 = por %p250, %p251
    %p253 = scmp.ne.s32.totalorder %s245, %s247
    %p254 = scmp.eq.s32.totalorder %s22, 1
    %p255 = por %p253, %p254
    %p256 = scmp.ne.s32.totalorder %s247, %s248
    %p257 = scmp.eq.s32.totalorder %s22, 0
    %p258 = por %p256, %p257
    %p259 = scmp.ne.s32.totalorder %s247, %s248
    %p260 = scmp.eq.s32.totalorder %s23, 1
    %p261 = por %p259, %p260
    %p263 = scmp.ne.s32.totalorder %s248, %s262
    %p264 = scmp.eq.s32.totalorder %s23, 0
    %p265 = por %p263, %p264
    %s267 = sadd.s32 %s266, 1
    %p270 = scmp.eq.s32.totalorder %s17, 1
    %p271 = scmp.ne.s32.totalorder %s266, %s268
    %p272 = scmp.eq.s32.totalorder %s17, 0
    %p273 = por %p271, %p272
    %p274 = scmp.ne.s32.totalorder %s266, %s268
    %p275 = scmp.eq.s32.totalorder %s22, 1
    %p276 = por %p274, %p275
    %p277 = scmp.ne.s32.totalorder %s268, %s269
    %p278 = scmp.eq.s32.totalorder %s22, 0
    %p279 = por %p277, %p278
    %p280 = scmp.ne.s32.totalorder %s268, %s269
    %p281 = scmp.eq.s32.totalorder %s23, 1
    %p282 = por %p280, %p281
    %p284 = scmp.ne.s32.totalorder %s269, %s283
    %p285 = scmp.eq.s32.totalorder %s23, 0
    %p286 = por %p284, %p285
    %s287 = ssub.s32 %s24, %s36
    %s288 = ssub.s32 %s25, %s32
    %s289 = sor.u32 %s287, %s288
    %p290 = scmp.eq.s32.totalorder %s289, 0
    %s292 = sadd.s32 %s291, 1
    %s293 = scalar_select %p290, %s291, %s292
    %p296 = pneg %p290
    %p297 = scmp.eq.s32.totalorder %s17, 1
    %p298 = por %p296, %p297
    %p299 = scmp.ne.s32.totalorder %s291, %s294
    %p300 = scmp.eq.s32.totalorder %s17, 0
    %p301 = por %p299, %p300
    %p302 = scmp.ne.s32.totalorder %s291, %s294
    %p303 = scmp.eq.s32.totalorder %s22, 1
    %p304 = por %p302, %p303
    %p305 = scmp.ne.s32.totalorder %s294, %s295
    %p306 = scmp.eq.s32.totalorder %s22, 0
    %p307 = por %p305, %p306
    %p308 = scmp.ne.s32.totalorder %s294, %s295
    %p309 = scmp.eq.s32.totalorder %s23, 1
    %p310 = por %p308, %p309
    %p312 = scmp.ne.s32.totalorder %s295, %s311
    %p313 = scmp.eq.s32.totalorder %s23, 0
    %p314 = por %p312, %p313
    %p315 = scmp.le.s32.totalorder 1, %s17
    %p316 = scmp.lt.s32.totalorder %s17, 3
    %p317 = pnand %p315, %p316
    %p318 = pneg %p317
    // Predicated region
    $region9: #{run.6} parent=5 // pred_check
      _
    $region10: #{run.6} parent=5 // pred_check_branch
      %320 = sbr.rel (%p317) target = $region12
    $region11: #{run.6} parent=5 // pred_region
      %s321 = ssub.s32 %s17, 1
      // Predicated region
      $region13: #{run.6} parent=11 // pred_check
        %p322 = pneg %p132
      $region14: #{run.6} parent=11 // pred_check_branch
        %324 = sbr.rel (%p322) target = $region16
      $region15: #{run.6} parent=11 // pred_region
        _
      $region16: #{run.6} parent=11 // pred_fallthru
        _
      // Predicated region
      $region17: #{run.6} parent=11 // pred_check
        %p325 = pneg %p153
      $region18: #{run.6} parent=11 // pred_check_branch
        %327 = sbr.rel (%p325) target = $region20
      $region19: #{run.6} parent=11 // pred_region
        _
      $region20: #{run.6} parent=11 // pred_fallthru
        _
      // Predicated region
      $region21: #{run.6} parent=11 // pred_check
        %p328 = pneg %p174
      $region22: #{run.6} parent=11 // pred_check_branch
        %330 = sbr.rel (%p328) target = $region24
      $region23: #{run.6} parent=11 // pred_region
        _
      $region24: #{run.6} parent=11 // pred_fallthru
        _
      // Predicated region
      $region25: #{run.6} parent=11 // pred_check
        %p331 = pneg %p195
      $region26: #{run.6} parent=11 // pred_check_branch
        %333 = sbr.rel (%p331) target = $region28
      $region27: #{run.6} parent=11 // pred_region
        _
      $region28: #{run.6} parent=11 // pred_fallthru
        _
      // Predicated region
      $region29: #{run.6} parent=11 // pred_check
        %p334 = pneg %p216
      $region30: #{run.6} parent=11 // pred_check_branch
        %336 = sbr.rel (%p334) target = $region32
      $region31: #{run.6} parent=11 // pred_region
        _
      $region32: #{run.6} parent=11 // pred_fallthru
        _
      // Predicated region
      $region33: #{run.6} parent=11 // pred_check
        %p337 = pneg %p237
      $region34: #{run.6} parent=11 // pred_check_branch
        %339 = sbr.rel (%p337) target = $region36
      $region35: #{run.6} parent=11 // pred_region
        _
      $region36: #{run.6} parent=11 // pred_fallthru
        _
      // Predicated region
      $region37: #{run.6} parent=11 // pred_check
        %p340 = pneg %p258
      $region38: #{run.6} parent=11 // pred_check_branch
        %342 = sbr.rel (%p340) target = $region40
      $region39: #{run.6} parent=11 // pred_region
        _
      $region40: #{run.6} parent=11 // pred_fallthru
        _
      // Predicated region
      $region41: #{run.6} parent=11 // pred_check
        %p343 = pneg %p279
      $region42: #{run.6} parent=11 // pred_check_branch
        %345 = sbr.rel (%p343) target = $region44
      $region43: #{run.6} parent=11 // pred_region
        _
      $region44: #{run.6} parent=11 // pred_fallthru
        _
    $region12: #{run.6} parent=5 // pred_fallthru
      _
    %p346 = scmp.lt.s32.totalorder %s17, 2
    // Predicated region
    $region45: #{run.6} parent=5 // pred_check
      %p347 = pneg %p346
    $region46: #{run.6} parent=5 // pred_check_branch
      %349 = sbr.rel (%p347) target = $region48
    $region47: #{run.6} parent=5 // pred_region
      // Predicated region
      $region49: #{run.6} parent=47 // pred_check
        %p350 = pneg %p51
      $region50: #{run.6} parent=47 // pred_check_branch
        %352 = sbr.rel (%p350) target = $region52
      $region51: #{run.6} parent=47 // pred_region
        %p353 = scmp.lt.s32.totalorder %s24, 1
        %s354 = scalar_select %p353, %s24, 1
        %p355 = scmp.lt.s32.totalorder %s25, 0
        %s356 = scalar_select %p355, %s25, 0
        %s357 = sadd.s32 %s356, %s354
        %s358 = smul.addr %s357, 4
        %s359 = scalar_lea.vmem %s0, %s358
      $region52: #{run.6} parent=47 // pred_fallthru
        _
      // Predicated region
      $region53: #{run.6} parent=47 // pred_check
        %p360 = pneg %p77
      $region54: #{run.6} parent=47 // pred_check_branch
        %362 = sbr.rel (%p360) target = $region56
      $region55: #{run.6} parent=47 // pred_region
        %p363 = scmp.lt.s32.totalorder %s24, 1
        %s364 = scalar_select %p363, %s24, 1
        %s365 = smul.addr %s364, 4
        %s366 = scalar_lea.vmem %s1, %s365
      $region56: #{run.6} parent=47 // pred_fallthru
        _
      // Predicated region
      $region57: #{run.6} parent=47 // pred_check
        %p367 = pneg %p105
      $region58: #{run.6} parent=47 // pred_check_branch
        %369 = sbr.rel (%p367) target = $region60
      $region59: #{run.6} parent=47 // pred_region
        %p370 = scmp.lt.s32.totalorder %s24, 1
        %s371 = scalar_select %p370, %s24, 1
        %p372 = scmp.lt.s32.totalorder %s25, 0
        %s373 = scalar_select %p372, %s25, 0
        %s374 = sadd.s32 %s373, %s371
        %s375 = smul.addr %s374, 2
        %s376 = scalar_lea.vmem %s2, %s375
      $region60: #{run.6} parent=47 // pred_fallthru
        _
    $region48: #{run.6} parent=5 // pred_fallthru
      _
    %p377 = scmp.le.s32.totalorder 1, %s17
    %p378 = scmp.lt.s32.totalorder %s17, 3
    %p379 = pnand %p377, %p378
    %p380 = pneg %p379
    // Predicated region
    $region61: #{run.6} parent=5 // pred_check
      _
    $region62: #{run.6} parent=5 // pred_check_branch
      %382 = sbr.rel (%p379) target = $region64
    $region63: #{run.6} parent=5 // pred_region
      %s383 = ssub.s32 %s17, 1
      %p384 = scmp.lt.s32.totalorder %s26, 1
      %s385 = scalar_select %p384, %s26, 1
      %p386 = scmp.lt.s32.totalorder %s27, 0
      %s387 = scalar_select %p386, %s27, 0
      %s388 = sadd.s32 %s387, %s385
      %s389 = smul.addr %s388, 4
      %s390 = scalar_lea.vmem %s0, %s389
      %p391 = pneg %p57
      %p392 = pneg %p54
      %p393 = scmp.lt.s32.totalorder %s26, 1
      %s394 = scalar_select %p393, %s26, 1
      %s395 = smul.addr %s394, 4
      %s396 = scalar_lea.vmem %s1, %s395
      %p397 = pneg %p83
      %p398 = pneg %p80
      %p399 = scmp.lt.s32.totalorder %s26, 1
      %s400 = scalar_select %p399, %s26, 1
      %p401 = scmp.lt.s32.totalorder %s27, 0
      %s402 = scalar_select %p401, %s27, 0
      %s403 = sadd.s32 %s402, %s400
      %s404 = smul.addr %s403, 2
      %s405 = scalar_lea.vmem %s2, %s404
      %p406 = pneg %p111
      %p407 = pneg %p108
      %p408 = pneg %p132
      %p409 = pneg %p129
      %p410 = pneg %p153
      %p411 = pneg %p150
      %p412 = pneg %p174
      %p413 = pneg %p171
      %p414 = pneg %p195
      %p415 = pneg %p192
      %p416 = pneg %p216
      %p417 = pneg %p213
      %p418 = pneg %p237
      %p419 = pneg %p234
      %p420 = pneg %p258
      %p421 = pneg %p255
      %p422 = pneg %p279
      %p423 = pneg %p276
      %p424 = pneg %p307
      %p425 = pneg %p304
      %p426 = scmp.lt.s32.totalorder %s26, 1
      %s427 = scalar_select %p426, %s26, 1
      %p428 = scmp.lt.s32.totalorder %s27, 0
      %s429 = scalar_select %p428, %s27, 0
      %s430 = sadd.s32 %s429, %s427
      %s431 = smul.addr %s430, 4
      %s432 = scalar_lea.vmem %s11, %s431
      %p433 = scmp.lt.s32.totalorder %s26, 1
      %s434 = scalar_select %p433, %s26, 1
      %p435 = scmp.lt.s32.totalorder %s27, 0
      %s436 = scalar_select %p435, %s27, 0
      %s437 = sadd.s32 %s436, %s434
      %s438 = smul.addr %s437, 4
      %s439 = scalar_lea.vmem %s0, %s438
      %p440 = scmp.lt.s32.totalorder %s26, 1
      %s441 = scalar_select %p440, %s26, 1
      %s442 = smul.addr %s441, 4
      %s443 = scalar_lea.vmem %s1, %s442
      %p444 = scmp.lt.s32.totalorder %s26, 1
      %s445 = scalar_select %p444, %s26, 1
      %p446 = scmp.lt.s32.totalorder %s27, 0
      %s447 = scalar_select %p446, %s27, 0
      %s448 = sadd.s32 %s447, %s445
      %s449 = smul.addr %s448, 2
      %s450 = scalar_lea.vmem %s2, %s449
      %p451 = scmp.lt.s32.totalorder %s26, 1
      %s452 = scalar_select %p451, %s26, 1
      %p453 = scmp.lt.s32.totalorder %s27, 0
      %s454 = scalar_select %p453, %s27, 0
      %s455 = sadd.s32 %s454, %s452
      %s456 = smul.addr %s455, 4
      %s457 = scalar_lea.vmem %s11, %s456
      %v459 = vld [vmem:[%s450] sm:$0x3]
      %v460 = vunpack.c.0.s8 %v459
      %v461 = vcvt.s32.f32 %v460
      %vm462 = vcmp.ne.f32.partialorder %v461, 0.0
      %v463 = vld [vmem:[%s439] sm:$0xf]
      %v464 = vld [vmem:[%s443] sm:$0xf]
      %v465 = vld [vmem:[%s3] sm:$0xf]
      %v466 = vld [vmem:[%s3 + $0x4] sm:$0xf]
      %v467 = vld [vmem:[%s3 + $0x8] sm:$0xf]
      %v468 = vld [vmem:[%s3 + $0xc] sm:$0xf]
      %v469 = vld [vmem:[%s4] sm:$0x1]
      %v470 = vld [vmem:[%s5] sm:$0xf]
      %v471 = vld [vmem:[%s5 + $0x4] sm:$0xf]
      %v472 = vld [vmem:[%s5 + $0x8] sm:$0xf]
      %v473 = vld [vmem:[%s5 + $0xc] sm:$0xf]
      %v474 = vld [vmem:[%s6] sm:$0x1]
      %v475 = vld [vmem:[%s7] sm:$0xf]
      %v476 = vld [vmem:[%s7 + $0x4] sm:$0xf]
      %v477 = vld [vmem:[%s7 + $0x8] sm:$0xf]
      %v478 = vld [vmem:[%s7 + $0xc] sm:$0xf]
      %v479 = vld [vmem:[%s8] sm:$0x1]
      %v480 = vld [vmem:[%s9] sm:$0x1]
      %v481 = vld [vmem:[%s10] sm:$0x1]
      %v483 = vlaneseq
      %v484 = vshrl.u32 %v483, 7
      %v485 = vsub.s32 0, %v484
      %v486 = vrot.slane %v469, %v485
      %v492 = vunpack.c.l.b16 %v465
      %v493 = vunpack.c.l.b16 %v466
      %v494 = vunpack.c.l.b16 %v467
      %v495 = vunpack.c.l.b16 %v468
      %v496 = vpack.c.b16 %v493, %v492
      %v497 = vpack.c.b16 %v495, %v494
      %vm500 = vcmask 261120
      %v502 = vsel %vm500, %v463, 0
      %504 = vmatprep.subr.bf16.mxu0 0
      %505 = vmatpush1.bf16.msra.mxu0 %v496
      %506 = vmatprep.subr.bf16.mxu0 0
      %507 = vmatpush1.bf16.msra.mxu0 %v497
      %508 = vmatprep.subr.bf16.mxu0 0
      %509 = vmatpush1.bf16.msra.mxu0 0
      %510 = vmatprep.subr.bf16.mxu0 0
      %511 = vmatpush1.bf16.msra.mxu0 0
      %512 = vmatprep.subr.bf16.mxu0 0
      %513 = vmatpush1.bf16.msra.mxu0 0
      %514 = vmatprep.subr.bf16.mxu0 0
      %515 = vmatpush1.bf16.msra.mxu0 0
      %516 = vmatprep.subr.bf16.mxu0 0
      %517 = vmatpush1.bf16.msra.mxu0 0
      %518 = vmatprep.subr.bf16.mxu0 0
      %519 = vmatpush1.bf16.msra.mxu0 0
      %520 = vmatprep.subr.bf16.mxu0 0
      %521 = vmatpush1.bf16.msra.mxu0 0
      %522 = vmatprep.subr.bf16.mxu0 0
      %523 = vmatpush1.bf16.msra.mxu0 0
      %524 = vmatprep.subr.bf16.mxu0 0
      %525 = vmatpush1.bf16.msra.mxu0 0
      %526 = vmatprep.subr.bf16.mxu0 0
      %527 = vmatpush1.bf16.msra.mxu0 0
      %528 = vmatprep.subr.bf16.mxu0 0
      %529 = vmatpush1.bf16.msra.mxu0 0
      %530 = vmatprep.subr.bf16.mxu0 0
      %531 = vmatpush1.bf16.msra.mxu0 0
      %532 = vmatprep.subr.bf16.mxu0 0
      %533 = vmatpush1.bf16.msra.mxu0 0
      %534 = vmatprep.subr.bf16.mxu0 0
      %535 = vmatpush1.bf16.msra.mxu0 0
      %536 = vmatprep.mubr.bf16.mxu0 0
      %537 = vmatmul.mubr.bf16.gmra.mrb[0].mxu0 %v502
      %v538 = vpop.f32.mrb[0].mxu0
      %v539 = vadd.f32 %v486, %v538
      %v540 = vpop.f32.mrb[0].mxu0
      %v541 = vpop.f32.mrb[0].mxu0
      %v542 = vpop.f32.mrb[0].mxu0
      %543 = vdwg.mxu0
      %v545 = vlaneseq
      %v546 = vshrl.u32 %v545, 7
      %v547 = vsub.s32 0, %v546
      %v548 = vrot.slane %v474, %v547
      %v554 = vunpack.c.l.b16 %v470
      %v555 = vunpack.c.l.b16 %v471
      %v556 = vunpack.c.l.b16 %v472
      %v557 = vunpack.c.l.b16 %v473
      %v558 = vpack.c.b16 %v555, %v554
      %v559 = vpack.c.b16 %v557, %v556
      %v563 = vsel %vm500, %v464, 0
      %565 = vmatprep.subr.bf16.mxu0 0
      %566 = vmatpush1.bf16.msra.mxu0 %v558
      %567 = vmatprep.subr.bf16.mxu0 0
      %568 = vmatpush1.bf16.msra.mxu0 %v559
      %569 = vmatprep.subr.bf16.mxu0 0
      %570 = vmatpush1.bf16.msra.mxu0 0
      %571 = vmatprep.subr.bf16.mxu0 0
      %572 = vmatpush1.bf16.msra.mxu0 0
      %573 = vmatprep.subr.bf16.mxu0 0
      %574 = vmatpush1.bf16.msra.mxu0 0
      %575 = vmatprep.subr.bf16.mxu0 0
      %576 = vmatpush1.bf16.msra.mxu0 0
      %577 = vmatprep.subr.bf16.mxu0 0
      %578 = vmatpush1.bf16.msra.mxu0 0
      %579 = vmatprep.subr.bf16.mxu0 0
      %580 = vmatpush1.bf16.msra.mxu0 0
      %581 = vmatprep.subr.bf16.mxu0 0
      %582 = vmatpush1.bf16.msra.mxu0 0
      %583 = vmatprep.subr.bf16.mxu0 0
      %584 = vmatpush1.bf16.msra.mxu0 0
      %585 = vmatprep.subr.bf16.mxu0 0
      %586 = vmatpush1.bf16.msra.mxu0 0
      %587 = vmatprep.subr.bf16.mxu0 0
      %588 = vmatpush1.bf16.msra.mxu0 0
      %589 = vmatprep.subr.bf16.mxu0 0
      %590 = vmatpush1.bf16.msra.mxu0 0
      %591 = vmatprep.subr.bf16.mxu0 0
      %592 = vmatpush1.bf16.msra.mxu0 0
      %593 = vmatprep.subr.bf16.mxu0 0
      %594 = vmatpush1.bf16.msra.mxu0 0
      %595 = vmatprep.subr.bf16.mxu0 0
      %596 = vmatpush1.bf16.msra.mxu0 0
      %597 = vmatprep.mubr.bf16.mxu0 0
      %598 = vmatmul.mubr.bf16.gmra.mrb[0].mxu0 %v563
      %v599 = vpop.f32.mrb[0].mxu0
      %v600 = vadd.f32 %v548, %v599
      %v601 = vpop.f32.mrb[0].mxu0
      %v602 = vpop.f32.mrb[0].mxu0
      %v603 = vpop.f32.mrb[0].mxu0
      %604 = vdwg.mxu0
      %v605 = vpack.c.bf16 %v539, %v539
      %v606 = vpack.c.bf16 %v600, %v600
      %vm607 = vcmask 64512
      %v609 = vsel %vm607, %v605, 0
      %v612 = vsel %vm607, %v606, 0
      %614 = vmatprep.subr.bf16.mxu0 0
      %615 = vmatpush1.bf16.xpose.msra.mxu0 %v612
      %616 = vmatprep.subr.bf16.mxu0 0
      %617 = vmatpush1.bf16.xpose.msra.mxu0 0
      %618 = vmatprep.subr.bf16.mxu0 0
      %619 = vmatpush1.bf16.xpose.msra.mxu0 0
      %620 = vmatprep.subr.bf16.mxu0 0
      %621 = vmatpush1.bf16.xpose.msra.mxu0 0
      %622 = vmatprep.subr.bf16.mxu0 0
      %623 = vmatpush1.bf16.xpose.msra.mxu0 0
      %624 = vmatprep.subr.bf16.mxu0 0
      %625 = vmatpush1.bf16.xpose.msra.mxu0 0
      %626 = vmatprep.subr.bf16.mxu0 0
      %627 = vmatpush1.bf16.xpose.msra.mxu0 0
      %628 = vmatprep.subr.bf16.mxu0 0
      %629 = vmatpush1.bf16.xpose.msra.mxu0 0
      %630 = vmatprep.subr.bf16.mxu0 0
      %631 = vmatpush1.bf16.xpose.msra.mxu0 0
      %632 = vmatprep.subr.bf16.mxu0 0
      %633 = vmatpush1.bf16.xpose.msra.mxu0 0
      %634 = vmatprep.subr.bf16.mxu0 0
      %635 = vmatpush1.bf16.xpose.msra.mxu0 0
      %636 = vmatprep.subr.bf16.mxu0 0
      %637 = vmatpush1.bf16.xpose.msra.mxu0 0
      %638 = vmatprep.subr.bf16.mxu0 0
      %639 = vmatpush1.bf16.xpose.msra.mxu0 0
      %640 = vmatprep.subr.bf16.mxu0 0
      %641 = vmatpush1.bf16.xpose.msra.mxu0 0
      %642 = vmatprep.subr.bf16.mxu0 0
      %643 = vmatpush1.bf16.xpose.msra.mxu0 0
      %644 = vmatprep.subr.bf16.mxu0 0
      %645 = vmatpush1.bf16.xpose.msra.mxu0 0
      %646 = vmatprep.mubr.bf16.mxu0 0
      %647 = vmatmul.mubr.bf16.gmra.mrb[0].mxu0 %v609
      %v648 = vpop.f32.mrb[0].mxu0
      %v649 = vadd.f32 0.0, %v648
      %v650 = vpop.f32.mrb[0].mxu0
      %v651 = vpop.f32.mrb[0].mxu0
      %v652 = vpop.f32.mrb[0].mxu0
      %653 = vdwg.mxu0
      %v654 = vmul.f32 %v649, 0.35355338
      %v655 = vsel %vm462, %v654, -1e+09
      %v656 = vsel %vm607, %v655, -inf
      %657 = vmax.xlane.f32.xlu0 %v656
      %v658 = vpop.xlane.xlu0 %657
      %v659 = vsub.f32 %v655, %v658
      %v660 = vmul.f32 %v659, 1.442695
      %v661 = vpow.pop %v660
      %v662 = vsel %vm607, %v661, 0.0
      %663 = vadd.xlane.f32.xlu0 %v662
      %v664 = vpop.xlane.xlu0 %663
      %v665 = vrcp.pop %v664
      %v666 = vmul.f32 %v661, %v665
      %v667 = vpack.c.bf16 %v666, %v666
      %669 = vrot.lane.b32.xlu0 %v606, 96
      %v670 = vpop.permute.xlu0 %669
      %v672 = vsel %vm607, %v667, 0
      %vm674 = vcmask 1043456
      %v676 = vsel %vm674, %v670, 0
      %678 = vmatprep.subr.bf16.mxu0 0
      %679 = vmatpush1.bf16.msra.mxu0 %v676
      %680 = vmatprep.subr.bf16.mxu0 0
      %681 = vmatpush1.bf16.msra.mxu0 0
      %682 = vmatprep.subr.bf16.mxu0 0
      %683 = vmatpush1.bf16.msra.mxu0 0
      %684 = vmatprep.subr.bf16.mxu0 0
      %685 = vmatpush1.bf16.msra.mxu0 0
      %686 = vmatprep.subr.bf16.mxu0 0
      %687 = vmatpush1.bf16.msra.mxu0 0
      %688 = vmatprep.subr.bf16.mxu0 0
      %689 = vmatpush1.bf16.msra.mxu0 0
      %690 = vmatprep.subr.bf16.mxu0 0
      %691 = vmatpush1.bf16.msra.mxu0 0
      %692 = vmatprep.subr.bf16.mxu0 0
      %693 = vmatpush1.bf16.msra.mxu0 0
      %694 = vmatprep.subr.bf16.mxu0 0
      %695 = vmatpush1.bf16.msra.mxu0 0
      %696 = vmatprep.subr.bf16.mxu0 0
      %697 = vmatpush1.bf16.msra.mxu0 0
      %698 = vmatprep.subr.bf16.mxu0 0
      %699 = vmatpush1.bf16.msra.mxu0 0
      %700 = vmatprep.subr.bf16.mxu0 0
      %701 = vmatpush1.bf16.msra.mxu0 0
      %702 = vmatprep.subr.bf16.mxu0 0
      %703 = vmatpush1.bf16.msra.mxu0 0
      %704 = vmatprep.subr.bf16.mxu0 0
      %705 = vmatpush1.bf16.msra.mxu0 0
      %706 = vmatprep.subr.bf16.mxu0 0
      %707 = vmatpush1.bf16.msra.mxu0 0
      %708 = vmatprep.subr.bf16.mxu0 0
      %709 = vmatpush1.bf16.msra.mxu0 0
      %710 = vmatprep.mubr.bf16.mxu0 0
      %711 = vmatmul.mubr.bf16.gmra.mrb[0].mxu0 %v672
      %v712 = vpop.f32.mrb[0].mxu0
      %v713 = vadd.f32 0.0, %v712
      %v714 = vpop.f32.mrb[0].mxu0
      %v715 = vpop.f32.mrb[0].mxu0
      %v716 = vpop.f32.mrb[0].mxu0
      %717 = vdwg.mxu0
      %719 = vrot.lane.b32.xlu0 %v605, 120
      %v720 = vpop.permute.xlu0 %719
      %721 = vrot.lane.b32.xlu0 %v606, 120
      %v722 = vpop.permute.xlu0 %721
      %v724 = vsel %vm607, %v720, 0
      %v727 = vsel %vm607, %v722, 0
      %729 = vmatprep.subr.bf16.mxu0 0
      %730 = vmatpush1.bf16.xpose.msra.mxu0 %v727
      %731 = vmatprep.subr.bf16.mxu0 0
      %732 = vmatpush1.bf16.xpose.msra.mxu0 0
      %733 = vmatprep.subr.bf16.mxu0 0
      %734 = vmatpush1.bf16.xpose.msra.mxu0 0
      %735 = vmatprep.subr.bf16.mxu0 0
      %736 = vmatpush1.bf16.xpose.msra.mxu0 0
      %737 = vmatprep.subr.bf16.mxu0 0
      %738 = vmatpush1.bf16.xpose.msra.mxu0 0
      %739 = vmatprep.subr.bf16.mxu0 0
      %740 = vmatpush1.bf16.xpose.msra.mxu0 0
      %741 = vmatprep.subr.bf16.mxu0 0
      %742 = vmatpush1.bf16.xpose.msra.mxu0 0
      %743 = vmatprep.subr.bf16.mxu0 0
      %744 = vmatpush1.bf16.xpose.msra.mxu0 0
      %745 = vmatprep.subr.bf16.mxu0 0
      %746 = vmatpush1.bf16.xpose.msra.mxu0 0
      %747 = vmatprep.subr.bf16.mxu0 0
      %748 = vmatpush1.bf16.xpose.msra.mxu0 0
      %749 = vmatprep.subr.bf16.mxu0 0
      %750 = vmatpush1.bf16.xpose.msra.mxu0 0
      %751 = vmatprep.subr.bf16.mxu0 0
      %752 = vmatpush1.bf16.xpose.msra.mxu0 0
      %753 = vmatprep.subr.bf16.mxu0 0
      %754 = vmatpush1.bf16.xpose.msra.mxu0 0
      %755 = vmatprep.subr.bf16.mxu0 0
      %756 = vmatpush1.bf16.xpose.msra.mxu0 0
      %757 = vmatprep.subr.bf16.mxu0 0
      %758 = vmatpush1.bf16.xpose.msra.mxu0 0
      %759 = vmatprep.subr.bf16.mxu0 0
      %760 = vmatpush1.bf16.xpose.msra.mxu0 0
      %761 = vmatprep.mubr.bf16.mxu0 0
      %762 = vmatmul.mubr.bf16.gmra.mrb[0].mxu0 %v724
      %v763 = vpop.f32.mrb[0].mxu0
      %v764 = vadd.f32 0.0, %v763
      %v765 = vpop.f32.mrb[0].mxu0
      %v766 = vpop.f32.mrb[0].mxu0
      %v767 = vpop.f32.mrb[0].mxu0
      %768 = vdwg.mxu0
      %v769 = vmul.f32 %v764, 0.35355338
      %v770 = vsel %vm462, %v769, -1e+09
      %v771 = vsel %vm607, %v770, -inf
      %772 = vmax.xlane.f32.xlu0 %v771
      %v773 = vpop.xlane.xlu0 %772
      %v774 = vsub.f32 %v770, %v773
      %v775 = vmul.f32 %v774, 1.442695
      %v776 = vpow.pop %v775
      %v777 = vsel %vm607, %v776, 0.0
      %778 = vadd.xlane.f32.xlu0 %v777
      %v779 = vpop.xlane.xlu0 %778
      %v780 = vrcp.pop %v779
      %v781 = vmul.f32 %v776, %v780
      %v782 = vpack.c.bf16 %v781, %v781
      %783 = vrot.lane.b32.xlu0 %v606, 88
      %v784 = vpop.permute.xlu0 %783
      %v786 = vsel %vm607, %v782, 0
      %v789 = vsel %vm674, %v784, 0
      %791 = vmatprep.subr.bf16.mxu0 0
      %792 = vmatpush1.bf16.msra.mxu0 %v789
      %793 = vmatprep.subr.bf16.mxu0 0
      %794 = vmatpush1.bf16.msra.mxu0 0
      %795 = vmatprep.subr.bf16.mxu0 0
      %796 = vmatpush1.bf16.msra.mxu0 0
      %797 = vmatprep.subr.bf16.mxu0 0
      %798 = vmatpush1.bf16.msra.mxu0 0
      %799 = vmatprep.subr.bf16.mxu0 0
      %800 = vmatpush1.bf16.msra.mxu0 0
      %801 = vmatprep.subr.bf16.mxu0 0
      %802 = vmatpush1.bf16.msra.mxu0 0
      %803 = vmatprep.subr.bf16.mxu0 0
      %804 = vmatpush1.bf16.msra.mxu0 0
      %805 = vmatprep.subr.bf16.mxu0 0
      %806 = vmatpush1.bf16.msra.mxu0 0
      %807 = vmatprep.subr.bf16.mxu0 0
      %808 = vmatpush1.bf16.msra.mxu0 0
      %809 = vmatprep.subr.bf16.mxu0 0
      %810 = vmatpush1.bf16.msra.mxu0 0
      %811 = vmatprep.subr.bf16.mxu0 0
      %812 = vmatpush1.bf16.msra.mxu0 0
      %813 = vmatprep.subr.bf16.mxu0 0
      %814 = vmatpush1.bf16.msra.mxu0 0
      %815 = vmatprep.subr.bf16.mxu0 0
      %816 = vmatpush1.bf16.msra.mxu0 0
      %817 = vmatprep.subr.bf16.mxu0 0
      %818 = vmatpush1.bf16.msra.mxu0 0
      %819 = vmatprep.subr.bf16.mxu0 0
      %820 = vmatpush1.bf16.msra.mxu0 0
      %821 = vmatprep.subr.bf16.mxu0 0
      %822 = vmatpush1.bf16.msra.mxu0 0
      %823 = vmatprep.mubr.bf16.mxu0 0
      %824 = vmatmul.mubr.bf16.gmra.mrb[0].mxu0 %v786
      %v825 = vpop.f32.mrb[0].mxu0
      %v826 = vadd.f32 0.0, %v825
      %v827 = vpop.f32.mrb[0].mxu0
      %v828 = vpop.f32.mrb[0].mxu0
      %v829 = vpop.f32.mrb[0].mxu0
      %830 = vdwg.mxu0
      %831 = vrot.lane.b32.xlu0 %v605, 112
      %v832 = vpop.permute.xlu0 %831
      %833 = vrot.lane.b32.xlu0 %v606, 112
      %v834 = vpop.permute.xlu0 %833
      %v836 = vsel %vm607, %v832, 0
      %v839 = vsel %vm607, %v834, 0
      %841 = vmatprep.subr.bf16.mxu0 0
      %842 = vmatpush1.bf16.xpose.msra.mxu0 %v839
      %843 = vmatprep.subr.bf16.mxu0 0
      %844 = vmatpush1.bf16.xpose.msra.mxu0 0
      %845 = vmatprep.subr.bf16.mxu0 0
      %846 = vmatpush1.bf16.xpose.msra.mxu0 0
      %847 = vmatprep.subr.bf16.mxu0 0
      %848 = vmatpush1.bf16.xpose.msra.mxu0 0
      %849 = vmatprep.subr.bf16.mxu0 0
      %850 = vmatpush1.bf16.xpose.msra.mxu0 0
      %851 = vmatprep.subr.bf16.mxu0 0
      %852 = vmatpush1.bf16.xpose.msra.mxu0 0
      %853 = vmatprep.subr.bf16.mxu0 0
      %854 = vmatpush1.bf16.xpose.msra.mxu0 0
      %855 = vmatprep.subr.bf16.mxu0 0
      %856 = vmatpush1.bf16.xpose.msra.mxu0 0
      %857 = vmatprep.subr.bf16.mxu0 0
      %858 = vmatpush1.bf16.xpose.msra.mxu0 0
      %859 = vmatprep.subr.bf16.mxu0 0
      %860 = vmatpush1.bf16.xpose.msra.mxu0 0
      %861 = vmatprep.subr.bf16.mxu0 0
      %862 = vmatpush1.bf16.xpose.msra.mxu0 0
      %863 = vmatprep.subr.bf16.mxu0 0
      %864 = vmatpush1.bf16.xpose.msra.mxu0 0
      %865 = vmatprep.subr.bf16.mxu0 0
      %866 = vmatpush1.bf16.xpose.msra.mxu0 0
      %867 = vmatprep.subr.bf16.mxu0 0
      %868 = vmatpush1.bf16.xpose.msra.mxu0 0
      %869 = vmatprep.subr.bf16.mxu0 0
      %870 = vmatpush1.bf16.xpose.msra.mxu0 0
      %871 = vmatprep.subr.bf16.mxu0 0
      %872 = vmatpush1.bf16.xpose.msra.mxu0 0
      %873 = vmatprep.mubr.bf16.mxu0 0
      %874 = vmatmul.mubr.bf16.gmra.mrb[0].mxu0 %v836
      %v875 = vpop.f32.mrb[0].mxu0
      %v876 = vadd.f32 0.0, %v875
      %v877 = vpop.f32.mrb[0].mxu0
      %v878 = vpop.f32.mrb[0].mxu0
      %v879 = vpop.f32.mrb[0].mxu0
      %880 = vdwg.mxu0
      %v881 = vmul.f32 %v876, 0.35355338
      %v882 = vsel %vm462, %v881, -1e+09
      %v883 = vsel %vm607, %v882, -inf
      %884 = vmax.xlane.f32.xlu0 %v883
      %v885 = vpop.xlane.xlu0 %884
      %v886 = vsub.f32 %v882, %v885
      %v887 = vmul.f32 %v886, 1.442695
      %v888 = vpow.pop %v887
      %v889 = vsel %vm607, %v888, 0.0
      %890 = vadd.xlane.f32.xlu0 %v889
      %v891 = vpop.xlane.xlu0 %890
      %v892 = vrcp.pop %v891
      %v893 = vmul.f32 %v888, %v892
      %v894 = vpack.c.bf16 %v893, %v893
      %895 = vrot.lane.b32.xlu0 %v606, 80
      %v896 = vpop.permute.xlu0 %895
      %v898 = vsel %vm607, %v894, 0
      %v901 = vsel %vm674, %v896, 0
      %903 = vmatprep.subr.bf16.mxu0 0
      %904 = vmatpush1.bf16.msra.mxu0 %v901
      %905 = vmatprep.subr.bf16.mxu0 0
      %906 = vmatpush1.bf16.msra.mxu0 0
      %907 = vmatprep.subr.bf16.mxu0 0
      %908 = vmatpush1.bf16.msra.mxu0 0
      %909 = vmatprep.subr.bf16.mxu0 0
      %910 = vmatpush1.bf16.msra.mxu0 0
      %911 = vmatprep.subr.bf16.mxu0 0
      %912 = vmatpush1.bf16.msra.mxu0 0
      %913 = vmatprep.subr.bf16.mxu0 0
      %914 = vmatpush1.bf16.msra.mxu0 0
      %915 = vmatprep.subr.bf16.mxu0 0
      %916 = vmatpush1.bf16.msra.mxu0 0
      %917 = vmatprep.subr.bf16.mxu0 0
      %918 = vmatpush1.bf16.msra.mxu0 0
      %919 = vmatprep.subr.bf16.mxu0 0
      %920 = vmatpush1.bf16.msra.mxu0 0
      %921 = vmatprep.subr.bf16.mxu0 0
      %922 = vmatpush1.bf16.msra.mxu0 0
      %923 = vmatprep.subr.bf16.mxu0 0
      %924 = vmatpush1.bf16.msra.mxu0 0
      %925 = vmatprep.subr.bf16.mxu0 0
      %926 = vmatpush1.bf16.msra.mxu0 0
      %927 = vmatprep.subr.bf16.mxu0 0
      %928 = vmatpush1.bf16.msra.mxu0 0
      %929 = vmatprep.subr.bf16.mxu0 0
      %930 = vmatpush1.bf16.msra.mxu0 0
      %931 = vmatprep.subr.bf16.mxu0 0
      %932 = vmatpush1.bf16.msra.mxu0 0
      %933 = vmatprep.subr.bf16.mxu0 0
      %934 = vmatpush1.bf16.msra.mxu0 0
      %935 = vmatprep.mubr.bf16.mxu0 0
      %936 = vmatmul.mubr.bf16.gmra.mrb[0].mxu0 %v898
      %v937 = vpop.f32.mrb[0].mxu0
      %v938 = vadd.f32 0.0, %v937
      %v939 = vpop.f32.mrb[0].mxu0
      %v940 = vpop.f32.mrb[0].mxu0
      %v941 = vpop.f32.mrb[0].mxu0
      %942 = vdwg.mxu0
      %943 = vrot.lane.b32.xlu0 %v605, 104
      %v944 = vpop.permute.xlu0 %943
      %945 = vrot.lane.b32.xlu0 %v606, 104
      %v946 = vpop.permute.xlu0 %945
      %v948 = vsel %vm607, %v944, 0
      %v951 = vsel %vm607, %v946, 0
      %953 = vmatprep.subr.bf16.mxu0 0
      %954 = vmatpush1.bf16.xpose.msra.mxu0 %v951
      %955 = vmatprep.subr.bf16.mxu0 0
      %956 = vmatpush1.bf16.xpose.msra.mxu0 0
      %957 = vmatprep.subr.bf16.mxu0 0
      %958 = vmatpush1.bf16.xpose.msra.mxu0 0
      %959 = vmatprep.subr.bf16.mxu0 0
      %960 = vmatpush1.bf16.xpose.msra.mxu0 0
      %961 = vmatprep.subr.bf16.mxu0 0
      %962 = vmatpush1.bf16.xpose.msra.mxu0 0
      %963 = vmatprep.subr.bf16.mxu0 0
      %964 = vmatpush1.bf16.xpose.msra.mxu0 0
      %965 = vmatprep.subr.bf16.mxu0 0
      %966 = vmatpush1.bf16.xpose.msra.mxu0 0
      %967 = vmatprep.subr.bf16.mxu0 0
      %968 = vmatpush1.bf16.xpose.msra.mxu0 0
      %969 = vmatprep.subr.bf16.mxu0 0
      %970 = vmatpush1.bf16.xpose.msra.mxu0 0
      %971 = vmatprep.subr.bf16.mxu0 0
      %972 = vmatpush1.bf16.xpose.msra.mxu0 0
      %973 = vmatprep.subr.bf16.mxu0 0
      %974 = vmatpush1.bf16.xpose.msra.mxu0 0
      %975 = vmatprep.subr.bf16.mxu0 0
      %976 = vmatpush1.bf16.xpose.msra.mxu0 0
      %977 = vmatprep.subr.bf16.mxu0 0
      %978 = vmatpush1.bf16.xpose.msra.mxu0 0
      %979 = vmatprep.subr.bf16.mxu0 0
      %980 = vmatpush1.bf16.xpose.msra.mxu0 0
      %981 = vmatprep.subr.bf16.mxu0 0
      %982 = vmatpush1.bf16.xpose.msra.mxu0 0
      %983 = vmatprep.subr.bf16.mxu0 0
      %984 = vmatpush1.bf16.xpose.msra.mxu0 0
      %985 = vmatprep.mubr.bf16.mxu0 0
      %986 = vmatmul.mubr.bf16.gmra.mrb[0].mxu0 %v948
      %v987 = vpop.f32.mrb[0].mxu0
      %v988 = vadd.f32 0.0, %v987
      %v989 = vpop.f32.mrb[0].mxu0
      %v990 = vpop.f32.mrb[0].mxu0
      %v991 = vpop.f32.mrb[0].mxu0
      %992 = vdwg.mxu0
      %v993 = vmul.f32 %v988, 0.35355338
      %v994 = vsel %vm462, %v993, -1e+09
      %v995 = vsel %vm607, %v994, -inf
      %996 = vmax.xlane.f32.xlu0 %v995
      %v997 = vpop.xlane.xlu0 %996
      %v998 = vsub.f32 %v994, %v997
      %v999 = vmul.f32 %v998, 1.442695
      %v1000 = vpow.pop %v999
      %v1001 = vsel %vm607, %v1000, 0.0
      %1002 = vadd.xlane.f32.xlu0 %v1001
      %v1003 = vpop.xlane.xlu0 %1002
      %v1004 = vrcp.pop %v1003
      %v1005 = vmul.f32 %v1000, %v1004
      %v1006 = vpack.c.bf16 %v1005, %v1005
      %1007 = vrot.lane.b32.xlu0 %v606, 72
      %v1008 = vpop.permute.xlu0 %1007
      %v1010 = vsel %vm607, %v1006, 0
      %v1013 = vsel %vm674, %v1008, 0
      %1015 = vmatprep.subr.bf16.mxu0 0
      %1016 = vmatpush1.bf16.msra.mxu0 %v1013
      %1017 = vmatprep.subr.bf16.mxu0 0
      %1018 = vmatpush1.bf16.msra.mxu0 0
      %1019 = vmatprep.subr.bf16.mxu0 0
      %1020 = vmatpush1.bf16.msra.mxu0 0
      %1021 = vmatprep.subr.bf16.mxu0 0
      %1022 = vmatpush1.bf16.msra.mxu0 0
      %1023 = vmatprep.subr.bf16.mxu0 0
      %1024 = vmatpush1.bf16.msra.mxu0 0
      %1025 = vmatprep.subr.bf16.mxu0 0
      %1026 = vmatpush1.bf16.msra.mxu0 0
      %1027 = vmatprep.subr.bf16.mxu0 0
      %1028 = vmatpush1.bf16.msra.mxu0 0
      %1029 = vmatprep.subr.bf16.mxu0 0
      %1030 = vmatpush1.bf16.msra.mxu0 0
      %1031 = vmatprep.subr.bf16.mxu0 0
      %1032 = vmatpush1.bf16.msra.mxu0 0
      %1033 = vmatprep.subr.bf16.mxu0 0
      %1034 = vmatpush1.bf16.msra.mxu0 0
      %1035 = vmatprep.subr.bf16.mxu0 0
      %1036 = vmatpush1.bf16.msra.mxu0 0
      %1037 = vmatprep.subr.bf16.mxu0 0
      %1038 = vmatpush1.bf16.msra.mxu0 0
      %1039 = vmatprep.subr.bf16.mxu0 0
      %1040 = vmatpush1.bf16.msra.mxu0 0
      %1041 = vmatprep.subr.bf16.mxu0 0
      %1042 = vmatpush1.bf16.msra.mxu0 0
      %1043 = vmatprep.subr.bf16.mxu0 0
      %1044 = vmatpush1.bf16.msra.mxu0 0
      %1045 = vmatprep.subr.bf16.mxu0 0
      %1046 = vmatpush1.bf16.msra.mxu0 0
      %1047 = vmatprep.mubr.bf16.mxu0 0
      %1048 = vmatmul.mubr.bf16.gmra.mrb[0].mxu0 %v1010
      %v1049 = vpop.f32.mrb[0].mxu0
      %v1050 = vadd.f32 0.0, %v1049
      %v1051 = vpop.f32.mrb[0].mxu0
      %v1052 = vpop.f32.mrb[0].mxu0
      %v1053 = vpop.f32.mrb[0].mxu0
      %1054 = vdwg.mxu0
      %1056 = vrot.lane.b32.xlu0 %v826, 8
      %v1057 = vpop.permute.xlu0 %1056
      %1060 = vrot.lane.b32.xlu0 %v938, 16
      %v1061 = vpop.permute.xlu0 %1060
      %1064 = vrot.lane.b32.xlu0 %v1050, 24
      %v1065 = vpop.permute.xlu0 %1064
      %v1067 = vsel %vm607, %v713, %v1057
      %vm1068 = vcmask 130048
      %v1069 = vsel %vm1068, %v1067, %v1061
      %vm1070 = vcmask 195584
      %v1071 = vsel %vm1070, %v1069, %v1065
      %v1072 = vpack.c.bf16 %v1071, %v1071
      %v1074 = vlaneseq
      %v1075 = vshrl.u32 %v1074, 7
      %v1076 = vsub.s32 0, %v1075
      %v1077 = vrot.slane %v479, %v1076
      %v1083 = vunpack.c.l.b16 %v475
      %v1084 = vunpack.c.l.b16 %v476
      %v1085 = vunpack.c.l.b16 %v477
      %v1086 = vunpack.c.l.b16 %v478
      %v1087 = vpack.c.b16 %v1084, %v1083
      %v1088 = vpack.c.b16 %v1086, %v1085
      %v1092 = vsel %vm500, %v1072, 0
      %1094 = vmatprep.subr.bf16.mxu0 0
      %1095 = vmatpush1.bf16.msra.mxu0 %v1087
      %1096 = vmatprep.subr.bf16.mxu0 0
      %1097 = vmatpush1.bf16.msra.mxu0 %v1088
      %1098 = vmatprep.subr.bf16.mxu0 0
      %1099 = vmatpush1.bf16.msra.mxu0 0
      %1100 = vmatprep.subr.bf16.mxu0 0
      %1101 = vmatpush1.bf16.msra.mxu0 0
      %1102 = vmatprep.subr.bf16.mxu0 0
      %1103 = vmatpush1.bf16.msra.mxu0 0
      %1104 = vmatprep.subr.bf16.mxu0 0
      %1105 = vmatpush1.bf16.msra.mxu0 0
      %1106 = vmatprep.subr.bf16.mxu0 0
      %1107 = vmatpush1.bf16.msra.mxu0 0
      %1108 = vmatprep.subr.bf16.mxu0 0
      %1109 = vmatpush1.bf16.msra.mxu0 0
      %1110 = vmatprep.subr.bf16.mxu0 0
      %1111 = vmatpush1.bf16.msra.mxu0 0
      %1112 = vmatprep.subr.bf16.mxu0 0
      %1113 = vmatpush1.bf16.msra.mxu0 0
      %1114 = vmatprep.subr.bf16.mxu0 0
      %1115 = vmatpush1.bf16.msra.mxu0 0
      %1116 = vmatprep.subr.bf16.mxu0 0
      %1117 = vmatpush1.bf16.msra.mxu0 0
      %1118 = vmatprep.subr.bf16.mxu0 0
      %1119 = vmatpush1.bf16.msra.mxu0 0
      %1120 = vmatprep.subr.bf16.mxu0 0
      %1121 = vmatpush1.bf16.msra.mxu0 0
      %1122 = vmatprep.subr.bf16.mxu0 0
      %1123 = vmatpush1.bf16.msra.mxu0 0
      %1124 = vmatprep.subr.bf16.mxu0 0
      %1125 = vmatpush1.bf16.msra.mxu0 0
      %1126 = vmatprep.mubr.bf16.mxu0 0
      %1127 = vmatmul.mubr.bf16.gmra.mrb[0].mxu0 %v1092
      %v1128 = vpop.f32.mrb[0].mxu0
      %v1129 = vadd.f32 %v1077, %v1128
      %v1130 = vpop.f32.mrb[0].mxu0
      %v1131 = vpop.f32.mrb[0].mxu0
      %v1132 = vpop.f32.mrb[0].mxu0
      %1133 = vdwg.mxu0
      %v1134 = vunpack.c.l.bf16 %v463
      %v1135 = vadd.f32 %v1129, %v1134
      %v1136 = vsel %vm500, %v1135, 0.0
      %1137 = vadd.xlane.f32.xlu0 %v1136
      %v1138 = vpop.xlane.xlu0 %1137
      %v1139 = vrcp.pop 32.0
      %v1140 = vmul.f32 %v1138, %v1139
      %v1141 = vsub.f32 %v1135, %v1140
      %v1142 = vmul.f32 %v1141, %v1141
      %v1143 = vsel %vm500, %v1142, 0.0
      %1144 = vadd.xlane.f32.xlu0 %v1143
      %v1145 = vpop.xlane.xlu0 %1144
      %v1146 = vmul.f32 %v1145, %v1139
      %v1147 = vadd.f32 %v1146, 1e-06
      %v1148 = vrsqrt.pop %v1147
      %v1149 = vmul.f32 %v1141, %v1148
      %v1151 = vlaneseq
      %v1152 = vshrl.u32 %v1151, 7
      %v1153 = vsub.s32 0, %v1152
      %v1154 = vrot.slane %v480, %v1153
      %v1156 = vmul.f32 %v1149, %v1154
      %v1158 = vlaneseq
      %v1159 = vshrl.u32 %v1158, 7
      %v1160 = vsub.s32 0, %v1159
      %v1161 = vrot.slane %v481, %v1160
      %v1163 = vadd.f32 %v1156, %v1161
      %v1164 = vpack.c.bf16 %v1163, %v1163
      %vm1165 = vcmask 257024
      %1166 = vst.msk [vmem:[%s457] sm:$0xf] %vm1165, %v1164
      %p1167 = scmp.lt.s32.totalorder %s26, 1
      %s1168 = scalar_select %p1167, %s26, 1
      %p1169 = scmp.lt.s32.totalorder %s27, 0
      %s1170 = scalar_select %p1169, %s27, 0
      %s1171 = sadd.s32 %s1170, %s1168
      %s1172 = smul.addr %s1171, 4
      %s1173 = scalar_lea.vmem %s11, %s1172
      // Predicated region
      $region65: #{run.6} parent=63 // pred_check
        %p1174 = pneg %p304
      $region66: #{run.6} parent=63 // pred_check_branch
        %1176 = sbr.rel (%p1174) target = $region68
      $region67: #{run.6} parent=63 // pred_region
        _
      $region68: #{run.6} parent=63 // pred_fallthru
        _
    $region64: #{run.6} parent=5 // pred_fallthru
      _
    %p1177 = scmp.le.s32.totalorder 2, %s17
    // Predicated region
    $region69: #{run.6} parent=5 // pred_check
      %p1178 = pneg %p1177
    $region70: #{run.6} parent=5 // pred_check_branch
      %1180 = sbr.rel (%p1178) target = $region72
    $region71: #{run.6} parent=5 // pred_region
      %s1181 = ssub.s32 %s17, 2
      // Predicated region
      $region73: #{run.6} parent=71 // pred_check
        %p1182 = pneg %p310
      $region74: #{run.6} parent=71 // pred_check_branch
        %1184 = sbr.rel (%p1182) target = $region76
      $region75: #{run.6} parent=71 // pred_region
        %p1185 = scmp.lt.s32.totalorder %s28, 1
        %s1186 = scalar_select %p1185, %s28, 1
        %p1187 = scmp.lt.s32.totalorder %s29, 0
        %s1188 = scalar_select %p1187, %s29, 0
        %s1189 = sadd.s32 %s1188, %s1186
        %s1190 = smul.addr %s1189, 4
        %s1191 = scalar_lea.vmem %s11, %s1190
      $region76: #{run.6} parent=71 // pred_fallthru
        _
    $region72: #{run.6} parent=5 // pred_fallthru
      _
  $region6: #{run.6} parent=0 // loop_footer
    %s21 = sadd.s32 1, %s17
  $region7: #{run.6} parent=0 // loop_footer_branch
    %16 = sbr.rel target = $region3
  $region8: #{run.6} parent=0 // loop_exit
    _

// kernel: run.7
$region0: #{run.7}
  #allocation0 [shape = 'u32[]', space=smem, size = 0x4, offset = 0x4, fixed_abs, tag = 'smem constant byte address 0x4 - core index']
  #allocation1 [shape = 'u32[144,128]{1,0:T(1,128)}', space=vmem, size = 0x12000, scoped, tag = 'internal scratch']
  %s0 = inlined_call_operand.vmem [shape: bf16[2,8,32], index: 0, kind: input, shape index: {}]
  %s1 = inlined_call_operand.vmem [shape: bf16[2,8,32], index: 1, kind: input, shape index: {}]
  %s2 = inlined_call_operand.vmem [shape: s8[2,8,8], index: 2, kind: input, shape index: {}]
  %s3 = inlined_call_operand.vmem [shape: bf16[32,32], index: 3, kind: input, shape index: {}]
  %s4 = inlined_call_operand.vmem [shape: f32[1,32], index: 4, kind: input, shape index: {}]
  %s5 = inlined_call_operand.vmem [shape: bf16[32,64], index: 5, kind: input, shape index: {}]
  %s6 = inlined_call_operand.vmem [shape: f32[1,64], index: 6, kind: input, shape index: {}]
  %s7 = inlined_call_operand.vmem [shape: bf16[32,32], index: 7, kind: input, shape index: {}]
  %s8 = inlined_call_operand.vmem [shape: f32[1,32], index: 8, kind: input, shape index: {}]
  %s9 = inlined_call_operand.vmem [shape: f32[1,32], index: 9, kind: input, shape index: {}]
  %s10 = inlined_call_operand.vmem [shape: f32[1,32], index: 10, kind: input, shape index: {}]
  %s11 = inlined_call_operand.vmem [shape: bf16[32,64], index: 11, kind: input, shape index: {}]
  %s12 = inlined_call_operand.vmem [shape: f32[1,64], index: 12, kind: input, shape index: {}]
  %s13 = inlined_call_operand.vmem [shape: bf16[64,32], index: 13, kind: input, shape index: {}]
  %s14 = inlined_call_operand.vmem [shape: f32[1,32], index: 14, kind: input, shape index: {}]
  %s15 = inlined_call_operand.vmem [shape: f32[1,32], index: 15, kind: input, shape index: {}]
  %s16 = inlined_call_operand.vmem [shape: f32[1,32], index: 16, kind: input, shape index: {}]
  %s17 = inlined_call_operand.vmem [shape: bf16[2,8,32], index: 17, kind: output, shape index: {}]
  %s18 = sld [smem:[#allocation0]]
  $region101: #{run.7} parent=0
    _
  %s20 = ssub.s32 1, %s18
  %s21 = scalar_select 0, %s20, %s18
  loop: start=0, step=1, limit=4
  $region2: #{run.7} parent=0 // loop_pre_header
    _
  $region3: #{run.7} parent=0 // loop_header
    %s23 = sphi 0, %s27
    %p24 = scmp.ge.s32.totalorder %s23, 4
    %s30 = sphi 0, %s42
    %s31 = sphi 0, %s38
    %s32 = sphi 0, %s30
    %s33 = sphi 0, %s31
    %s34 = sphi 0, %s32
    %s35 = sphi 0, %s33
    %s47 = sphi 0, %s49
    %s50 = sphi 0, %s47
    %s51 = sphi 0, %s50
    %s67 = sphi 0, %s51
    %s73 = sphi 0, %s75
    %s76 = sphi 0, %s73
    %s77 = sphi 0, %s76
    %s93 = sphi 0, %s77
    %s101 = sphi 0, %s103
    %s104 = sphi 0, %s101
    %s105 = sphi 0, %s104
    %s121 = sphi 0, %s105
    %s125 = sphi 0, %s125
    %s127 = sphi 0, %s125
    %s128 = sphi 0, %s127
    %s142 = sphi 0, %s128
    %s146 = sphi 0, %s146
    %s148 = sphi 0, %s146
    %s149 = sphi 0, %s148
    %s163 = sphi 0, %s149
    %s167 = sphi 0, %s167
    %s169 = sphi 0, %s167
    %s170 = sphi 0, %s169
    %s184 = sphi 0, %s170
    %s188 = sphi 0, %s188
    %s190 = sphi 0, %s188
    %s191 = sphi 0, %s190
    %s205 = sphi 0, %s191
    %s209 = sphi 0, %s209
    %s211 = sphi 0, %s209
    %s212 = sphi 0, %s211
    %s226 = sphi 0, %s212
    %s230 = sphi 0, %s230
    %s232 = sphi 0, %s230
    %s233 = sphi 0, %s232
    %s247 = sphi 0, %s233
    %s251 = sphi 0, %s251
    %s253 = sphi 0, %s251
    %s254 = sphi 0, %s253
    %s268 = sphi 0, %s254
    %s272 = sphi 0, %s272
    %s274 = sphi 0, %s272
    %s275 = sphi 0, %s274
    %s289 = sphi 0, %s275
    %s293 = sphi 0, %s293
    %s295 = sphi 0, %s293
    %s296 = sphi 0, %s295
    %s310 = sphi 0, %s296
    %s314 = sphi 0, %s314
    %s316 = sphi 0, %s314
    %s317 = sphi 0, %s316
    %s331 = sphi 0, %s317
    %s335 = sphi 0, %s335
    %s337 = sphi 0, %s335
    %s338 = sphi 0, %s337
    %s352 = sphi 0, %s338
    %s356 = sphi 0, %s356
    %s358 = sphi 0, %s356
    %s359 = sphi 0, %s358
    %s373 = sphi 0, %s359
    %s377 = sphi 0, %s377
    %s379 = sphi 0, %s377
    %s380 = sphi 0, %s379
    %s394 = sphi 0, %s380
    %s398 = sphi 0, %s398
    %s400 = sphi 0, %s398
    %s401 = sphi 0, %s400
    %s415 = sphi 0, %s401
    %s423 = sphi 0, %s425
    %s426 = sphi 0, %s423
    %s427 = sphi 0, %s426
    %s443 = sphi 0, %s427
  $region4: #{run.7} parent=0 // loop_header_branch
    %26 = sbr.rel (%p24) target = $region8
  $region5: #{run.7} parent=0 // loop_body
    %s28 = ssub.s32 %s23, 1
    %s29 = ssub.s32 %s23, 2
    %s36 = sadd.s32 1, %s31
    %p37 = scmp.ge.s32.totalorder %s36, 1
    %s38 = scalar_select %p37, 0, %s36
    %s39 = sadd.s32 1, %s30
    %s40 = scalar_select %p37, %s39, %s30
    %p41 = scmp.ge.s32.totalorder %s40, 2
    %s42 = scalar_select %p41, 0, %s40
    %s43 = ssub.s32 %s30, %s42
    %s44 = ssub.s32 %s31, %s38
    %s45 = sor.u32 %s43, %s44
    %p46 = scmp.eq.s32.totalorder %s45, 0
    %s48 = sadd.s32 %s47, 1
    %s49 = scalar_select %p46, %s47, %s48
    %p52 = pneg %p46
    %p53 = scmp.eq.s32.totalorder %s23, 1
    %p54 = por %p52, %p53
    %p55 = scmp.ne.s32.totalorder %s47, %s50
    %p56 = scmp.eq.s32.totalorder %s23, 0
    %p57 = por %p55, %p56
    %p58 = scmp.ne.s32.totalorder %s47, %s50
    %p59 = scmp.eq.s32.totalorder %s28, 1
    %p60 = por %p58, %p59
    %p61 = scmp.ne.s32.totalorder %s50, %s51
    %p62 = scmp.eq.s32.totalorder %s28, 0
    %p63 = por %p61, %p62
    %p64 = scmp.ne.s32.totalorder %s50, %s51
    %p65 = scmp.eq.s32.totalorder %s29, 1
    %p66 = por %p64, %p65
    %p68 = scmp.ne.s32.totalorder %s51, %s67
    %p69 = scmp.eq.s32.totalorder %s29, 0
    %p70 = por %p68, %p69
    %s71 = ssub.s32 %s30, %s42
    %p72 = scmp.eq.s32.totalorder %s71, 0
    %s74 = sadd.s32 %s73, 1
    %s75 = scalar_select %p72, %s73, %s74
    %p78 = pneg %p72
    %p79 = scmp.eq.s32.totalorder %s23, 1
    %p80 = por %p78, %p79
    %p81 = scmp.ne.s32.totalorder %s73, %s76
    %p82 = scmp.eq.s32.totalorder %s23, 0
    %p83 = por %p81, %p82
    %p84 = scmp.ne.s32.totalorder %s73, %s76
    %p85 = scmp.eq.s32.totalorder %s28, 1
    %p86 = por %p84, %p85
    %p87 = scmp.ne.s32.totalorder %s76, %s77
    %p88 = scmp.eq.s32.totalorder %s28, 0
    %p89 = por %p87, %p88
    %p90 = scmp.ne.s32.totalorder %s76, %s77
    %p91 = scmp.eq.s32.totalorder %s29, 1
    %p92 = por %p90, %p91
    %p94 = scmp.ne.s32.totalorder %s77, %s93
    %p95 = scmp.eq.s32.totalorder %s29, 0
    %p96 = por %p94, %p95
    %s97 = ssub.s32 %s30, %s42
    %s98 = ssub.s32 %s31, %s38
    %s99 = sor.u32 %s97, %s98
    %p100 = scmp.eq.s32.totalorder %s99, 0
    %s102 = sadd.s32 %s101, 1
    %s103 = scalar_select %p100, %s101, %s102
    %p106 = pneg %p100
    %p107 = scmp.eq.s32.totalorder %s23, 1
    %p108 = por %p106, %p107
    %p109 = scmp.ne.s32.totalorder %s101, %s104
    %p110 = scmp.eq.s32.totalorder %s23, 0
    %p111 = por %p109, %p110
    %p112 = scmp.ne.s32.totalorder %s101, %s104
    %p113 = scmp.eq.s32.totalorder %s28, 1
    %p114 = por %p112, %p113
    %p115 = scmp.ne.s32.totalorder %s104, %s105
    %p116 = scmp.eq.s32.totalorder %s28, 0
    %p117 = por %p115, %p116
    %p118 = scmp.ne.s32.totalorder %s104, %s105
    %p119 = scmp.eq.s32.totalorder %s29, 1
    %p120 = por %p118, %p119
    %p122 = scmp.ne.s32.totalorder %s105, %s121
    %p123 = scmp.eq.s32.totalorder %s29, 0
    %p124 = por %p122, %p123
    %s126 = sadd.s32 %s125, 1
    %p129 = scmp.eq.s32.totalorder %s23, 1
    %p130 = scmp.ne.s32.totalorder %s125, %s127
    %p131 = scmp.eq.s32.totalorder %s23, 0
    %p132 = por %p130, %p131
    %p133 = scmp.ne.s32.totalorder %s125, %s127
    %p134 = scmp.eq.s32.totalorder %s28, 1
    %p135 = por %p133, %p134
    %p136 = scmp.ne.s32.totalorder %s127, %s128
    %p137 = scmp.eq.s32.totalorder %s28, 0
    %p138 = por %p136, %p137
    %p139 = scmp.ne.s32.totalorder %s127, %s128
    %p140 = scmp.eq.s32.totalorder %s29, 1
    %p141 = por %p139, %p140
    %p143 = scmp.ne.s32.totalorder %s128, %s142
    %p144 = scmp.eq.s32.totalorder %s29, 0
    %p145 = por %p143, %p144
    %s147 = sadd.s32 %s146, 1
    %p150 = scmp.eq.s32.totalorder %s23, 1
    %p151 = scmp.ne.s32.totalorder %s146, %s148
    %p152 = scmp.eq.s32.totalorder %s23, 0
    %p153 = por %p151, %p152
    %p154 = scmp.ne.s32.totalorder %s146, %s148
    %p155 = scmp.eq.s32.totalorder %s28, 1
    %p156 = por %p154, %p155
    %p157 = scmp.ne.s32.totalorder %s148, %s149
    %p158 = scmp.eq.s32.totalorder %s28, 0
    %p159 = por %p157, %p158
    %p160 = scmp.ne.s32.totalorder %s148, %s149
    %p161 = scmp.eq.s32.totalorder %s29, 1
    %p162 = por %p160, %p161
    %p164 = scmp.ne.s32.totalorder %s149, %s163
    %p165 = scmp.eq.s32.totalorder %s29, 0
    %p166 = por %p164, %p165
    %s168 = sadd.s32 %s167, 1
    %p171 = scmp.eq.s32.totalorder %s23, 1
    %p172 = scmp.ne.s32.totalorder %s167, %s169
    %p173 = scmp.eq.s32.totalorder %s23, 0
    %p174 = por %p172, %p173
    %p175 = scmp.ne.s32.totalorder %s167, %s169
    %p176 = scmp.eq.s32.totalorder %s28, 1
    %p177 = por %p175, %p176
    %p178 = scmp.ne.s32.totalorder %s169, %s170
    %p179 = scmp.eq.s32.totalorder %s28, 0
    %p180 = por %p178, %p179
    %p181 = scmp.ne.s32.totalorder %s169, %s170
    %p182 = scmp.eq.s32.totalorder %s29, 1
    %p183 = por %p181, %p182
    %p185 = scmp.ne.s32.totalorder %s170, %s184
    %p186 = scmp.eq.s32.totalorder %s29, 0
    %p187 = por %p185, %p186
    %s189 = sadd.s32 %s188, 1
    %p192 = scmp.eq.s32.totalorder %s23, 1
    %p193 = scmp.ne.s32.totalorder %s188, %s190
    %p194 = scmp.eq.s32.totalorder %s23, 0
    %p195 = por %p193, %p194
    %p196 = scmp.ne.s32.totalorder %s188, %s190
    %p197 = scmp.eq.s32.totalorder %s28, 1
    %p198 = por %p196, %p197
    %p199 = scmp.ne.s32.totalorder %s190, %s191
    %p200 = scmp.eq.s32.totalorder %s28, 0
    %p201 = por %p199, %p200
    %p202 = scmp.ne.s32.totalorder %s190, %s191
    %p203 = scmp.eq.s32.totalorder %s29, 1
    %p204 = por %p202, %p203
    %p206 = scmp.ne.s32.totalorder %s191, %s205
    %p207 = scmp.eq.s32.totalorder %s29, 0
    %p208 = por %p206, %p207
    %s210 = sadd.s32 %s209, 1
    %p213 = scmp.eq.s32.totalorder %s23, 1
    %p214 = scmp.ne.s32.totalorder %s209, %s211
    %p215 = scmp.eq.s32.totalorder %s23, 0
    %p216 = por %p214, %p215
    %p217 = scmp.ne.s32.totalorder %s209, %s211
    %p218 = scmp.eq.s32.totalorder %s28, 1
    %p219 = por %p217, %p218
    %p220 = scmp.ne.s32.totalorder %s211, %s212
    %p221 = scmp.eq.s32.totalorder %s28, 0
    %p222 = por %p220, %p221
    %p223 = scmp.ne.s32.totalorder %s211, %s212
    %p224 = scmp.eq.s32.totalorder %s29, 1
    %p225 = por %p223, %p224
    %p227 = scmp.ne.s32.totalorder %s212, %s226
    %p228 = scmp.eq.s32.totalorder %s29, 0
    %p229 = por %p227, %p228
    %s231 = sadd.s32 %s230, 1
    %p234 = scmp.eq.s32.totalorder %s23, 1
    %p235 = scmp.ne.s32.totalorder %s230, %s232
    %p236 = scmp.eq.s32.totalorder %s23, 0
    %p237 = por %p235, %p236
    %p238 = scmp.ne.s32.totalorder %s230, %s232
    %p239 = scmp.eq.s32.totalorder %s28, 1
    %p240 = por %p238, %p239
    %p241 = scmp.ne.s32.totalorder %s232, %s233
    %p242 = scmp.eq.s32.totalorder %s28, 0
    %p243 = por %p241, %p242
    %p244 = scmp.ne.s32.totalorder %s232, %s233
    %p245 = scmp.eq.s32.totalorder %s29, 1
    %p246 = por %p244, %p245
    %p248 = scmp.ne.s32.totalorder %s233, %s247
    %p249 = scmp.eq.s32.totalorder %s29, 0
    %p250 = por %p248, %p249
    %s252 = sadd.s32 %s251, 1
    %p255 = scmp.eq.s32.totalorder %s23, 1
    %p256 = scmp.ne.s32.totalorder %s251, %s253
    %p257 = scmp.eq.s32.totalorder %s23, 0
    %p258 = por %p256, %p257
    %p259 = scmp.ne.s32.totalorder %s251, %s253
    %p260 = scmp.eq.s32.totalorder %s28, 1
    %p261 = por %p259, %p260
    %p262 = scmp.ne.s32.totalorder %s253, %s254
    %p263 = scmp.eq.s32.totalorder %s28, 0
    %p264 = por %p262, %p263
    %p265 = scmp.ne.s32.totalorder %s253, %s254
    %p266 = scmp.eq.s32.totalorder %s29, 1
    %p267 = por %p265, %p266
    %p269 = scmp.ne.s32.totalorder %s254, %s268
    %p270 = scmp.eq.s32.totalorder %s29, 0
    %p271 = por %p269, %p270
    %s273 = sadd.s32 %s272, 1
    %p276 = scmp.eq.s32.totalorder %s23, 1
    %p277 = scmp.ne.s32.totalorder %s272, %s274
    %p278 = scmp.eq.s32.totalorder %s23, 0
    %p279 = por %p277, %p278
    %p280 = scmp.ne.s32.totalorder %s272, %s274
    %p281 = scmp.eq.s32.totalorder %s28, 1
    %p282 = por %p280, %p281
    %p283 = scmp.ne.s32.totalorder %s274, %s275
    %p284 = scmp.eq.s32.totalorder %s28, 0
    %p285 = por %p283, %p284
    %p286 = scmp.ne.s32.totalorder %s274, %s275
    %p287 = scmp.eq.s32.totalorder %s29, 1
    %p288 = por %p286, %p287
    %p290 = scmp.ne.s32.totalorder %s275, %s289
    %p291 = scmp.eq.s32.totalorder %s29, 0
    %p292 = por %p290, %p291
    %s294 = sadd.s32 %s293, 1
    %p297 = scmp.eq.s32.totalorder %s23, 1
    %p298 = scmp.ne.s32.totalorder %s293, %s295
    %p299 = scmp.eq.s32.totalorder %s23, 0
    %p300 = por %p298, %p299
    %p301 = scmp.ne.s32.totalorder %s293, %s295
    %p302 = scmp.eq.s32.totalorder %s28, 1
    %p303 = por %p301, %p302
    %p304 = scmp.ne.s32.totalorder %s295, %s296
    %p305 = scmp.eq.s32.totalorder %s28, 0
    %p306 = por %p304, %p305
    %p307 = scmp.ne.s32.totalorder %s295, %s296
    %p308 = scmp.eq.s32.totalorder %s29, 1
    %p309 = por %p307, %p308
    %p311 = scmp.ne.s32.totalorder %s296, %s310
    %p312 = scmp.eq.s32.totalorder %s29, 0
    %p313 = por %p311, %p312
    %s315 = sadd.s32 %s314, 1
    %p318 = scmp.eq.s32.totalorder %s23, 1
    %p319 = scmp.ne.s32.totalorder %s314, %s316
    %p320 = scmp.eq.s32.totalorder %s23, 0
    %p321 = por %p319, %p320
    %p322 = scmp.ne.s32.totalorder %s314, %s316
    %p323 = scmp.eq.s32.totalorder %s28, 1
    %p324 = por %p322, %p323
    %p325 = scmp.ne.s32.totalorder %s316, %s317
    %p326 = scmp.eq.s32.totalorder %s28, 0
    %p327 = por %p325, %p326
    %p328 = scmp.ne.s32.totalorder %s316, %s317
    %p329 = scmp.eq.s32.totalorder %s29, 1
    %p330 = por %p328, %p329
    %p332 = scmp.ne.s32.totalorder %s317, %s331
    %p333 = scmp.eq.s32.totalorder %s29, 0
    %p334 = por %p332, %p333
    %s336 = sadd.s32 %s335, 1
    %p339 = scmp.eq.s32.totalorder %s23, 1
    %p340 = scmp.ne.s32.totalorder %s335, %s337
    %p341 = scmp.eq.s32.totalorder %s23, 0
    %p342 = por %p340, %p341
    %p343 = scmp.ne.s32.totalorder %s335, %s337
    %p344 = scmp.eq.s32.totalorder %s28, 1
    %p345 = por %p343, %p344
    %p346 = scmp.ne.s32.totalorder %s337, %s338
    %p347 = scmp.eq.s32.totalorder %s28, 0
    %p348 = por %p346, %p347
    %p349 = scmp.ne.s32.totalorder %s337, %s338
    %p350 = scmp.eq.s32.totalorder %s29, 1
    %p351 = por %p349, %p350
    %p353 = scmp.ne.s32.totalorder %s338, %s352
    %p354 = scmp.eq.s32.totalorder %s29, 0
    %p355 = por %p353, %p354
    %s357 = sadd.s32 %s356, 1
    %p360 = scmp.eq.s32.totalorder %s23, 1
    %p361 = scmp.ne.s32.totalorder %s356, %s358
    %p362 = scmp.eq.s32.totalorder %s23, 0
    %p363 = por %p361, %p362
    %p364 = scmp.ne.s32.totalorder %s356, %s358
    %p365 = scmp.eq.s32.totalorder %s28, 1
    %p366 = por %p364, %p365
    %p367 = scmp.ne.s32.totalorder %s358, %s359
    %p368 = scmp.eq.s32.totalorder %s28, 0
    %p369 = por %p367, %p368
    %p370 = scmp.ne.s32.totalorder %s358, %s359
    %p371 = scmp.eq.s32.totalorder %s29, 1
    %p372 = por %p370, %p371
    %p374 = scmp.ne.s32.totalorder %s359, %s373
    %p375 = scmp.eq.s32.totalorder %s29, 0
    %p376 = por %p374, %p375
    %s378 = sadd.s32 %s377, 1
    %p381 = scmp.eq.s32.totalorder %s23, 1
    %p382 = scmp.ne.s32.totalorder %s377, %s379
    %p383 = scmp.eq.s32.totalorder %s23, 0
    %p384 = por %p382, %p383
    %p385 = scmp.ne.s32.totalorder %s377, %s379
    %p386 = scmp.eq.s32.totalorder %s28, 1
    %p387 = por %p385, %p386
    %p388 = scmp.ne.s32.totalorder %s379, %s380
    %p389 = scmp.eq.s32.totalorder %s28, 0
    %p390 = por %p388, %p389
    %p391 = scmp.ne.s32.totalorder %s379, %s380
    %p392 = scmp.eq.s32.totalorder %s29, 1
    %p393 = por %p391, %p392
    %p395 = scmp.ne.s32.totalorder %s380, %s394
    %p396 = scmp.eq.s32.totalorder %s29, 0
    %p397 = por %p395, %p396
    %s399 = sadd.s32 %s398, 1
    %p402 = scmp.eq.s32.totalorder %s23, 1
    %p403 = scmp.ne.s32.totalorder %s398, %s400
    %p404 = scmp.eq.s32.totalorder %s23, 0
    %p405 = por %p403, %p404
    %p406 = scmp.ne.s32.totalorder %s398, %s400
    %p407 = scmp.eq.s32.totalorder %s28, 1
    %p408 = por %p406, %p407
    %p409 = scmp.ne.s32.totalorder %s400, %s401
    %p410 = scmp.eq.s32.totalorder %s28, 0
    %p411 = por %p409, %p410
    %p412 = scmp.ne.s32.totalorder %s400, %s401
    %p413 = scmp.eq.s32.totalorder %s29, 1
    %p414 = por %p412, %p413
    %p416 = scmp.ne.s32.totalorder %s401, %s415
    %p417 = scmp.eq.s32.totalorder %s29, 0
    %p418 = por %p416, %p417
    %s419 = ssub.s32 %s30, %s42
    %s420 = ssub.s32 %s31, %s38
    %s421 = sor.u32 %s419, %s420
    %p422 = scmp.eq.s32.totalorder %s421, 0
    %s424 = sadd.s32 %s423, 1
    %s425 = scalar_select %p422, %s423, %s424
    %p428 = pneg %p422
    %p429 = scmp.eq.s32.totalorder %s23, 1
    %p430 = por %p428, %p429
    %p431 = scmp.ne.s32.totalorder %s423, %s426
    %p432 = scmp.eq.s32.totalorder %s23, 0
    %p433 = por %p431, %p432
    %p434 = scmp.ne.s32.totalorder %s423, %s426
    %p435 = scmp.eq.s32.totalorder %s28, 1
    %p436 = por %p434, %p435
    %p437 = scmp.ne.s32.totalorder %s426, %s427
    %p438 = scmp.eq.s32.totalorder %s28, 0
    %p439 = por %p437, %p438
    %p440 = scmp.ne.s32.totalorder %s426, %s427
    %p441 = scmp.eq.s32.totalorder %s29, 1
    %p442 = por %p440, %p441
    %p444 = scmp.ne.s32.totalorder %s427, %s443
    %p445 = scmp.eq.s32.totalorder %s29, 0
    %p446 = por %p444, %p445
    %p447 = scmp.le.s32.totalorder 1, %s23
    %p448 = scmp.lt.s32.totalorder %s23, 3
    %p449 = pnand %p447, %p448
    %p450 = pneg %p449
    // Predicated region
    $region9: #{run.7} parent=5 // pred_check
      _
    $region10: #{run.7} parent=5 // pred_check_branch
      %452 = sbr.rel (%p449) target = $region12
    $region11: #{run.7} parent=5 // pred_region
      %s453 = ssub.s32 %s23, 1
      // Predicated region
      $region13: #{run.7} parent=11 // pred_check
        %p454 = pneg %p138
      $region14: #{run.7} parent=11 // pred_check_branch
        %456 = sbr.rel (%p454) target = $region16
      $region15: #{run.7} parent=11 // pred_region
        _
      $region16: #{run.7} parent=11 // pred_fallthru
        _
      // Predicated region
      $region17: #{run.7} parent=11 // pred_check
        %p457 = pneg %p159
      $region18: #{run.7} parent=11 // pred_check_branch
        %459 = sbr.rel (%p457) target = $region20
      $region19: #{run.7} parent=11 // pred_region
        _
      $region20: #{run.7} parent=11 // pred_fallthru
        _
      // Predicated region
      $region21: #{run.7} parent=11 // pred_check
        %p460 = pneg %p180
      $region22: #{run.7} parent=11 // pred_check_branch
        %462 = sbr.rel (%p460) target = $region24
      $region23: #{run.7} parent=11 // pred_region
        _
      $region24: #{run.7} parent=11 // pred_fallthru
        _
      // Predicated region
      $region25: #{run.7} parent=11 // pred_check
        %p463 = pneg %p201
      $region26: #{run.7} parent=11 // pred_check_branch
        %465 = sbr.rel (%p463) target = $region28
      $region27: #{run.7} parent=11 // pred_region
        _
      $region28: #{run.7} parent=11 // pred_fallthru
        _
      // Predicated region
      $region29: #{run.7} parent=11 // pred_check
        %p466 = pneg %p222
      $region30: #{run.7} parent=11 // pred_check_branch
        %468 = sbr.rel (%p466) target = $region32
      $region31: #{run.7} parent=11 // pred_region
        _
      $region32: #{run.7} parent=11 // pred_fallthru
        _
      // Predicated region
      $region33: #{run.7} parent=11 // pred_check
        %p469 = pneg %p243
      $region34: #{run.7} parent=11 // pred_check_branch
        %471 = sbr.rel (%p469) target = $region36
      $region35: #{run.7} parent=11 // pred_region
        _
      $region36: #{run.7} parent=11 // pred_fallthru
        _
      // Predicated region
      $region37: #{run.7} parent=11 // pred_check
        %p472 = pneg %p264
      $region38: #{run.7} parent=11 // pred_check_branch
        %474 = sbr.rel (%p472) target = $region40
      $region39: #{run.7} parent=11 // pred_region
        _
      $region40: #{run.7} parent=11 // pred_fallthru
        _
      // Predicated region
      $region41: #{run.7} parent=11 // pred_check
        %p475 = pneg %p285
      $region42: #{run.7} parent=11 // pred_check_branch
        %477 = sbr.rel (%p475) target = $region44
      $region43: #{run.7} parent=11 // pred_region
        _
      $region44: #{run.7} parent=11 // pred_fallthru
        _
      // Predicated region
      $region45: #{run.7} parent=11 // pred_check
        %p478 = pneg %p306
      $region46: #{run.7} parent=11 // pred_check_branch
        %480 = sbr.rel (%p478) target = $region48
      $region47: #{run.7} parent=11 // pred_region
        _
      $region48: #{run.7} parent=11 // pred_fallthru
        _
      // Predicated region
      $region49: #{run.7} parent=11 // pred_check
        %p481 = pneg %p327
      $region50: #{run.7} parent=11 // pred_check_branch
        %483 = sbr.rel (%p481) target = $region52
      $region51: #{run.7} parent=11 // pred_region
        _
      $region52: #{run.7} parent=11 // pred_fallthru
        _
      // Predicated region
      $region53: #{run.7} parent=11 // pred_check
        %p484 = pneg %p348
      $region54: #{run.7} parent=11 // pred_check_branch
        %486 = sbr.rel (%p484) target = $region56
      $region55: #{run.7} parent=11 // pred_region
        _
      $region56: #{run.7} parent=11 // pred_fallthru
        _
      // Predicated region
      $region57: #{run.7} parent=11 // pred_check
        %p487 = pneg %p369
      $region58: #{run.7} parent=11 // pred_check_branch
        %489 = sbr.rel (%p487) target = $region60
      $region59: #{run.7} parent=11 // pred_region
        _
      $region60: #{run.7} parent=11 // pred_fallthru
        _
      // Predicated region
      $region61: #{run.7} parent=11 // pred_check
        %p490 = pneg %p390
      $region62: #{run.7} parent=11 // pred_check_branch
        %492 = sbr.rel (%p490) target = $region64
      $region63: #{run.7} parent=11 // pred_region
        _
      $region64: #{run.7} parent=11 // pred_fallthru
        _
      // Predicated region
      $region65: #{run.7} parent=11 // pred_check
        %p493 = pneg %p411
      $region66: #{run.7} parent=11 // pred_check_branch
        %495 = sbr.rel (%p493) target = $region68
      $region67: #{run.7} parent=11 // pred_region
        _
      $region68: #{run.7} parent=11 // pred_fallthru
        _
    $region12: #{run.7} parent=5 // pred_fallthru
      _
    %p496 = scmp.lt.s32.totalorder %s23, 2
    // Predicated region
    $region69: #{run.7} parent=5 // pred_check
      %p497 = pneg %p496
    $region70: #{run.7} parent=5 // pred_check_branch
      %499 = sbr.rel (%p497) target = $region72
    $region71: #{run.7} parent=5 // pred_region
      // Predicated region
      $region73: #{run.7} parent=71 // pred_check
        %p500 = pneg %p57
      $region74: #{run.7} parent=71 // pred_check_branch
        %502 = sbr.rel (%p500) target = $region76
      $region75: #{run.7} parent=71 // pred_region
        %p503 = scmp.lt.s32.totalorder %s30, 1
        %s504 = scalar_select %p503, %s30, 1
        %p505 = scmp.lt.s32.totalorder %s31, 0
        %s506 = scalar_select %p505, %s31, 0
        %s507 = sadd.s32 %s506, %s504
        %s508 = smul.addr %s507, 4
        %s509 = scalar_lea.vmem %s0, %s508
      $region76: #{run.7} parent=71 // pred_fallthru
        _
      // Predicated region
      $region77: #{run.7} parent=71 // pred_check
        %p510 = pneg %p83
      $region78: #{run.7} parent=71 // pred_check_branch
        %512 = sbr.rel (%p510) target = $region80
      $region79: #{run.7} parent=71 // pred_region
        %p513 = scmp.lt.s32.totalorder %s30, 1
        %s514 = scalar_select %p513, %s30, 1
        %s515 = smul.addr %s514, 4
        %s516 = scalar_lea.vmem %s1, %s515
      $region80: #{run.7} parent=71 // pred_fallthru
        _
      // Predicated region
      $region81: #{run.7} parent=71 // pred_check
        %p517 = pneg %p111
      $region82: #{run.7} parent=71 // pred_check_branch
        %519 = sbr.rel (%p517) target = $region84
      $region83: #{run.7} parent=71 // pred_region
        %p520 = scmp.lt.s32.totalorder %s30, 1
        %s521 = scalar_select %p520, %s30, 1
        %p522 = scmp.lt.s32.totalorder %s31, 0
        %s523 = scalar_select %p522, %s31, 0
        %s524 = sadd.s32 %s523, %s521
        %s525 = smul.addr %s524, 2
        %s526 = scalar_lea.vmem %s2, %s525
      $region84: #{run.7} parent=71 // pred_fallthru
        _
    $region72: #{run.7} parent=5 // pred_fallthru
      _
    %p527 = scmp.le.s32.totalorder 1, %s23
    %p528 = scmp.lt.s32.totalorder %s23, 3
    %p529 = pnand %p527, %p528
    %p530 = pneg %p529
    // Predicated region
    $region85: #{run.7} parent=5 // pred_check
      _
    $region86: #{run.7} parent=5 // pred_check_branch
      %532 = sbr.rel (%p529) target = $region88
    $region87: #{run.7} parent=5 // pred_region
      %s533 = ssub.s32 %s23, 1
      %p534 = scmp.lt.s32.totalorder %s32, 1
      %s535 = scalar_select %p534, %s32, 1
      %p536 = scmp.lt.s32.totalorder %s33, 0
      %s537 = scalar_select %p536, %s33, 0
      %s538 = sadd.s32 %s537, %s535
      %s539 = smul.addr %s538, 4
      %s540 = scalar_lea.vmem %s0, %s539
      %p541 = pneg %p63
      %p542 = pneg %p60
      %p543 = scmp.lt.s32.totalorder %s32, 1
      %s544 = scalar_select %p543, %s32, 1
      %s545 = smul.addr %s544, 4
      %s546 = scalar_lea.vmem %s1, %s545
      %p547 = pneg %p89
      %p548 = pneg %p86
      %p549 = scmp.lt.s32.totalorder %s32, 1
      %s550 = scalar_select %p549, %s32, 1
      %p551 = scmp.lt.s32.totalorder %s33, 0
      %s552 = scalar_select %p551, %s33, 0
      %s553 = sadd.s32 %s552, %s550
      %s554 = smul.addr %s553, 2
      %s555 = scalar_lea.vmem %s2, %s554
      %p556 = pneg %p117
      %p557 = pneg %p114
      %p558 = pneg %p138
      %p559 = pneg %p135
      %p560 = pneg %p159
      %p561 = pneg %p156
      %p562 = pneg %p180
      %p563 = pneg %p177
      %p564 = pneg %p201
      %p565 = pneg %p198
      %p566 = pneg %p222
      %p567 = pneg %p219
      %p568 = pneg %p243
      %p569 = pneg %p240
      %p570 = pneg %p264
      %p571 = pneg %p261
      %p572 = pneg %p285
      %p573 = pneg %p282
      %p574 = pneg %p306
      %p575 = pneg %p303
      %p576 = pneg %p327
      %p577 = pneg %p324
      %p578 = pneg %p348
      %p579 = pneg %p345
      %p580 = pneg %p369
      %p581 = pneg %p366
      %p582 = pneg %p390
      %p583 = pneg %p387
      %p584 = pneg %p411
      %p585 = pneg %p408
      %p586 = pneg %p439
      %p587 = pneg %p436
      %p588 = scmp.lt.s32.totalorder %s32, 1
      %s589 = scalar_select %p588, %s32, 1
      %p590 = scmp.lt.s32.totalorder %s33, 0
      %s591 = scalar_select %p590, %s33, 0
      %s592 = sadd.s32 %s591, %s589
      %s593 = smul.addr %s592, 4
      %s594 = scalar_lea.vmem %s17, %s593
      %p595 = scmp.lt.s32.totalorder %s32, 1
      %s596 = scalar_select %p595, %s32, 1
      %p597 = scmp.lt.s32.totalorder %s33, 0
      %s598 = scalar_select %p597, %s33, 0
      %s599 = sadd.s32 %s598, %s596
      %s600 = smul.addr %s599, 4
      %s601 = scalar_lea.vmem %s0, %s600
      %p602 = scmp.lt.s32.totalorder %s32, 1
      %s603 = scalar_select %p602, %s32, 1
      %s604 = smul.addr %s603, 4
      %s605 = scalar_lea.vmem %s1, %s604
      %p606 = scmp.lt.s32.totalorder %s32, 1
      %s607 = scalar_select %p606, %s32, 1
      %p608 = scmp.lt.s32.totalorder %s33, 0
      %s609 = scalar_select %p608, %s33, 0
      %s610 = sadd.s32 %s609, %s607
      %s611 = smul.addr %s610, 2
      %s612 = scalar_lea.vmem %s2, %s611
      %p613 = scmp.lt.s32.totalorder %s32, 1
      %s614 = scalar_select %p613, %s32, 1
      %p615 = scmp.lt.s32.totalorder %s33, 0
      %s616 = scalar_select %p615, %s33, 0
      %s617 = sadd.s32 %s616, %s614
      %s618 = smul.addr %s617, 4
      %s619 = scalar_lea.vmem %s17, %s618
      %v621 = vld [vmem:[%s612] sm:$0x3]
      %v622 = vunpack.c.0.s8 %v621
      %v623 = vcvt.s32.f32 %v622
      %vm624 = vcmp.ne.f32.partialorder %v623, 0.0
      %v625 = vld [vmem:[%s601] sm:$0xf]
      %v626 = vld [vmem:[%s605] sm:$0xf]
      %v627 = vld [vmem:[%s3] sm:$0xf]
      %v628 = vld [vmem:[%s3 + $0x4] sm:$0xf]
      %v629 = vld [vmem:[%s3 + $0x8] sm:$0xf]
      %v630 = vld [vmem:[%s3 + $0xc] sm:$0xf]
      %v631 = vld [vmem:[%s4] sm:$0x1]
      %v632 = vld [vmem:[%s5] sm:$0xf]
      %v633 = vld [vmem:[%s5 + $0x4] sm:$0xf]
      %v634 = vld [vmem:[%s5 + $0x8] sm:$0xf]
      %v635 = vld [vmem:[%s5 + $0xc] sm:$0xf]
      %v636 = vld [vmem:[%s6] sm:$0x1]
      %v637 = vld [vmem:[%s7] sm:$0xf]
      %v638 = vld [vmem:[%s7 + $0x4] sm:$0xf]
      %v639 = vld [vmem:[%s7 + $0x8] sm:$0xf]
      %v640 = vld [vmem:[%s7 + $0xc] sm:$0xf]
      %v641 = vld [vmem:[%s8] sm:$0x1]
      %v642 = vld [vmem:[%s9] sm:$0x1]
      %v643 = vld [vmem:[%s10] sm:$0x1]
      %v645 = vlaneseq
      %v646 = vshrl.u32 %v645, 7
      %v647 = vsub.s32 0, %v646
      %v648 = vrot.slane %v631, %v647
      %v654 = vunpack.c.l.b16 %v627
      %v655 = vunpack.c.l.b16 %v628
      %v656 = vunpack.c.l.b16 %v629
      %v657 = vunpack.c.l.b16 %v630
      %v658 = vpack.c.b16 %v655, %v654
      %v659 = vpack.c.b16 %v657, %v656
      %vm662 = vcmask 261120
      %v664 = vsel %vm662, %v625, 0
      %666 = vmatprep.subr.bf16.mxu0 0
      %667 = vmatpush1.bf16.msra.mxu0 %v658
      %668 = vmatprep.subr.bf16.mxu0 0
      %669 = vmatpush1.bf16.msra.mxu0 %v659
      %670 = vmatprep.subr.bf16.mxu0 0
      %671 = vmatpush1.bf16.msra.mxu0 0
      %672 = vmatprep.subr.bf16.mxu0 0
      %673 = vmatpush1.bf16.msra.mxu0 0
      %674 = vmatprep.subr.bf16.mxu0 0
      %675 = vmatpush1.bf16.msra.mxu0 0
      %676 = vmatprep.subr.bf16.mxu0 0
      %677 = vmatpush1.bf16.msra.mxu0 0
      %678 = vmatprep.subr.bf16.mxu0 0
      %679 = vmatpush1.bf16.msra.mxu0 0
      %680 = vmatprep.subr.bf16.mxu0 0
      %681 = vmatpush1.bf16.msra.mxu0 0
      %682 = vmatprep.subr.bf16.mxu0 0
      %683 = vmatpush1.bf16.msra.mxu0 0
      %684 = vmatprep.subr.bf16.mxu0 0
      %685 = vmatpush1.bf16.msra.mxu0 0
      %686 = vmatprep.subr.bf16.mxu0 0
      %687 = vmatpush1.bf16.msra.mxu0 0
      %688 = vmatprep.subr.bf16.mxu0 0
      %689 = vmatpush1.bf16.msra.mxu0 0
      %690 = vmatprep.subr.bf16.mxu0 0
      %691 = vmatpush1.bf16.msra.mxu0 0
      %692 = vmatprep.subr.bf16.mxu0 0
      %693 = vmatpush1.bf16.msra.mxu0 0
      %694 = vmatprep.subr.bf16.mxu0 0
      %695 = vmatpush1.bf16.msra.mxu0 0
      %696 = vmatprep.subr.bf16.mxu0 0
      %697 = vmatpush1.bf16.msra.mxu0 0
      %698 = vmatprep.mubr.bf16.mxu0 0
      %699 = vmatmul.mubr.bf16.gmra.mrb[0].mxu0 %v664
      %v700 = vpop.f32.mrb[0].mxu0
      %v701 = vadd.f32 %v648, %v700
      %v702 = vpop.f32.mrb[0].mxu0
      %v703 = vpop.f32.mrb[0].mxu0
      %v704 = vpop.f32.mrb[0].mxu0
      %705 = vdwg.mxu0
      %v707 = vlaneseq
      %v708 = vshrl.u32 %v707, 7
      %v709 = vsub.s32 0, %v708
      %v710 = vrot.slane %v636, %v709
      %v716 = vunpack.c.l.b16 %v632
      %v717 = vunpack.c.l.b16 %v633
      %v718 = vunpack.c.l.b16 %v634
      %v719 = vunpack.c.l.b16 %v635
      %v720 = vpack.c.b16 %v717, %v716
      %v721 = vpack.c.b16 %v719, %v718
      %v725 = vsel %vm662, %v626, 0
      %727 = vmatprep.subr.bf16.mxu0 0
      %728 = vmatpush1.bf16.msra.mxu0 %v720
      %729 = vmatprep.subr.bf16.mxu0 0
      %730 = vmatpush1.bf16.msra.mxu0 %v721
      %731 = vmatprep.subr.bf16.mxu0 0
      %732 = vmatpush1.bf16.msra.mxu0 0
      %733 = vmatprep.subr.bf16.mxu0 0
      %734 = vmatpush1.bf16.msra.mxu0 0
      %735 = vmatprep.subr.bf16.mxu0 0
      %736 = vmatpush1.bf16.msra.mxu0 0
      %737 = vmatprep.subr.bf16.mxu0 0
      %738 = vmatpush1.bf16.msra.mxu0 0
      %739 = vmatprep.subr.bf16.mxu0 0
      %740 = vmatpush1.bf16.msra.mxu0 0
      %741 = vmatprep.subr.bf16.mxu0 0
      %742 = vmatpush1.bf16.msra.mxu0 0
      %743 = vmatprep.subr.bf16.mxu0 0
      %744 = vmatpush1.bf16.msra.mxu0 0
      %745 = vmatprep.subr.bf16.mxu0 0
      %746 = vmatpush1.bf16.msra.mxu0 0
      %747 = vmatprep.subr.bf16.mxu0 0
      %748 = vmatpush1.bf16.msra.mxu0 0
      %749 = vmatprep.subr.bf16.mxu0 0
      %750 = vmatpush1.bf16.msra.mxu0 0
      %751 = vmatprep.subr.bf16.mxu0 0
      %752 = vmatpush1.bf16.msra.mxu0 0
      %753 = vmatprep.subr.bf16.mxu0 0
      %754 = vmatpush1.bf16.msra.mxu0 0
      %755 = vmatprep.subr.bf16.mxu0 0
      %756 = vmatpush1.bf16.msra.mxu0 0
      %757 = vmatprep.subr.bf16.mxu0 0
      %758 = vmatpush1.bf16.msra.mxu0 0
      %759 = vmatprep.mubr.bf16.mxu0 0
      %760 = vmatmul.mubr.bf16.gmra.mrb[0].mxu0 %v725
      %v761 = vpop.f32.mrb[0].mxu0
      %v762 = vadd.f32 %v710, %v761
      %v763 = vpop.f32.mrb[0].mxu0
      %v764 = vpop.f32.mrb[0].mxu0
      %v765 = vpop.f32.mrb[0].mxu0
      %766 = vdwg.mxu0
      %v767 = vpack.c.bf16 %v701, %v701
      %v768 = vpack.c.bf16 %v762, %v762
      %vm769 = vcmask 64512
      %v771 = vsel %vm769, %v767, 0
      %v774 = vsel %vm769, %v768, 0
      %776 = vmatprep.subr.bf16.mxu0 0
      %777 = vmatpush1.bf16.xpose.msra.mxu0 %v774
      %778 = vmatprep.subr.bf16.mxu0 0
      %779 = vmatpush1.bf16.xpose.msra.mxu0 0
      %780 = vmatprep.subr.bf16.mxu0 0
      %781 = vmatpush1.bf16.xpose.msra.mxu0 0
      %782 = vmatprep.subr.bf16.mxu0 0
      %783 = vmatpush1.bf16.xpose.msra.mxu0 0
      %784 = vmatprep.subr.bf16.mxu0 0
      %785 = vmatpush1.bf16.xpose.msra.mxu0 0
      %786 = vmatprep.subr.bf16.mxu0 0
      %787 = vmatpush1.bf16.xpose.msra.mxu0 0
      %788 = vmatprep.subr.bf16.mxu0 0
      %789 = vmatpush1.bf16.xpose.msra.mxu0 0
      %790 = vmatprep.subr.bf16.mxu0 0
      %791 = vmatpush1.bf16.xpose.msra.mxu0 0
      %792 = vmatprep.subr.bf16.mxu0 0
      %793 = vmatpush1.bf16.xpose.msra.mxu0 0
      %794 = vmatprep.subr.bf16.mxu0 0
      %795 = vmatpush1.bf16.xpose.msra.mxu0 0
      %796 = vmatprep.subr.bf16.mxu0 0
      %797 = vmatpush1.bf16.xpose.msra.mxu0 0
      %798 = vmatprep.subr.bf16.mxu0 0
      %799 = vmatpush1.bf16.xpose.msra.mxu0 0
      %800 = vmatprep.subr.bf16.mxu0 0
      %801 = vmatpush1.bf16.xpose.msra.mxu0 0
      %802 = vmatprep.subr.bf16.mxu0 0
      %803 = vmatpush1.bf16.xpose.msra.mxu0 0
      %804 = vmatprep.subr.bf16.mxu0 0
      %805 = vmatpush1.bf16.xpose.msra.mxu0 0
      %806 = vmatprep.subr.bf16.mxu0 0
      %807 = vmatpush1.bf16.xpose.msra.mxu0 0
      %808 = vmatprep.mubr.bf16.mxu0 0
      %809 = vmatmul.mubr.bf16.gmra.mrb[0].mxu0 %v771
      %v810 = vpop.f32.mrb[0].mxu0
      %v811 = vadd.f32 0.0, %v810
      %v812 = vpop.f32.mrb[0].mxu0
      %v813 = vpop.f32.mrb[0].mxu0
      %v814 = vpop.f32.mrb[0].mxu0
      %815 = vdwg.mxu0
      %v816 = vmul.f32 %v811, 0.35355338
      %v817 = vsel %vm624, %v816, -1e+09
      %v818 = vsel %vm769, %v817, -inf
      %819 = vmax.xlane.f32.xlu0 %v818
      %v820 = vpop.xlane.xlu0 %819
      %v821 = vsub.f32 %v817, %v820
      %v822 = vmul.f32 %v821, 1.442695
      %v823 = vpow.pop %v822
      %v824 = vsel %vm769, %v823, 0.0
      %825 = vadd.xlane.f32.xlu0 %v824
      %v826 = vpop.xlane.xlu0 %825
      %v827 = vrcp.pop %v826
      %v828 = vmul.f32 %v823, %v827
      %v829 = vpack.c.bf16 %v828, %v828
      %831 = vrot.lane.b32.xlu0 %v768, 96
      %v832 = vpop.permute.xlu0 %831
      %v834 = vsel %vm769, %v829, 0
      %vm836 = vcmask 1043456
      %v838 = vsel %vm836, %v832, 0
      %840 = vmatprep.subr.bf16.mxu0 0
      %841 = vmatpush1.bf16.msra.mxu0 %v838
      %842 = vmatprep.subr.bf16.mxu0 0
      %843 = vmatpush1.bf16.msra.mxu0 0
      %844 = vmatprep.subr.bf16.mxu0 0
      %845 = vmatpush1.bf16.msra.mxu0 0
      %846 = vmatprep.subr.bf16.mxu0 0
      %847 = vmatpush1.bf16.msra.mxu0 0
      %848 = vmatprep.subr.bf16.mxu0 0
      %849 = vmatpush1.bf16.msra.mxu0 0
      %850 = vmatprep.subr.bf16.mxu0 0
      %851 = vmatpush1.bf16.msra.mxu0 0
      %852 = vmatprep.subr.bf16.mxu0 0
      %853 = vmatpush1.bf16.msra.mxu0 0
      %854 = vmatprep.subr.bf16.mxu0 0
      %855 = vmatpush1.bf16.msra.mxu0 0
      %856 = vmatprep.subr.bf16.mxu0 0
      %857 = vmatpush1.bf16.msra.mxu0 0
      %858 = vmatprep.subr.bf16.mxu0 0
      %859 = vmatpush1.bf16.msra.mxu0 0
      %860 = vmatprep.subr.bf16.mxu0 0
      %861 = vmatpush1.bf16.msra.mxu0 0
      %862 = vmatprep.subr.bf16.mxu0 0
      %863 = vmatpush1.bf16.msra.mxu0 0
      %864 = vmatprep.subr.bf16.mxu0 0
      %865 = vmatpush1.bf16.msra.mxu0 0
      %866 = vmatprep.subr.bf16.mxu0 0
      %867 = vmatpush1.bf16.msra.mxu0 0
      %868 = vmatprep.subr.bf16.mxu0 0
      %869 = vmatpush1.bf16.msra.mxu0 0
      %870 = vmatprep.subr.bf16.mxu0 0
      %871 = vmatpush1.bf16.msra.mxu0 0
      %872 = vmatprep.mubr.bf16.mxu0 0
      %873 = vmatmul.mubr.bf16.gmra.mrb[0].mxu0 %v834
      %v874 = vpop.f32.mrb[0].mxu0
      %v875 = vadd.f32 0.0, %v874
      %v876 = vpop.f32.mrb[0].mxu0
      %v877 = vpop.f32.mrb[0].mxu0
      %v878 = vpop.f32.mrb[0].mxu0
      %879 = vdwg.mxu0
      %881 = vrot.lane.b32.xlu0 %v767, 120
      %v882 = vpop.permute.xlu0 %881
      %883 = vrot.lane.b32.xlu0 %v768, 120
      %v884 = vpop.permute.xlu0 %883
      %v886 = vsel %vm769, %v882, 0
      %v889 = vsel %vm769, %v884, 0
      %891 = vmatprep.subr.bf16.mxu0 0
      %892 = vmatpush1.bf16.xpose.msra.mxu0 %v889
      %893 = vmatprep.subr.bf16.mxu0 0
      %894 = vmatpush1.bf16.xpose.msra.mxu0 0
      %895 = vmatprep.subr.bf16.mxu0 0
      %896 = vmatpush1.bf16.xpose.msra.mxu0 0
      %897 = vmatprep.subr.bf16.mxu0 0
      %898 = vmatpush1.bf16.xpose.msra.mxu0 0
      %899 = vmatprep.subr.bf16.mxu0 0
      %900 = vmatpush1.bf16.xpose.msra.mxu0 0
      %901 = vmatprep.subr.bf16.mxu0 0
      %902 = vmatpush1.bf16.xpose.msra.mxu0 0
      %903 = vmatprep.subr.bf16.mxu0 0
      %904 = vmatpush1.bf16.xpose.msra.mxu0 0
      %905 = vmatprep.subr.bf16.mxu0 0
      %906 = vmatpush1.bf16.xpose.msra.mxu0 0
      %907 = vmatprep.subr.bf16.mxu0 0
      %908 = vmatpush1.bf16.xpose.msra.mxu0 0
      %909 = vmatprep.subr.bf16.mxu0 0
      %910 = vmatpush1.bf16.xpose.msra.mxu0 0
      %911 = vmatprep.subr.bf16.mxu0 0
      %912 = vmatpush1.bf16.xpose.msra.mxu0 0
      %913 = vmatprep.subr.bf16.mxu0 0
      %914 = vmatpush1.bf16.xpose.msra.mxu0 0
      %915 = vmatprep.subr.bf16.mxu0 0
      %916 = vmatpush1.bf16.xpose.msra.mxu0 0
      %917 = vmatprep.subr.bf16.mxu0 0
      %918 = vmatpush1.bf16.xpose.msra.mxu0 0
      %919 = vmatprep.subr.bf16.mxu0 0
      %920 = vmatpush1.bf16.xpose.msra.mxu0 0
      %921 = vmatprep.subr.bf16.mxu0 0
      %922 = vmatpush1.bf16.xpose.msra.mxu0 0
      %923 = vmatprep.mubr.bf16.mxu0 0
      %924 = vmatmul.mubr.bf16.gmra.mrb[0].mxu0 %v886
      %v925 = vpop.f32.mrb[0].mxu0
      %v926 = vadd.f32 0.0, %v925
      %v927 = vpop.f32.mrb[0].mxu0
      %v928 = vpop.f32.mrb[0].mxu0
      %v929 = vpop.f32.mrb[0].mxu0
      %930 = vdwg.mxu0
      %v931 = vmul.f32 %v926, 0.35355338
      %v932 = vsel %vm624, %v931, -1e+09
      %v933 = vsel %vm769, %v932, -inf
      %934 = vmax.xlane.f32.xlu0 %v933
      %v935 = vpop.xlane.xlu0 %934
      %v936 = vsub.f32 %v932, %v935
      %v937 = vmul.f32 %v936, 1.442695
      %v938 = vpow.pop %v937
      %v939 = vsel %vm769, %v938, 0.0
      %940 = vadd.xlane.f32.xlu0 %v939
      %v941 = vpop.xlane.xlu0 %940
      %v942 = vrcp.pop %v941
      %v943 = vmul.f32 %v938, %v942
      %v944 = vpack.c.bf16 %v943, %v943
      %945 = vrot.lane.b32.xlu0 %v768, 88
      %v946 = vpop.permute.xlu0 %945
      %v948 = vsel %vm769, %v944, 0
      %v951 = vsel %vm836, %v946, 0
      %953 = vmatprep.subr.bf16.mxu0 0
      %954 = vmatpush1.bf16.msra.mxu0 %v951
      %955 = vmatprep.subr.bf16.mxu0 0
      %956 = vmatpush1.bf16.msra.mxu0 0
      %957 = vmatprep.subr.bf16.mxu0 0
      %958 = vmatpush1.bf16.msra.mxu0 0
      %959 = vmatprep.subr.bf16.mxu0 0
      %960 = vmatpush1.bf16.msra.mxu0 0
      %961 = vmatprep.subr.bf16.mxu0 0
      %962 = vmatpush1.bf16.msra.mxu0 0
      %963 = vmatprep.subr.bf16.mxu0 0
      %964 = vmatpush1.bf16.msra.mxu0 0
      %965 = vmatprep.subr.bf16.mxu0 0
      %966 = vmatpush1.bf16.msra.mxu0 0
      %967 = vmatprep.subr.bf16.mxu0 0
      %968 = vmatpush1.bf16.msra.mxu0 0
      %969 = vmatprep.subr.bf16.mxu0 0
      %970 = vmatpush1.bf16.msra.mxu0 0
      %971 = vmatprep.subr.bf16.mxu0 0
      %972 = vmatpush1.bf16.msra.mxu0 0
      %973 = vmatprep.subr.bf16.mxu0 0
      %974 = vmatpush1.bf16.msra.mxu0 0
      %975 = vmatprep.subr.bf16.mxu0 0
      %976 = vmatpush1.bf16.msra.mxu0 0
      %977 = vmatprep.subr.bf16.mxu0 0
      %978 = vmatpush1.bf16.msra.mxu0 0
      %979 = vmatprep.subr.bf16.mxu0 0
      %980 = vmatpush1.bf16.msra.mxu0 0
      %981 = vmatprep.subr.bf16.mxu0 0
      %982 = vmatpush1.bf16.msra.mxu0 0
      %983 = vmatprep.subr.bf16.mxu0 0
      %984 = vmatpush1.bf16.msra.mxu0 0
      %985 = vmatprep.mubr.bf16.mxu0 0
      %986 = vmatmul.mubr.bf16.gmra.mrb[0].mxu0 %v948
      %v987 = vpop.f32.mrb[0].mxu0
      %v988 = vadd.f32 0.0, %v987
      %v989 = vpop.f32.mrb[0].mxu0
      %v990 = vpop.f32.mrb[0].mxu0
      %v991 = vpop.f32.mrb[0].mxu0
      %992 = vdwg.mxu0
      %993 = vrot.lane.b32.xlu0 %v767, 112
      %v994 = vpop.permute.xlu0 %993
      %995 = vrot.lane.b32.xlu0 %v768, 112
      %v996 = vpop.permute.xlu0 %995
      %v998 = vsel %vm769, %v994, 0
      %v1001 = vsel %vm769, %v996, 0
      %1003 = vmatprep.subr.bf16.mxu0 0
      %1004 = vmatpush1.bf16.xpose.msra.mxu0 %v1001
      %1005 = vmatprep.subr.bf16.mxu0 0
      %1006 = vmatpush1.bf16.xpose.msra.mxu0 0
      %1007 = vmatprep.subr.bf16.mxu0 0
      %1008 = vmatpush1.bf16.xpose.msra.mxu0 0
      %1009 = vmatprep.subr.bf16.mxu0 0
      %1010 = vmatpush1.bf16.xpose.msra.mxu0 0
      %1011 = vmatprep.subr.bf16.mxu0 0
      %1012 = vmatpush1.bf16.xpose.msra.mxu0 0
      %1013 = vmatprep.subr.bf16.mxu0 0
      %1014 = vmatpush1.bf16.xpose.msra.mxu0 0
      %1015 = vmatprep.subr.bf16.mxu0 0
      %1016 = vmatpush1.bf16.xpose.msra.mxu0 0
      %1017 = vmatprep.subr.bf16.mxu0 0
      %1018 = vmatpush1.bf16.xpose.msra.mxu0 0
      %1019 = vmatprep.subr.bf16.mxu0 0
      %1020 = vmatpush1.bf16.xpose.msra.mxu0 0
      %1021 = vmatprep.subr.bf16.mxu0 0
      %1022 = vmatpush1.bf16.xpose.msra.mxu0 0
      %1023 = vmatprep.subr.bf16.mxu0 0
      %1024 = vmatpush1.bf16.xpose.msra.mxu0 0
      %1025 = vmatprep.subr.bf16.mxu0 0
      %1026 = vmatpush1.bf16.xpose.msra.mxu0 0
      %1027 = vmatprep.subr.bf16.mxu0 0
      %1028 = vmatpush1.bf16.xpose.msra.mxu0 0
      %1029 = vmatprep.subr.bf16.mxu0 0
      %1030 = vmatpush1.bf16.xpose.msra.mxu0 0
      %1031 = vmatprep.subr.bf16.mxu0 0
      %1032 = vmatpush1.bf16.xpose.msra.mxu0 0
      %1033 = vmatprep.subr.bf16.mxu0 0
      %1034 = vmatpush1.bf16.xpose.msra.mxu0 0
      %1035 = vmatprep.mubr.bf16.mxu0 0
      %1036 = vmatmul.mubr.bf16.gmra.mrb[0].mxu0 %v998
      %v1037 = vpop.f32.mrb[0].mxu0
      %v1038 = vadd.f32 0.0, %v1037
      %v1039 = vpop.f32.mrb[0].mxu0
      %v1040 = vpop.f32.mrb[0].mxu0
      %v1041 = vpop.f32.mrb[0].mxu0
      %1042 = vdwg.mxu0
      %v1043 = vmul.f32 %v1038, 0.35355338
      %v1044 = vsel %vm624, %v1043, -1e+09
      %v1045 = vsel %vm769, %v1044, -inf
      %1046 = vmax.xlane.f32.xlu0 %v1045
      %v1047 = vpop.xlane.xlu0 %1046
      %v1048 = vsub.f32 %v1044, %v1047
      %v1049 = vmul.f32 %v1048, 1.442695
      %v1050 = vpow.pop %v1049
      %v1051 = vsel %vm769, %v1050, 0.0
      %1052 = vadd.xlane.f32.xlu0 %v1051
      %v1053 = vpop.xlane.xlu0 %1052
      %v1054 = vrcp.pop %v1053
      %v1055 = vmul.f32 %v1050, %v1054
      %v1056 = vpack.c.bf16 %v1055, %v1055
      %1057 = vrot.lane.b32.xlu0 %v768, 80
      %v1058 = vpop.permute.xlu0 %1057
      %v1060 = vsel %vm769, %v1056, 0
      %v1063 = vsel %vm836, %v1058, 0
      %1065 = vmatprep.subr.bf16.mxu0 0
      %1066 = vmatpush1.bf16.msra.mxu0 %v1063
      %1067 = vmatprep.subr.bf16.mxu0 0
      %1068 = vmatpush1.bf16.msra.mxu0 0
      %1069 = vmatprep.subr.bf16.mxu0 0
      %1070 = vmatpush1.bf16.msra.mxu0 0
      %1071 = vmatprep.subr.bf16.mxu0 0
      %1072 = vmatpush1.bf16.msra.mxu0 0
      %1073 = vmatprep.subr.bf16.mxu0 0
      %1074 = vmatpush1.bf16.msra.mxu0 0
      %1075 = vmatprep.subr.bf16.mxu0 0
      %1076 = vmatpush1.bf16.msra.mxu0 0
      %1077 = vmatprep.subr.bf16.mxu0 0
      %1078 = vmatpush1.bf16.msra.mxu0 0
      %1079 = vmatprep.subr.bf16.mxu0 0
      %1080 = vmatpush1.bf16.msra.mxu0 0
      %1081 = vmatprep.subr.bf16.mxu0 0
      %1082 = vmatpush1.bf16.msra.mxu0 0
      %1083 = vmatprep.subr.bf16.mxu0 0
      %1084 = vmatpush1.bf16.msra.mxu0 0
      %1085 = vmatprep.subr.bf16.mxu0 0
      %1086 = vmatpush1.bf16.msra.mxu0 0
      %1087 = vmatprep.subr.bf16.mxu0 0
      %1088 = vmatpush1.bf16.msra.mxu0 0
      %1089 = vmatprep.subr.bf16.mxu0 0
      %1090 = vmatpush1.bf16.msra.mxu0 0
      %1091 = vmatprep.subr.bf16.mxu0 0
      %1092 = vmatpush1.bf16.msra.mxu0 0
      %1093 = vmatprep.subr.bf16.mxu0 0
      %1094 = vmatpush1.bf16.msra.mxu0 0
      %1095 = vmatprep.subr.bf16.mxu0 0
      %1096 = vmatpush1.bf16.msra.mxu0 0
      %1097 = vmatprep.mubr.bf16.mxu0 0
      %1098 = vmatmul.mubr.bf16.gmra.mrb[0].mxu0 %v1060
      %v1099 = vpop.f32.mrb[0].mxu0
      %v1100 = vadd.f32 0.0, %v1099
      %v1101 = vpop.f32.mrb[0].mxu0
      %v1102 = vpop.f32.mrb[0].mxu0
      %v1103 = vpop.f32.mrb[0].mxu0
      %1104 = vdwg.mxu0
      %1105 = vrot.lane.b32.xlu0 %v767, 104
      %v1106 = vpop.permute.xlu0 %1105
      %1107 = vrot.lane.b32.xlu0 %v768, 104
      %v1108 = vpop.permute.xlu0 %1107
      %v1110 = vsel %vm769, %v1106, 0
      %v1113 = vsel %vm769, %v1108, 0
      %1115 = vmatprep.subr.bf16.mxu0 0
      %1116 = vmatpush1.bf16.xpose.msra.mxu0 %v1113
      %1117 = vmatprep.subr.bf16.mxu0 0
      %1118 = vmatpush1.bf16.xpose.msra.mxu0 0
      %1119 = vmatprep.subr.bf16.mxu0 0
      %1120 = vmatpush1.bf16.xpose.msra.mxu0 0
      %1121 = vmatprep.subr.bf16.mxu0 0
      %1122 = vmatpush1.bf16.xpose.msra.mxu0 0
      %1123 = vmatprep.subr.bf16.mxu0 0
      %1124 = vmatpush1.bf16.xpose.msra.mxu0 0
      %1125 = vmatprep.subr.bf16.mxu0 0
      %1126 = vmatpush1.bf16.xpose.msra.mxu0 0
      %1127 = vmatprep.subr.bf16.mxu0 0
      %1128 = vmatpush1.bf16.xpose.msra.mxu0 0
      %1129 = vmatprep.subr.bf16.mxu0 0
      %1130 = vmatpush1.bf16.xpose.msra.mxu0 0
      %1131 = vmatprep.subr.bf16.mxu0 0
      %1132 = vmatpush1.bf16.xpose.msra.mxu0 0
      %1133 = vmatprep.subr.bf16.mxu0 0
      %1134 = vmatpush1.bf16.xpose.msra.mxu0 0
      %1135 = vmatprep.subr.bf16.mxu0 0
      %1136 = vmatpush1.bf16.xpose.msra.mxu0 0
      %1137 = vmatprep.subr.bf16.mxu0 0
      %1138 = vmatpush1.bf16.xpose.msra.mxu0 0
      %1139 = vmatprep.subr.bf16.mxu0 0
      %1140 = vmatpush1.bf16.xpose.msra.mxu0 0
      %1141 = vmatprep.subr.bf16.mxu0 0
      %1142 = vmatpush1.bf16.xpose.msra.mxu0 0
      %1143 = vmatprep.subr.bf16.mxu0 0
      %1144 = vmatpush1.bf16.xpose.msra.mxu0 0
      %1145 = vmatprep.subr.bf16.mxu0 0
      %1146 = vmatpush1.bf16.xpose.msra.mxu0 0
      %1147 = vmatprep.mubr.bf16.mxu0 0
      %1148 = vmatmul.mubr.bf16.gmra.mrb[0].mxu0 %v1110
      %v1149 = vpop.f32.mrb[0].mxu0
      %v1150 = vadd.f32 0.0, %v1149
      %v1151 = vpop.f32.mrb[0].mxu0
      %v1152 = vpop.f32.mrb[0].mxu0
      %v1153 = vpop.f32.mrb[0].mxu0
      %1154 = vdwg.mxu0
      %v1155 = vmul.f32 %v1150, 0.35355338
      %v1156 = vsel %vm624, %v1155, -1e+09
      %v1157 = vsel %vm769, %v1156, -inf
      %1158 = vmax.xlane.f32.xlu0 %v1157
      %v1159 = vpop.xlane.xlu0 %1158
      %v1160 = vsub.f32 %v1156, %v1159
      %v1161 = vmul.f32 %v1160, 1.442695
      %v1162 = vpow.pop %v1161
      %v1163 = vsel %vm769, %v1162, 0.0
      %1164 = vadd.xlane.f32.xlu0 %v1163
      %v1165 = vpop.xlane.xlu0 %1164
      %v1166 = vrcp.pop %v1165
      %v1167 = vmul.f32 %v1162, %v1166
      %v1168 = vpack.c.bf16 %v1167, %v1167
      %1169 = vrot.lane.b32.xlu0 %v768, 72
      %v1170 = vpop.permute.xlu0 %1169
      %v1172 = vsel %vm769, %v1168, 0
      %v1175 = vsel %vm836, %v1170, 0
      %1177 = vmatprep.subr.bf16.mxu0 0
      %1178 = vmatpush1.bf16.msra.mxu0 %v1175
      %1179 = vmatprep.subr.bf16.mxu0 0
      %1180 = vmatpush1.bf16.msra.mxu0 0
      %1181 = vmatprep.subr.bf16.mxu0 0
      %1182 = vmatpush1.bf16.msra.mxu0 0
      %1183 = vmatprep.subr.bf16.mxu0 0
      %1184 = vmatpush1.bf16.msra.mxu0 0
      %1185 = vmatprep.subr.bf16.mxu0 0
      %1186 = vmatpush1.bf16.msra.mxu0 0
      %1187 = vmatprep.subr.bf16.mxu0 0
      %1188 = vmatpush1.bf16.msra.mxu0 0
      %1189 = vmatprep.subr.bf16.mxu0 0
      %1190 = vmatpush1.bf16.msra.mxu0 0
      %1191 = vmatprep.subr.bf16.mxu0 0
      %1192 = vmatpush1.bf16.msra.mxu0 0
      %1193 = vmatprep.subr.bf16.mxu0 0
      %1194 = vmatpush1.bf16.msra.mxu0 0
      %1195 = vmatprep.subr.bf16.mxu0 0
      %1196 = vmatpush1.bf16.msra.mxu0 0
      %1197 = vmatprep.subr.bf16.mxu0 0
      %1198 = vmatpush1.bf16.msra.mxu0 0
      %1199 = vmatprep.subr.bf16.mxu0 0
      %1200 = vmatpush1.bf16.msra.mxu0 0
      %1201 = vmatprep.subr.bf16.mxu0 0
      %1202 = vmatpush1.bf16.msra.mxu0 0
      %1203 = vmatprep.subr.bf16.mxu0 0
      %1204 = vmatpush1.bf16.msra.mxu0 0
      %1205 = vmatprep.subr.bf16.mxu0 0
      %1206 = vmatpush1.bf16.msra.mxu0 0
      %1207 = vmatprep.subr.bf16.mxu0 0
      %1208 = vmatpush1.bf16.msra.mxu0 0
      %1209 = vmatprep.mubr.bf16.mxu0 0
      %1210 = vmatmul.mubr.bf16.gmra.mrb[0].mxu0 %v1172
      %v1211 = vpop.f32.mrb[0].mxu0
      %v1212 = vadd.f32 0.0, %v1211
      %v1213 = vpop.f32.mrb[0].mxu0
      %v1214 = vpop.f32.mrb[0].mxu0
      %v1215 = vpop.f32.mrb[0].mxu0
      %1216 = vdwg.mxu0
      %1218 = vrot.lane.b32.xlu0 %v988, 8
      %v1219 = vpop.permute.xlu0 %1218
      %1222 = vrot.lane.b32.xlu0 %v1100, 16
      %v1223 = vpop.permute.xlu0 %1222
      %1226 = vrot.lane.b32.xlu0 %v1212, 24
      %v1227 = vpop.permute.xlu0 %1226
      %v1229 = vsel %vm769, %v875, %v1219
      %vm1230 = vcmask 130048
      %v1231 = vsel %vm1230, %v1229, %v1223
      %vm1232 = vcmask 195584
      %v1233 = vsel %vm1232, %v1231, %v1227
      %v1234 = vpack.c.bf16 %v1233, %v1233
      %v1236 = vlaneseq
      %v1237 = vshrl.u32 %v1236, 7
      %v1238 = vsub.s32 0, %v1237
      %v1239 = vrot.slane %v641, %v1238
      %v1245 = vunpack.c.l.b16 %v637
      %v1246 = vunpack.c.l.b16 %v638
      %v1247 = vunpack.c.l.b16 %v639
      %v1248 = vunpack.c.l.b16 %v640
      %v1249 = vpack.c.b16 %v1246, %v1245
      %v1250 = vpack.c.b16 %v1248, %v1247
      %v1254 = vsel %vm662, %v1234, 0
      %1256 = vmatprep.subr.bf16.mxu0 0
      %1257 = vmatpush1.bf16.msra.mxu0 %v1249
      %1258 = vmatprep.subr.bf16.mxu0 0
      %1259 = vmatpush1.bf16.msra.mxu0 %v1250
      %1260 = vmatprep.subr.bf16.mxu0 0
      %1261 = vmatpush1.bf16.msra.mxu0 0
      %1262 = vmatprep.subr.bf16.mxu0 0
      %1263 = vmatpush1.bf16.msra.mxu0 0
      %1264 = vmatprep.subr.bf16.mxu0 0
      %1265 = vmatpush1.bf16.msra.mxu0 0
      %1266 = vmatprep.subr.bf16.mxu0 0
      %1267 = vmatpush1.bf16.msra.mxu0 0
      %1268 = vmatprep.subr.bf16.mxu0 0
      %1269 = vmatpush1.bf16.msra.mxu0 0
      %1270 = vmatprep.subr.bf16.mxu0 0
      %1271 = vmatpush1.bf16.msra.mxu0 0
      %1272 = vmatprep.subr.bf16.mxu0 0
      %1273 = vmatpush1.bf16.msra.mxu0 0
      %1274 = vmatprep.subr.bf16.mxu0 0
      %1275 = vmatpush1.bf16.msra.mxu0 0
      %1276 = vmatprep.subr.bf16.mxu0 0
      %1277 = vmatpush1.bf16.msra.mxu0 0
      %1278 = vmatprep.subr.bf16.mxu0 0
      %1279 = vmatpush1.bf16.msra.mxu0 0
      %1280 = vmatprep.subr.bf16.mxu0 0
      %1281 = vmatpush1.bf16.msra.mxu0 0
      %1282 = vmatprep.subr.bf16.mxu0 0
      %1283 = vmatpush1.bf16.msra.mxu0 0
      %1284 = vmatprep.subr.bf16.mxu0 0
      %1285 = vmatpush1.bf16.msra.mxu0 0
      %1286 = vmatprep.subr.bf16.mxu0 0
      %1287 = vmatpush1.bf16.msra.mxu0 0
      %1288 = vmatprep.mubr.bf16.mxu0 0
      %1289 = vmatmul.mubr.bf16.gmra.mrb[0].mxu0 %v1254
      %v1290 = vpop.f32.mrb[0].mxu0
      %v1291 = vadd.f32 %v1239, %v1290
      %v1292 = vpop.f32.mrb[0].mxu0
      %v1293 = vpop.f32.mrb[0].mxu0
      %v1294 = vpop.f32.mrb[0].mxu0
      %1295 = vdwg.mxu0
      %v1296 = vunpack.c.l.bf16 %v625
      %v1297 = vadd.f32 %v1291, %v1296
      %v1298 = vsel %vm662, %v1297, 0.0
      %1299 = vadd.xlane.f32.xlu0 %v1298
      %v1300 = vpop.xlane.xlu0 %1299
      %v1301 = vrcp.pop 32.0
      %v1302 = vmul.f32 %v1300, %v1301
      %v1303 = vsub.f32 %v1297, %v1302
      %v1304 = vmul.f32 %v1303, %v1303
      %v1305 = vsel %vm662, %v1304, 0.0
      %1306 = vadd.xlane.f32.xlu0 %v1305
      %v1307 = vpop.xlane.xlu0 %1306
      %v1308 = vmul.f32 %v1307, %v1301
      %v1309 = vadd.f32 %v1308, 1e-06
      %v1310 = vrsqrt.pop %v1309
      %v1311 = vmul.f32 %v1303, %v1310
      %v1313 = vlaneseq
      %v1314 = vshrl.u32 %v1313, 7
      %v1315 = vsub.s32 0, %v1314
      %v1316 = vrot.slane %v642, %v1315
      %v1318 = vmul.f32 %v1311, %v1316
      %v1320 = vlaneseq
      %v1321 = vshrl.u32 %v1320, 7
      %v1322 = vsub.s32 0, %v1321
      %v1323 = vrot.slane %v643, %v1322
      %v1325 = vadd.f32 %v1318, %v1323
      %v1326 = vpack.c.bf16 %v1325, %v1325
      %v1327 = vld [vmem:[%s11] sm:$0xf]
      %v1328 = vld [vmem:[%s11 + $0x4] sm:$0xf]
      %v1329 = vld [vmem:[%s11 + $0x8] sm:$0xf]
      %v1330 = vld [vmem:[%s11 + $0xc] sm:$0xf]
      %v1331 = vld [vmem:[%s12] sm:$0x1]
      %v1333 = vlaneseq
      %v1334 = vshrl.u32 %v1333, 7
      %v1335 = vsub.s32 0, %v1334
      %v1336 = vrot.slane %v1331, %v1335
      %v1342 = vunpack.c.l.b16 %v1327
      %v1343 = vunpack.c.l.b16 %v1328
      %v1344 = vunpack.c.l.b16 %v1329
      %v1345 = vunpack.c.l.b16 %v1330
      %v1346 = vpack.c.b16 %v1343, %v1342
      %v1347 = vpack.c.b16 %v1345, %v1344
      %v1351 = vsel %vm662, %v1326, 0
      %1353 = vmatprep.subr.bf16.mxu0 0
      %1354 = vmatpush1.bf16.msra.mxu0 %v1346
      %1355 = vmatprep.subr.bf16.mxu0 0
      %1356 = vmatpush1.bf16.msra.mxu0 %v1347
      %1357 = vmatprep.subr.bf16.mxu0 0
      %1358 = vmatpush1.bf16.msra.mxu0 0
      %1359 = vmatprep.subr.bf16.mxu0 0
      %1360 = vmatpush1.bf16.msra.mxu0 0
      %1361 = vmatprep.subr.bf16.mxu0 0
      %1362 = vmatpush1.bf16.msra.mxu0 0
      %1363 = vmatprep.subr.bf16.mxu0 0
      %1364 = vmatpush1.bf16.msra.mxu0 0
      %1365 = vmatprep.subr.bf16.mxu0 0
      %1366 = vmatpush1.bf16.msra.mxu0 0
      %1367 = vmatprep.subr.bf16.mxu0 0
      %1368 = vmatpush1.bf16.msra.mxu0 0
      %1369 = vmatprep.subr.bf16.mxu0 0
      %1370 = vmatpush1.bf16.msra.mxu0 0
      %1371 = vmatprep.subr.bf16.mxu0 0
      %1372 = vmatpush1.bf16.msra.mxu0 0
      %1373 = vmatprep.subr.bf16.mxu0 0
      %1374 = vmatpush1.bf16.msra.mxu0 0
      %1375 = vmatprep.subr.bf16.mxu0 0
      %1376 = vmatpush1.bf16.msra.mxu0 0
      %1377 = vmatprep.subr.bf16.mxu0 0
      %1378 = vmatpush1.bf16.msra.mxu0 0
      %1379 = vmatprep.subr.bf16.mxu0 0
      %1380 = vmatpush1.bf16.msra.mxu0 0
      %1381 = vmatprep.subr.bf16.mxu0 0
      %1382 = vmatpush1.bf16.msra.mxu0 0
      %1383 = vmatprep.subr.bf16.mxu0 0
      %1384 = vmatpush1.bf16.msra.mxu0 0
      %1385 = vmatprep.mubr.bf16.mxu0 0
      %1386 = vmatmul.mubr.bf16.gmra.mrb[0].mxu0 %v1351
      %v1387 = vpop.f32.mrb[0].mxu0
      %v1388 = vadd.f32 %v1336, %v1387
      %v1389 = vpop.f32.mrb[0].mxu0
      %v1390 = vpop.f32.mrb[0].mxu0
      %v1391 = vpop.f32.mrb[0].mxu0
      %1392 = vdwg.mxu0
      %v1393 = vmax.f32 %v1388, 0.0
      %v1394 = vpack.c.bf16 %v1393, %v1393
      %v1395 = vld [vmem:[%s13] sm:$0xf]
      %v1396 = vld [vmem:[%s13 + $0x4] sm:$0xf]
      %v1397 = vld [vmem:[%s13 + $0x8] sm:$0xf]
      %v1398 = vld [vmem:[%s13 + $0xc] sm:$0xf]
      %v1399 = vld [vmem:[%s13 + $0x10] sm:$0xf]
      %v1400 = vld [vmem:[%s13 + $0x14] sm:$0xf]
      %v1401 = vld [vmem:[%s13 + $0x18] sm:$0xf]
      %v1402 = vld [vmem:[%s13 + $0x1c] sm:$0xf]
      %v1403 = vld [vmem:[%s14] sm:$0x1]
      %v1405 = vlaneseq
      %v1406 = vshrl.u32 %v1405, 7
      %v1407 = vsub.s32 0, %v1406
      %v1408 = vrot.slane %v1403, %v1407
      %v1418 = vunpack.c.l.b16 %v1395
      %v1419 = vunpack.c.l.b16 %v1396
      %v1420 = vunpack.c.l.b16 %v1397
      %v1421 = vunpack.c.l.b16 %v1398
      %v1422 = vunpack.c.l.b16 %v1399
      %v1423 = vunpack.c.l.b16 %v1400
      %v1424 = vunpack.c.l.b16 %v1401
      %v1425 = vunpack.c.l.b16 %v1402
      %v1426 = vpack.c.b16 %v1419, %v1418
      %v1427 = vpack.c.b16 %v1421, %v1420
      %v1428 = vpack.c.b16 %v1423, %v1422
      %v1429 = vpack.c.b16 %v1425, %v1424
      %vm1434 = vcmask 523264
      %v1436 = vsel %vm1434, %v1394, 0
      %1438 = vmatprep.subr.bf16.mxu0 0
      %1439 = vmatpush1.bf16.msra.mxu0 %v1426
      %1440 = vmatprep.subr.bf16.mxu0 0
      %1441 = vmatpush1.bf16.msra.mxu0 %v1427
      %1442 = vmatprep.subr.bf16.mxu0 0
      %1443 = vmatpush1.bf16.msra.mxu0 %v1428
      %1444 = vmatprep.subr.bf16.mxu0 0
      %1445 = vmatpush1.bf16.msra.mxu0 %v1429
      %1446 = vmatprep.subr.bf16.mxu0 0
      %1447 = vmatpush1.bf16.msra.mxu0 0
      %1448 = vmatprep.subr.bf16.mxu0 0
      %1449 = vmatpush1.bf16.msra.mxu0 0
      %1450 = vmatprep.subr.bf16.mxu0 0
      %1451 = vmatpush1.bf16.msra.mxu0 0
      %1452 = vmatprep.subr.bf16.mxu0 0
      %1453 = vmatpush1.bf16.msra.mxu0 0
      %1454 = vmatprep.subr.bf16.mxu0 0
      %1455 = vmatpush1.bf16.msra.mxu0 0
      %1456 = vmatprep.subr.bf16.mxu0 0
      %1457 = vmatpush1.bf16.msra.mxu0 0
      %1458 = vmatprep.subr.bf16.mxu0 0
      %1459 = vmatpush1.bf16.msra.mxu0 0
      %1460 = vmatprep.subr.bf16.mxu0 0
      %1461 = vmatpush1.bf16.msra.mxu0 0
      %1462 = vmatprep.subr.bf16.mxu0 0
      %1463 = vmatpush1.bf16.msra.mxu0 0
      %1464 = vmatprep.subr.bf16.mxu0 0
      %1465 = vmatpush1.bf16.msra.mxu0 0
      %1466 = vmatprep.subr.bf16.mxu0 0
      %1467 = vmatpush1.bf16.msra.mxu0 0
      %1468 = vmatprep.subr.bf16.mxu0 0
      %1469 = vmatpush1.bf16.msra.mxu0 0
      %1470 = vmatprep.mubr.bf16.mxu0 0
      %1471 = vmatmul.mubr.bf16.gmra.mrb[0].mxu0 %v1436
      %v1472 = vpop.f32.mrb[0].mxu0
      %v1473 = vadd.f32 %v1408, %v1472
      %v1474 = vpop.f32.mrb[0].mxu0
      %v1475 = vpop.f32.mrb[0].mxu0
      %v1476 = vpop.f32.mrb[0].mxu0
      %1477 = vdwg.mxu0
      %v1478 = vadd.f32 %v1473, %v1325
      %v1479 = vld [vmem:[%s15] sm:$0x1]
      %v1480 = vld [vmem:[%s16] sm:$0x1]
      %v1481 = vsel %vm662, %v1478, 0.0
      %1482 = vadd.xlane.f32.xlu0 %v1481
      %v1483 = vpop.xlane.xlu0 %1482
      %v1484 = vmul.f32 %v1483, %v1301
      %v1485 = vsub.f32 %v1478, %v1484
      %v1486 = vmul.f32 %v1485, %v1485
      %v1487 = vsel %vm662, %v1486, 0.0
      %1488 = vadd.xlane.f32.xlu0 %v1487
      %v1489 = vpop.xlane.xlu0 %1488
      %v1490 = vmul.f32 %v1489, %v1301
      %v1491 = vadd.f32 %v1490, 1e-06
      %v1492 = vrsqrt.pop %v1491
      %v1493 = vmul.f32 %v1485, %v1492
      %v1495 = vlaneseq
      %v1496 = vshrl.u32 %v1495, 7
      %v1497 = vsub.s32 0, %v1496
      %v1498 = vrot.slane %v1479, %v1497
      %v1500 = vmul.f32 %v1493, %v1498
      %v1502 = vlaneseq
      %v1503 = vshrl.u32 %v1502, 7
      %v1504 = vsub.s32 0, %v1503
      %v1505 = vrot.slane %v1480, %v1504
      %v1507 = vadd.f32 %v1500, %v1505
      %v1508 = vpack.c.bf16 %v1507, %v1507
      %vm1509 = vcmask 257024
      %1510 = vst.msk [vmem:[%s619] sm:$0xf] %vm1509, %v1508
      %p1511 = scmp.lt.s32.totalorder %s32, 1
      %s1512 = scalar_select %p1511, %s32, 1
      %p1513 = scmp.lt.s32.totalorder %s33, 0
      %s1514 = scalar_select %p1513, %s33, 0
      %s1515 = sadd.s32 %s1514, %s1512
      %s1516 = smul.addr %s1515, 4
      %s1517 = scalar_lea.vmem %s17, %s1516
      // Predicated region
      $region89: #{run.7} parent=87 // pred_check
        %p1518 = pneg %p436
      $region90: #{run.7} parent=87 // pred_check_branch
        %1520 = sbr.rel (%p1518) target = $region92
      $region91: #{run.7} parent=87 // pred_region
        _
      $region92: #{run.7} parent=87 // pred_fallthru
        _
    $region88: #{run.7} parent=5 // pred_fallthru
      _
    %p1521 = scmp.le.s32.totalorder 2, %s23
    // Predicated region
    $region93: #{run.7} parent=5 // pred_check
      %p1522 = pneg %p1521
    $region94: #{run.7} parent=5 // pred_check_branch
      %1524 = sbr.rel (%p1522) target = $region96
    $region95: #{run.7} parent=5 // pred_region
      %s1525 = ssub.s32 %s23, 2
      // Predicated region
      $region97: #{run.7} parent=95 // pred_check
        %p1526 = pneg %p442
      $region98: #{run.7} parent=95 // pred_check_branch
        %1528 = sbr.rel (%p1526) target = $region100
      $region99: #{run.7} parent=95 // pred_region
        %p1529 = scmp.lt.s32.totalorder %s34, 1
        %s1530 = scalar_select %p1529, %s34, 1
        %p1531 = scmp.lt.s32.totalorder %s35, 0
        %s1532 = scalar_select %p1531, %s35, 0
        %s1533 = sadd.s32 %s1532, %s1530
        %s1534 = smul.addr %s1533, 4
        %s1535 = scalar_lea.vmem %s17, %s1534
      $region100: #{run.7} parent=95 // pred_fallthru
        _
    $region96: #{run.7} parent=5 // pred_fallthru
      _
  $region6: #{run.7} parent=0 // loop_footer
    %s27 = sadd.s32 1, %s23
  $region7: #{run.7} parent=0 // loop_footer_branch
    %22 = sbr.rel target = $region3
  $region8: #{run.7} parent=0 // loop_exit
    _

</llo_original>
